<compile_context>
chip_gen: v6e
topology: v6e:2x2x1
jax: 0.10.0
libtpu: 0.0.40
codegen_flags: <defaults>
</compile_context>

<pallas_src>
import functools

import jax
import jax.numpy as jnp
import numpy as np
from jax.experimental import pallas as pl
from jax.experimental.pallas import tpu as pltpu

f32 = jnp.float32
bf16 = jnp.bfloat16


# --------------------------- kernels ---------------------------

def _attention_nocov_kernel(dec_ref, enc_ref, mask_ref,
                            whT_ref, wdT_ref, wdb_ref, v_ref,
                            ht_ref, attn_ref, *, ew_dtype):
    """No-coverage path, fully vectorized over the (Bb, Tt) tile."""
    Bb, Tt, Hp = dec_ref.shape
    Sp = enc_ref.shape[1]

    enc_bf = enc_ref[...]                                   # (Bb,Sp,Hp) bf16
    mask3 = mask_ref[...]                                   # (Bb,1,Sp)  f32
    vk = v_ref[...].astype(ew_dtype)                        # (1,Hp)

    # encoder_feature = W_h(enc): one big-M MXU matmul per (b,t) tile (MXU is
    # otherwise idle in the score phase; enc block itself is not re-DMA'd).
    enc_feat = jnp.dot(enc_bf.reshape(Bb * Sp, Hp), whT_ref[...],
                       preferred_element_type=f32).reshape(Bb, 1, Sp, Hp)
    # dec_fea = decode_proj(dec): big-M MXU matmul for the whole T tile.
    dec_fea = (jnp.dot(dec_ref[...].reshape(Bb * Tt, Hp), wdT_ref[...],
                       preferred_element_type=f32)
               + wdb_ref[...]).reshape(Bb, Tt, 1, Hp)

    # Sum in f32, tanh in ew_dtype (bf16 on v6e/v7x, f32 on v5e).
    e = jnp.tanh((enc_feat + dec_fea).astype(ew_dtype))     # (Bb,Tt,Sp,Hp)
    scores = jnp.sum((e * vk).astype(f32), axis=-1)         # (Bb,Tt,Sp) f32

    # Fused masked softmax: softmax * mask / sum == exp(s-m)*mask / sum(...).
    m = jnp.max(scores, axis=-1, keepdims=True)
    ex = jnp.exp(scores - m) * mask3
    attn = ex * pl.reciprocal(jnp.sum(ex, axis=-1, keepdims=True), approx=True)

    attn_ref[...] = attn
    # Batched context matmul for the whole T tile.
    ht_ref[...] = jnp.einsum('bts,bsh->bth', attn.astype(bf16), enc_bf,
                             preferred_element_type=f32)


def _attention_cov_kernel(dec_ref, enc_ref, mask_ref, cov_ref, dmask_ref,
                          whT_ref, wdT_ref, wdb_ref, v_ref, wc_ref,
                          ht_ref, attn_ref, covout_ref, lossnum_ref,
                          dec_fea_ref, *, ew_dtype):
    """Coverage path: sequential recurrence over T (coverage carried)."""
    Bb, T, Hp = dec_ref.shape
    Sp = enc_ref.shape[1]

    enc_bf = enc_ref[...]                                   # (Bb,Sp,Hp) bf16
    mask = mask_ref[...].reshape(Bb, Sp)                    # (Bb,Sp) f32
    vk = v_ref[...].astype(ew_dtype)                        # (1,Hp)
    wc_row = wc_ref[...]                                    # (1,Hp) f32

    # Batched projections (big-M MXU matmuls), hoisted out of the T loop.
    enc_feat = jnp.dot(enc_bf.reshape(Bb * Sp, Hp), whT_ref[...],
                       preferred_element_type=f32).reshape(Bb, Sp, Hp)
    dec_fea_ref[...] = (jnp.dot(dec_ref[...].reshape(Bb * T, Hp), wdT_ref[...],
                                preferred_element_type=f32)
                        + wdb_ref[...]).reshape(Bb, T, Hp)

    cov0 = cov_ref[...].reshape(Bb, Sp)                     # (Bb,Sp) f32
    lacc0 = jnp.zeros((Bb, 1), f32)

    def body(i, carry):
        cov, lacc = carry
        dec_i = dec_fea_ref[:, pl.ds(i, 1), :]              # (Bb,1,Hp) f32
        # W_c(coverage) == coverage outer w_c -> pure VPU broadcast multiply.
        cov_feat = cov[:, :, None] * wc_row                 # (Bb,Sp,Hp)
        e = jnp.tanh((enc_feat + dec_i + cov_feat).astype(ew_dtype))
        scores = jnp.sum((e * vk).astype(f32), axis=-1)     # (Bb,Sp)

        m = jnp.max(scores, axis=-1, keepdims=True)
        ex = jnp.exp(scores - m) * mask
        # Exact division here: coverage accumulates attn over T steps.
        attn = ex / jnp.sum(ex, axis=-1, keepdims=True)     # (Bb,Sp)

        step_loss = jnp.sum(jnp.minimum(attn, cov), axis=-1, keepdims=True)
        dm_i = dmask_ref[:, pl.ds(i, 1), :].reshape(Bb, 1)  # (Bb,1)
        attn_ref[:, pl.ds(i, 1), :] = attn[:, None, :]
        return cov + attn, lacc + step_loss * dm_i

    cov_fin, lacc = jax.lax.fori_loop(0, T, body, (cov0, lacc0),
                                      unroll=2 if T >= 2 else 1)

    covout_ref[...] = cov_fin.reshape(Bb, 1, Sp)
    lossnum_ref[...] = lacc.reshape(Bb, 1, 1)
    # Context matmul for all T steps at once (hoisted out of the loop).
    attn_all = attn_ref[...]                                # (Bb,T,Sp) f32
    ht_ref[...] = jnp.einsum('bts,bsh->bth', attn_all.astype(bf16), enc_bf,
                             preferred_element_type=f32)


# --------------------------- glue helpers ---------------------------

def _ru(x, m):
    return ((x + m - 1) // m) * m


def _pad_dim(x, axis, size):
    if x.shape[axis] == size:
        return x
    pads = [(0, 0)] * x.ndim
    pads[axis] = (0, size - x.shape[axis])
    return jnp.pad(x, pads)


def _divisors_desc(n):
    return [d for d in range(n, 0, -1) if n % d == 0]


def _chip_config():
    """(vmem_limit_bytes, elementwise dtype) derived from the attached TPU."""
    kind = ""
    try:
        kind = jax.devices()[0].device_kind.lower()
    except Exception:
        pass
    if "v6" in kind:                       # 128 MiB physical, bf16 VPU/EUP
        return 96 * (1 << 20), bf16
    if "v7" in kind or "7x" in kind or "tpu7" in kind:
        return 48 * (1 << 20), bf16        # only 64 MiB physical on v7x
    if "v5" in kind:                       # no bf16 VPU/EUP on v5e
        return 64 * (1 << 20), f32
    return 32 * (1 << 20), f32             # conservative default


def _nocov_footprint(Bb, Tt, Sp, Hp, ew_bytes):
    dbl = 2
    inputs = dbl * (Bb * Tt * Hp * 2 + Bb * Sp * Hp * 2 + Bb * Sp * 4)
    weights = dbl * (2 * Hp * Hp * 2 + 3 * Hp * 4)
    outputs = dbl * (Bb * Tt * Hp * 4 + Bb * Tt * Sp * 4)
    interm = Bb * Tt * Sp * Hp * (ew_bytes + 2) + 3 * Bb * Tt * Sp * 4
    return inputs + weights + outputs + interm


def _pick_nocov_tiles(B, Tp, Sp, Hp, budget, ew_bytes):
    bb_cands = [d for d in _divisors_desc(B) if d <= 8]
    tt_cands = [d for d in _divisors_desc(Tp)
                if (d % 8 == 0 or d == Tp) and d <= 256]
    if not tt_cands:
        tt_cands = [Tp]
    fitting = [(bb, tt) for bb in bb_cands for tt in tt_cands
               if _nocov_footprint(bb, tt, Sp, Hp, ew_bytes) <= budget]
    if not fitting:
        fitting = [(1, min(tt_cands))]
    # Prefer configurations with >= 2 grid steps (pipelining / megacore).
    multi = [c for c in fitting if (B // c[0]) * (Tp // c[1]) >= 2]
    pool = multi if multi else fitting
    return max(pool, key=lambda c: (c[0] * c[1], c[0]))


def _cov_footprint(Bb, T, Sp, Hp, ew_bytes):
    dbl = 2
    inputs = dbl * (Bb * T * Hp * 2 + Bb * Sp * Hp * 2 + 2 * Bb * Sp * 4
                    + Bb * T * 4)
    weights = dbl * (2 * Hp * Hp * 2 + 4 * Hp * 4)
    outputs = dbl * (Bb * T * Hp * 4 + Bb * T * Sp * 4 + Bb * Sp * 4 + Bb * 4)
    scratch = Bb * T * Hp * 4
    live = Bb * Sp * Hp * (4 + ew_bytes + 2)  # enc_feat f32 + e + bf16 copy
    return inputs + weights + outputs + scratch + live


def _pick_cov_batch(B, T, Sp, Hp, budget, ew_bytes):
    bb_cands = [d for d in _divisors_desc(B) if d <= 8]
    fitting = [bb for bb in bb_cands
               if _cov_footprint(bb, T, Sp, Hp, ew_bytes) <= budget]
    if not fitting:
        fitting = [1]
    multi = [bb for bb in fitting if B // bb >= 2]
    pool = multi if multi else fitting
    return max(pool)


# --------------------------- wrapper ---------------------------

def attention_forward(params, decoder_outputs, decoder_input_mask,
                      encoder_outputs, enc_padding_mask, coverage,
                      *, is_coverage, cov_loss_wt=1.0):
    B, T, H = decoder_outputs.shape
    S = encoder_outputs.shape[1]

    vmem_limit, ew_dtype = _chip_config()
    ew_bytes = 2 if ew_dtype == bf16 else 4
    budget = vmem_limit // 2          # headroom for compiler scratch/regalloc

    # Lane-dense padding of S and H (exact: padded weight rows/cols, bias, v,
    # W_c entries and padded mask entries are zero; pads sliced off below).
    Hp = _ru(H, 128)
    Sp = _ru(S, 128)

    whT = _pad_dim(_pad_dim(params['W_h'].T, 0, Hp), 1, Hp).astype(bf16)
    wdT = _pad_dim(_pad_dim(params['decode_proj_w'].T, 0, Hp), 1, Hp).astype(bf16)
    wdb = _pad_dim(params['decode_proj_b'].reshape(1, H), 1, Hp).astype(f32)
    v_row = _pad_dim(params['v'].reshape(1, H), 1, Hp).astype(f32)

    enc = _pad_dim(_pad_dim(encoder_outputs, 1, Sp), 2, Hp).astype(bf16)
    mask3 = _pad_dim(enc_padding_mask, 1, Sp).astype(f32)[:, None, :]  # (B,1,Sp)

    if not is_coverage:
        Tp = _ru(T, 8)
        dec = _pad_dim(_pad_dim(decoder_outputs, 1, Tp), 2, Hp).astype(bf16)
        Bb, Tt = _pick_nocov_tiles(B, Tp, Sp, Hp, budget, ew_bytes)
        grid = (B // Bb, Tp // Tt)

        flops = (2 * B * Sp * Hp * Hp * (Tp // Tt) + 2 * B * Tp * Hp * Hp
                 + 3 * B * Tp * Sp * Hp + 2 * B * Tp * Sp * Hp)
        transc = B * Tp * Sp * Hp + 2 * B * Tp * Sp
        bytes_acc = (dec.size * 2 + enc.size * 2 + mask3.size * 4
                     + (whT.size + wdT.size) * 2 + (wdb.size + v_row.size) * 4
                     + B * Tp * Hp * 4 + B * Tp * Sp * 4)
        cost = pl.CostEstimate(flops=int(flops), transcendentals=int(transc),
                               bytes_accessed=int(bytes_acc))

        kernel = functools.partial(_attention_nocov_kernel, ew_dtype=ew_dtype)
        ht, attn = pl.pallas_call(
            kernel,
            grid=grid,
            in_specs=[
                pl.BlockSpec((Bb, Tt, Hp), lambda b, t: (b, t, 0)),  # dec
                pl.BlockSpec((Bb, Sp, Hp), lambda b, t: (b, 0, 0)),  # enc
                pl.BlockSpec((Bb, 1, Sp), lambda b, t: (b, 0, 0)),   # enc mask
                pl.BlockSpec((Hp, Hp), lambda b, t: (0, 0)),         # W_h^T
                pl.BlockSpec((Hp, Hp), lambda b, t: (0, 0)),         # dec_proj^T
                pl.BlockSpec((1, Hp), lambda b, t: (0, 0)),          # dec_proj b
                pl.BlockSpec((1, Hp), lambda b, t: (0, 0)),          # v
            ],
            out_specs=[
                pl.BlockSpec((Bb, Tt, Hp), lambda b, t: (b, t, 0)),  # ht_hat
                pl.BlockSpec((Bb, Tt, Sp), lambda b, t: (b, t, 0)),  # attn_dist
            ],
            out_shape=[
                jax.ShapeDtypeStruct((B, Tp, Hp), f32),
                jax.ShapeDtypeStruct((B, Tp, Sp), f32),
            ],
            compiler_params=pltpu.CompilerParams(
                dimension_semantics=("parallel", "parallel"),
                vmem_limit_bytes=vmem_limit),
            cost_estimate=cost,
        )(dec, enc, mask3, whT, wdT, wdb, v_row)
        return ht[:, :T, :H], attn[:, :T, :S], -1.0, None

    # ---- coverage path ----
    wc_row = _pad_dim(params['W_c'].reshape(1, H), 1, Hp).astype(f32)
    dec = _pad_dim(decoder_outputs, 2, Hp).astype(bf16)                 # (B,T,Hp)
    cov3 = _pad_dim(coverage, 1, Sp).astype(f32)[:, None, :]            # (B,1,Sp)
    dmask3 = decoder_input_mask.astype(f32)[:, :, None]                 # (B,T,1)

    Bb = _pick_cov_batch(B, T, Sp, Hp, budget, ew_bytes)
    grid = (B // Bb,)

    flops = (2 * B * Sp * Hp * Hp + 2 * B * T * Hp * Hp
             + 6 * B * T * Sp * Hp + 2 * B * T * Sp * Hp)
    transc = B * T * Sp * Hp + 2 * B * T * Sp
    bytes_acc = (dec.size * 2 + enc.size * 2 + mask3.size * 4 + cov3.size * 4
                 + dmask3.size * 4 + (whT.size + wdT.size) * 2
                 + (wdb.size + v_row.size + wc_row.size) * 4
                 + B * T * Hp * 4 + B * T * Sp * 4 + B * Sp * 4 + B * 4)
    cost = pl.CostEstimate(flops=int(flops), transcendentals=int(transc),
                           bytes_accessed=int(bytes_acc))

    kernel = functools.partial(_attention_cov_kernel, ew_dtype=ew_dtype)
    ht, attn, cov_out, loss_num = pl.pallas_call(
        kernel,
        grid=grid,
        in_specs=[
            pl.BlockSpec((Bb, T, Hp), lambda b: (b, 0, 0)),     # dec
            pl.BlockSpec((Bb, Sp, Hp), lambda b: (b, 0, 0)),    # enc
            pl.BlockSpec((Bb, 1, Sp), lambda b: (b, 0, 0)),     # enc mask
            pl.BlockSpec((Bb, 1, Sp), lambda b: (b, 0, 0)),     # coverage in
            pl.BlockSpec((Bb, T, 1), lambda b: (b, 0, 0)),      # decoder mask
            pl.BlockSpec((Hp, Hp), lambda b: (0, 0)),           # W_h^T
            pl.BlockSpec((Hp, Hp), lambda b: (0, 0)),           # dec_proj^T
            pl.BlockSpec((1, Hp), lambda b: (0, 0)),            # dec_proj bias
            pl.BlockSpec((1, Hp), lambda b: (0, 0)),            # v
            pl.BlockSpec((1, Hp), lambda b: (0, 0)),            # W_c
        ],
        out_specs=[
            pl.BlockSpec((Bb, T, Hp), lambda b: (b, 0, 0)),     # ht_hat
            pl.BlockSpec((Bb, T, Sp), lambda b: (b, 0, 0)),     # attn_dist
            pl.BlockSpec((Bb, 1, Sp), lambda b: (b, 0, 0)),     # coverage out
            pl.BlockSpec((Bb, 1, 1), lambda b: (b, 0, 0)),      # loss numerator
        ],
        out_shape=[
            jax.ShapeDtypeStruct((B, T, Hp), f32),
            jax.ShapeDtypeStruct((B, T, Sp), f32),
            jax.ShapeDtypeStruct((B, 1, Sp), f32),
            jax.ShapeDtypeStruct((B, 1, 1), f32),
        ],
        scratch_shapes=[pltpu.VMEM((Bb, T, Hp), f32)],          # dec_fea
        compiler_params=pltpu.CompilerParams(
            dimension_semantics=("parallel",),
            vmem_limit_bytes=vmem_limit),
        cost_estimate=cost,
    )(dec, enc, mask3, cov3, dmask3, whT, wdT, wdb, v_row, wc_row)

    dec_mask = decoder_input_mask.astype(f32)
    converge_loss = cov_loss_wt * jnp.sum(loss_num) / jnp.sum(dec_mask)
    return ht[:, :, :H], attn[:, :, :S], converge_loss, cov_out[:, 0, :S]


# ---------------- pure-JAX reference (mirrors the PyTorch forward) ----------------
def ref_attention(params, dec, dec_mask, enc, enc_mask, coverage,
                  *, is_coverage, cov_loss_wt=1.0):
    enc_feat = enc @ params['W_h'].T
    dec_fea = dec @ params['decode_proj_w'].T + params['decode_proj_b']
    B, T, H = dec.shape
    att = enc_feat[:, None, :, :] + dec_fea[:, :, None, :]       # (B, T, S, H)
    if is_coverage:
        cov = coverage
        ht_l, at_l, ls_l = [], [], []
        for i in range(T):
            cov_feat = cov[..., None] @ params['W_c'].T[None]    # (B, S, H)
            a = att[:, i] + cov_feat
            e = jnp.tanh(a)
            scores = (e @ params['v'].T)[..., 0]                  # (B, S)
            soft = jax.nn.softmax(scores, axis=-1)
            attn_ = soft * enc_mask
            attn = attn_ / attn_.sum(-1, keepdims=True)
            at_l.append(attn[:, None])
            ht_l.append(jnp.einsum('bs,bsh->bh', attn, enc)[:, None])
            step_cov_loss = jnp.sum(jnp.minimum(attn, cov), axis=1)
            cov = cov + attn
            ls_l.append(cov_loss_wt * step_cov_loss)
        ht = jnp.concatenate(ht_l, 1)
        attn = jnp.concatenate(at_l, 1)
        losses = jnp.stack(ls_l)                                  # (T, B)
        converge = jnp.sum(losses * dec_mask.T) / jnp.sum(dec_mask)
        return ht, attn, converge, cov
    else:
        e = jnp.tanh(att)
        scores = (e @ params['v'].T)[..., 0]                      # (B, T, S)
        soft = jax.nn.softmax(scores, axis=-1)
        attn_ = soft * enc_mask[:, None, :]
        attn = attn_ / attn_.sum(-1, keepdims=True)
        ht = jnp.einsum('bts,bsh->bth', attn, enc)
        return ht, attn, -1.0, None


if __name__ == "__main__":
    B, T, S, H = 2, 4, 8, 32
    key = jax.random.PRNGKey(0)
    k = jax.random.split(key, 8)

    params = {
        'W_h': jax.random.normal(k[0], (H, H), jnp.float32) * 0.1,
        'W_c': jax.random.normal(k[1], (H, 1), jnp.float32) * 0.1,
        'decode_proj_w': jax.random.normal(k[2], (H, H), jnp.float32) * 0.1,
        'decode_proj_b': jax.random.normal(k[3], (H,), jnp.float32) * 0.1,
        'v': jax.random.normal(k[4], (1, H), jnp.float32) * 0.1,
    }

    decoder_outputs = jax.random.normal(k[5], (B, T, H), jnp.float32)
    encoder_outputs = jax.random.normal(k[6], (B, S, H), jnp.float32)
    enc_padding_mask = jnp.array([[1, 1, 1, 1, 1, 1, 0, 0],
                                  [1, 1, 1, 1, 1, 1, 1, 1]], jnp.float32)
    decoder_input_mask = jnp.array([[1, 1, 1, 0],
                                    [1, 1, 1, 1]], jnp.float32)
    coverage = jnp.zeros((B, S), jnp.float32)

    ok = True
    for is_cov in (False, True):
        out = attention_forward(params, decoder_outputs, decoder_input_mask,
                                encoder_outputs, enc_padding_mask, coverage,
                                is_coverage=is_cov, cov_loss_wt=1.0)
        out = jax.block_until_ready(out)
        ref = ref_attention(params, decoder_outputs, decoder_input_mask,
                            encoder_outputs, enc_padding_mask, coverage,
                            is_coverage=is_cov, cov_loss_wt=1.0)
        np.testing.assert_allclose(np.asarray(out[0]), np.asarray(ref[0]),
                                   rtol=2e-2, atol=2e-2)
        np.testing.assert_allclose(np.asarray(out[1]), np.asarray(ref[1]),
                                   rtol=2e-2, atol=2e-2)
        if is_cov:
            np.testing.assert_allclose(float(out[2]), float(ref[2]),
                                       rtol=2e-2, atol=2e-2)
            np.testing.assert_allclose(np.asarray(out[3]), np.asarray(ref[3]),
                                       rtol=2e-2, atol=2e-2)
        ok = ok and bool(np.all(np.isfinite(np.asarray(out[0]))))

    if ok:
        print("KERNEL_OK")
</pallas_src>

<mosaic_0001>
module attributes {stable_mosaic.version = 11 : i64} {
  func.func @_attention_nocov_kernel(%arg0: i32, %arg1: i32, %arg2: memref<1x8x128xbf16, #tpu.memory_space<vmem>>, %arg3: memref<1x128x128xbf16, #tpu.memory_space<vmem>>, %arg4: memref<1x1x128xf32, #tpu.memory_space<vmem>>, %arg5: memref<128x128xbf16, #tpu.memory_space<vmem>>, %arg6: memref<128x128xbf16, #tpu.memory_space<vmem>>, %arg7: memref<1x128xf32, #tpu.memory_space<vmem>>, %arg8: memref<1x128xf32, #tpu.memory_space<vmem>>, %arg9: memref<1x8x128xf32, #tpu.memory_space<vmem>>, %arg10: memref<1x8x128xf32, #tpu.memory_space<vmem>>) attributes {dimension_semantics = [#tpu.dimension_semantics<parallel>, #tpu.dimension_semantics<parallel>], iteration_bounds = array<i64: 2, 1>, scalar_prefetch = 0 : i64, scratch_operands = 0 : i64, tpu.core_type = #tpu.core_type<tc>, window_params = [{transform_indices = @transform_0, window_bounds = array<i64: 1, 8, 128>}, {transform_indices = @transform_1, window_bounds = array<i64: 1, 128, 128>}, {transform_indices = @transform_2, window_bounds = array<i64: 1, 1, 128>}, {pipeline_mode = #tpu.pipeline_mode<synchronous>, transform_indices = @transform_3, window_bounds = array<i64: 128, 128>}, {pipeline_mode = #tpu.pipeline_mode<synchronous>, transform_indices = @transform_4, window_bounds = array<i64: 128, 128>}, {pipeline_mode = #tpu.pipeline_mode<synchronous>, transform_indices = @transform_5, window_bounds = array<i64: 1, 128>}, {pipeline_mode = #tpu.pipeline_mode<synchronous>, transform_indices = @transform_6, window_bounds = array<i64: 1, 128>}, {transform_indices = @transform_7, window_bounds = array<i64: 1, 8, 128>}, {transform_indices = @transform_8, window_bounds = array<i64: 1, 8, 128>}]} {
    %c0 = arith.constant 0 : index
    %c0_0 = arith.constant 0 : index
    %c0_1 = arith.constant 0 : index
    %0 = vector.load %arg3[%c0, %c0_0, %c0_1] : memref<1x128x128xbf16, #tpu.memory_space<vmem>>, vector<1x128x128xbf16>
    %c0_2 = arith.constant 0 : index
    %c0_3 = arith.constant 0 : index
    %c0_4 = arith.constant 0 : index
    %1 = vector.load %arg4[%c0_2, %c0_3, %c0_4] : memref<1x1x128xf32, #tpu.memory_space<vmem>>, vector<1x1x128xf32>
    %c0_5 = arith.constant 0 : index
    %c0_6 = arith.constant 0 : index
    %2 = vector.load %arg8[%c0_5, %c0_6] : memref<1x128xf32, #tpu.memory_space<vmem>>, vector<1x128xf32>
    %3 = vector.shape_cast %0 : vector<1x128x128xbf16> to vector<128x128xbf16>
    %c0_7 = arith.constant 0 : index
    %c0_8 = arith.constant 0 : index
    %4 = vector.load %arg5[%c0_7, %c0_8] : memref<128x128xbf16, #tpu.memory_space<vmem>>, vector<128x128xbf16>
    %cst = arith.constant dense<0.000000e+00> : vector<128x128xf32>
    %5 = tpu.matmul %3, %4, %cst {dimension_numbers = #tpu.dot_dimension_numbers<[1], [0], [0], [1], [0, 0, 1, 1], [], []>} : vector<128x128xbf16>, vector<128x128xbf16>, vector<128x128xf32> -> vector<128x128xf32>
    %6 = vector.shape_cast %5 : vector<128x128xf32> to vector<1x1x128x128xf32>
    %c0_9 = arith.constant 0 : index
    %c0_10 = arith.constant 0 : index
    %c0_11 = arith.constant 0 : index
    %7 = vector.load %arg2[%c0_9, %c0_10, %c0_11] : memref<1x8x128xbf16, #tpu.memory_space<vmem>>, vector<1x8x128xbf16>
    %8 = vector.shape_cast %7 : vector<1x8x128xbf16> to vector<8x128xbf16>
    %c0_12 = arith.constant 0 : index
    %c0_13 = arith.constant 0 : index
    %9 = vector.load %arg6[%c0_12, %c0_13] : memref<128x128xbf16, #tpu.memory_space<vmem>>, vector<128x128xbf16>
    %cst_14 = arith.constant dense<0.000000e+00> : vector<8x128xf32>
    %10 = tpu.matmul %8, %9, %cst_14 {dimension_numbers = #tpu.dot_dimension_numbers<[1], [0], [0], [1], [0, 0, 1, 1], [], []>} : vector<8x128xbf16>, vector<128x128xbf16>, vector<8x128xf32> -> vector<8x128xf32>
    %c0_15 = arith.constant 0 : index
    %c0_16 = arith.constant 0 : index
    %11 = vector.load %arg7[%c0_15, %c0_16] : memref<1x128xf32, #tpu.memory_space<vmem>>, vector<1x128xf32>
    %12 = vector.broadcast %11 : vector<1x128xf32> to vector<8x128xf32>
    %13 = arith.addf %10, %12 : vector<8x128xf32>
    %14 = vector.shape_cast %13 : vector<8x128xf32> to vector<1x8x1x128xf32>
    %15 = vector.broadcast %6 : vector<1x1x128x128xf32> to vector<1x8x128x128xf32>
    %16 = vector.broadcast %14 : vector<1x8x1x128xf32> to vector<1x8x128x128xf32>
    %17 = arith.addf %15, %16 : vector<1x8x128x128xf32>
    %18 = math.tanh %17 : vector<1x8x128x128xf32>
    %19 = vector.shape_cast %2 : vector<1x128xf32> to vector<1x1x1x128xf32>
    %20 = vector.broadcast %19 : vector<1x1x1x128xf32> to vector<1x8x128x128xf32>
    %21 = arith.mulf %18, %20 : vector<1x8x128x128xf32>
    %cst_17 = arith.constant dense<0.000000e+00> : vector<1x8x128xf32>
    %22 = vector.multi_reduction <add>, %21, %cst_17 [3] : vector<1x8x128x128xf32> to vector<1x8x128xf32>
    %cst_18 = arith.constant dense<0xFF800000> : vector<1x8xf32>
    %23 = vector.multi_reduction <maximumf>, %22, %cst_18 [2] : vector<1x8x128xf32> to vector<1x8xf32>
    %24 = vector.shape_cast %23 : vector<1x8xf32> to vector<1x8x1xf32>
    %25 = vector.broadcast %24 : vector<1x8x1xf32> to vector<1x8x128xf32>
    %26 = arith.subf %22, %25 : vector<1x8x128xf32>
    %27 = math.exp %26 : vector<1x8x128xf32>
    %28 = vector.broadcast %1 : vector<1x1x128xf32> to vector<1x8x128xf32>
    %29 = arith.mulf %27, %28 : vector<1x8x128xf32>
    %cst_19 = arith.constant dense<0.000000e+00> : vector<1x8xf32>
    %30 = vector.multi_reduction <add>, %29, %cst_19 [2] : vector<1x8x128xf32> to vector<1x8xf32>
    %31 = vector.shape_cast %30 : vector<1x8xf32> to vector<1x8x1xf32>
    %32 = tpu.reciprocal %31 {approx = true} : vector<1x8x1xf32> -> vector<1x8x1xf32>
    %33 = vector.broadcast %32 : vector<1x8x1xf32> to vector<1x8x128xf32>
    %34 = arith.mulf %29, %33 : vector<1x8x128xf32>
    %c0_20 = arith.constant 0 : index
    %c0_21 = arith.constant 0 : index
    %c0_22 = arith.constant 0 : index
    %35 = vector.load %arg10[%c0_20, %c0_21, %c0_22] : memref<1x8x128xf32, #tpu.memory_space<vmem>>, vector<1x8x128xf32>
    tpu.vector_store %arg10[%c0_20, %c0_21, %c0_22], %34 {strides = array<i32>} : memref<1x8x128xf32, #tpu.memory_space<vmem>>, vector<1x8x128xf32>,
    %36 = arith.truncf %34 : vector<1x8x128xf32> to vector<1x8x128xbf16>
    "tpu.trace_start"() <{level = 10 : i32, message = "bts,bsh->bth"}> : () -> ()
    %cst_23 = arith.constant dense<0.000000e+00> : vector<1x8x128xf32>
    %37 = tpu.matmul %36, %0, %cst_23 {dimension_numbers = #tpu.dot_dimension_numbers<[2], [1], [1], [2], [0, 0, 0, 1, 1, 2], [0], [0]>} : vector<1x8x128xbf16>, vector<1x128x128xbf16>, vector<1x8x128xf32> -> vector<1x8x128xf32>
    "tpu.trace_stop"() : () -> ()
    %c0_24 = arith.constant 0 : index
    %c0_25 = arith.constant 0 : index
    %c0_26 = arith.constant 0 : index
    %38 = vector.load %arg9[%c0_24, %c0_25, %c0_26] : memref<1x8x128xf32, #tpu.memory_space<vmem>>, vector<1x8x128xf32>
    tpu.vector_store %arg9[%c0_24, %c0_25, %c0_26], %37 {strides = array<i32>} : memref<1x8x128xf32, #tpu.memory_space<vmem>>, vector<1x8x128xf32>,
    return
  }
  func.func @transform_0(%arg0: i32, %arg1: i32) -> (i32, i32, i32) {
    %c0_i32 = arith.constant 0 : i32
    %c0_i32_0 = arith.constant 0 : i32
    return %arg0, %arg1, %c0_i32 : i32, i32, i32
  }
  func.func @transform_1(%arg0: i32, %arg1: i32) -> (i32, i32, i32) {
    %c0_i32 = arith.constant 0 : i32
    %c0_i32_0 = arith.constant 0 : i32
    %c0_i32_1 = arith.constant 0 : i32
    return %arg0, %c0_i32, %c0_i32_0 : i32, i32, i32
  }
  func.func @transform_2(%arg0: i32, %arg1: i32) -> (i32, i32, i32) {
    %c0_i32 = arith.constant 0 : i32
    %c0_i32_0 = arith.constant 0 : i32
    %c0_i32_1 = arith.constant 0 : i32
    return %arg0, %c0_i32, %c0_i32_0 : i32, i32, i32
  }
  func.func @transform_3(%arg0: i32, %arg1: i32) -> (i32, i32) {
    %c0_i32 = arith.constant 0 : i32
    %c0_i32_0 = arith.constant 0 : i32
    %c0_i32_1 = arith.constant 0 : i32
    return %c0_i32, %c0_i32_0 : i32, i32
  }
  func.func @transform_4(%arg0: i32, %arg1: i32) -> (i32, i32) {
    %c0_i32 = arith.constant 0 : i32
    %c0_i32_0 = arith.constant 0 : i32
    %c0_i32_1 = arith.constant 0 : i32
    return %c0_i32, %c0_i32_0 : i32, i32
  }
  func.func @transform_5(%arg0: i32, %arg1: i32) -> (i32, i32) {
    %c0_i32 = arith.constant 0 : i32
    %c0_i32_0 = arith.constant 0 : i32
    %c0_i32_1 = arith.constant 0 : i32
    return %c0_i32, %c0_i32_0 : i32, i32
  }
  func.func @transform_6(%arg0: i32, %arg1: i32) -> (i32, i32) {
    %c0_i32 = arith.constant 0 : i32
    %c0_i32_0 = arith.constant 0 : i32
    %c0_i32_1 = arith.constant 0 : i32
    return %c0_i32, %c0_i32_0 : i32, i32
  }
  func.func @transform_7(%arg0: i32, %arg1: i32) -> (i32, i32, i32) {
    %c0_i32 = arith.constant 0 : i32
    %c0_i32_0 = arith.constant 0 : i32
    return %arg0, %arg1, %c0_i32 : i32, i32, i32
  }
  func.func @transform_8(%arg0: i32, %arg1: i32) -> (i32, i32, i32) {
    %c0_i32 = arith.constant 0 : i32
    %c0_i32_0 = arith.constant 0 : i32
    return %arg0, %arg1, %c0_i32 : i32, i32, i32
  }
}

</mosaic_0001>

<llo_original>
// kernel: tpu_custom_call.1
$region0: #{tpu_custom_call.1}
  #allocation0 [shape = 'u32[]', space=smem, size = 0x4, offset = 0x4, fixed_abs, tag = 'smem constant byte address 0x4 - core index']
  #allocation1 [shape = 'u32[144,128]{1,0:T(1,128)}', space=vmem, size = 0x12000, scoped, tag = 'internal scratch']
  %s0 = inlined_call_operand.hbm [shape: bf16[2,8,128], index: 0, kind: input, shape index: {}]
  %s1 = inlined_call_operand.hbm [shape: bf16[2,128,128], index: 1, kind: input, shape index: {}]
  %s2 = inlined_call_operand.vmem [shape: f32[2,1,128], index: 2, kind: input, shape index: {}]
  %s3 = inlined_call_operand.hbm [shape: bf16[128,128], index: 3, kind: input, shape index: {}]
  %s4 = inlined_call_operand.hbm [shape: bf16[128,128], index: 4, kind: input, shape index: {}]
  %s5 = inlined_call_operand.vmem [shape: f32[1,128], index: 5, kind: input, shape index: {}]
  %s6 = inlined_call_operand.vmem [shape: f32[1,128], index: 6, kind: input, shape index: {}]
  %s7 = inlined_call_operand.hbm [shape: f32[2,8,128], index: 7, kind: output, shape index: {0}]
  %s8 = inlined_call_operand.hbm [shape: f32[2,8,128], index: 8, kind: output, shape index: {1}]
  %9 = xla_tuple %s7, %s8
  %s10 = sld [smem:[#allocation0]]
  $region85: #{tpu_custom_call.1} parent=0
    _
  %s12 = ssub.s32 1, %s10
  %s13 = scalar_select 0, %s12, %s10
  $region1: #{tpu_custom_call.1} parent=0
    #allocation2 [shape = 'u8[4096]{0}', space=vmem, size = 0x1000, scoped, tag = 'input window, operand 0']
    #allocation3 [shape = 's32[2]{0}', space=sflag, size = 0x8, scoped, tag = 'scoped memory for tpu_custom_call.1']
    #allocation4 [shape = 's32[2]{0}', space=sflag, size = 0x8, scoped, tag = 'scoped memory for tpu_custom_call.1']
    #allocation5 [shape = 'u8[65536]{0}', space=vmem, size = 0x10000, scoped, tag = 'input window, operand 1']
    #allocation6 [shape = 's32[2]{0}', space=sflag, size = 0x8, scoped, tag = 'scoped memory for tpu_custom_call.1']
    #allocation7 [shape = 'u8[32768]{0}', space=vmem, size = 0x8000, scoped, tag = 'input window, operand 3, single buffered']
    #allocation8 [shape = 'u8[32768]{0}', space=vmem, size = 0x8000, scoped, tag = 'input window, operand 4, single buffered']
    #allocation9 [shape = 's32[1]{0}', space=sflag, size = 0x4, scoped, tag = 'scoped memory for tpu_custom_call.1']
    #allocation10 [shape = 'u8[8192]{0}', space=vmem, size = 0x2000, scoped, tag = 'output window, operand 0']
    #allocation11 [shape = 'u8[8192]{0}', space=vmem, size = 0x2000, scoped, tag = 'output window, operand 1']
    #allocation12 [shape = 's32[2]{0}', space=sflag, size = 0x8, scoped, tag = 'scoped memory for tpu_custom_call.1']
    %14 = vsyncpa [#allocation3], 0
    %s15 = scalar_lea.sflag [#allocation3], 1
    %16 = vsyncpa %s15, 0
    %17 = vsyncpa [#allocation6], 0
    %s18 = scalar_lea.sflag [#allocation6], 1
    %19 = vsyncpa %s18, 0
    %20 = vsyncpa [#allocation9], 0
    %21 = vsyncpa [#allocation4], 0
    %s22 = scalar_lea.sflag [#allocation4], 1
    %23 = vsyncpa %s22, 0
    %24 = vsyncpa [#allocation12], 0
    %s25 = scalar_lea.sflag [#allocation12], 1
    %26 = vsyncpa %s25, 0
    loop: start=0, step=1, limit=4
    $region2: #{tpu_custom_call.1} parent=1 // loop_pre_header
      _
    $region3: #{tpu_custom_call.1} parent=1 // loop_header
      %s28 = sphi 0, %s32
      %p29 = scmp.ge.s32.totalorder %s28, 4
      %s35 = sphi 0, %s47
      %s36 = sphi 0, %s43
      %s37 = sphi 0, %s35
      %s38 = sphi 0, %s36
      %s39 = sphi 0, %s37
      %s40 = sphi 0, %s38
      %s52 = sphi 0, %s54
      %s55 = sphi 0, %s52
      %s56 = sphi 0, %s55
      %s72 = sphi 0, %s56
      %s78 = sphi 0, %s80
      %s81 = sphi 0, %s78
      %s82 = sphi 0, %s81
      %s98 = sphi 0, %s82
      %s104 = sphi 0, %s106
      %s107 = sphi 0, %s104
      %s108 = sphi 0, %s107
      %s124 = sphi 0, %s108
      %s128 = sphi 0, %s128
      %s130 = sphi 0, %s128
      %s131 = sphi 0, %s130
      %s145 = sphi 0, %s131
      %s149 = sphi 0, %s149
      %s151 = sphi 0, %s149
      %s152 = sphi 0, %s151
      %s166 = sphi 0, %s152
      %s170 = sphi 0, %s170
      %s172 = sphi 0, %s170
      %s173 = sphi 0, %s172
      %s187 = sphi 0, %s173
      %s191 = sphi 0, %s191
      %s193 = sphi 0, %s191
      %s194 = sphi 0, %s193
      %s208 = sphi 0, %s194
      %s216 = sphi 0, %s218
      %s219 = sphi 0, %s216
      %s220 = sphi 0, %s219
      %s236 = sphi 0, %s220
      %s244 = sphi 0, %s246
      %s247 = sphi 0, %s244
      %s248 = sphi 0, %s247
      %s264 = sphi 0, %s248
    $region4: #{tpu_custom_call.1} parent=1 // loop_header_branch
      %31 = sbr.rel (%p29) target = $region8
    $region5: #{tpu_custom_call.1} parent=1 // loop_body
      %s33 = ssub.s32 %s28, 1
      %s34 = ssub.s32 %s28, 2
      %s41 = sadd.s32 1, %s36
      %p42 = scmp.ge.s32.totalorder %s41, 1
      %s43 = scalar_select %p42, 0, %s41
      %s44 = sadd.s32 1, %s35
      %s45 = scalar_select %p42, %s44, %s35
      %p46 = scmp.ge.s32.totalorder %s45, 2
      %s47 = scalar_select %p46, 0, %s45
      %s48 = ssub.s32 %s35, %s47
      %s49 = ssub.s32 %s36, %s43
      %s50 = sor.u32 %s48, %s49
      %p51 = scmp.eq.s32.totalorder %s50, 0
      %s53 = sadd.s32 %s52, 1
      %s54 = scalar_select %p51, %s52, %s53
      %p57 = pneg %p51
      %p58 = scmp.eq.s32.totalorder %s28, 1
      %p59 = por %p57, %p58
      %p60 = scmp.ne.s32.totalorder %s52, %s55
      %p61 = scmp.eq.s32.totalorder %s28, 0
      %p62 = por %p60, %p61
      %p63 = scmp.ne.s32.totalorder %s52, %s55
      %p64 = scmp.eq.s32.totalorder %s33, 1
      %p65 = por %p63, %p64
      %p66 = scmp.ne.s32.totalorder %s55, %s56
      %p67 = scmp.eq.s32.totalorder %s33, 0
      %p68 = por %p66, %p67
      %p69 = scmp.ne.s32.totalorder %s55, %s56
      %p70 = scmp.eq.s32.totalorder %s34, 1
      %p71 = por %p69, %p70
      %p73 = scmp.ne.s32.totalorder %s56, %s72
      %p74 = scmp.eq.s32.totalorder %s34, 0
      %p75 = por %p73, %p74
      %s76 = ssub.s32 %s35, %s47
      %p77 = scmp.eq.s32.totalorder %s76, 0
      %s79 = sadd.s32 %s78, 1
      %s80 = scalar_select %p77, %s78, %s79
      %p83 = pneg %p77
      %p84 = scmp.eq.s32.totalorder %s28, 1
      %p85 = por %p83, %p84
      %p86 = scmp.ne.s32.totalorder %s78, %s81
      %p87 = scmp.eq.s32.totalorder %s28, 0
      %p88 = por %p86, %p87
      %p89 = scmp.ne.s32.totalorder %s78, %s81
      %p90 = scmp.eq.s32.totalorder %s33, 1
      %p91 = por %p89, %p90
      %p92 = scmp.ne.s32.totalorder %s81, %s82
      %p93 = scmp.eq.s32.totalorder %s33, 0
      %p94 = por %p92, %p93
      %p95 = scmp.ne.s32.totalorder %s81, %s82
      %p96 = scmp.eq.s32.totalorder %s34, 1
      %p97 = por %p95, %p96
      %p99 = scmp.ne.s32.totalorder %s82, %s98
      %p100 = scmp.eq.s32.totalorder %s34, 0
      %p101 = por %p99, %p100
      %s102 = ssub.s32 %s35, %s47
      %p103 = scmp.eq.s32.totalorder %s102, 0
      %s105 = sadd.s32 %s104, 1
      %s106 = scalar_select %p103, %s104, %s105
      %p109 = pneg %p103
      %p110 = scmp.eq.s32.totalorder %s28, 1
      %p111 = por %p109, %p110
      %p112 = scmp.ne.s32.totalorder %s104, %s107
      %p113 = scmp.eq.s32.totalorder %s28, 0
      %p114 = por %p112, %p113
      %p115 = scmp.ne.s32.totalorder %s104, %s107
      %p116 = scmp.eq.s32.totalorder %s33, 1
      %p117 = por %p115, %p116
      %p118 = scmp.ne.s32.totalorder %s107, %s108
      %p119 = scmp.eq.s32.totalorder %s33, 0
      %p120 = por %p118, %p119
      %p121 = scmp.ne.s32.totalorder %s107, %s108
      %p122 = scmp.eq.s32.totalorder %s34, 1
      %p123 = por %p121, %p122
      %p125 = scmp.ne.s32.totalorder %s108, %s124
      %p126 = scmp.eq.s32.totalorder %s34, 0
      %p127 = por %p125, %p126
      %s129 = sadd.s32 %s128, 1
      %p132 = scmp.eq.s32.totalorder %s28, 1
      %p133 = scmp.ne.s32.totalorder %s128, %s130
      %p134 = scmp.eq.s32.totalorder %s28, 0
      %p135 = por %p133, %p134
      %p136 = scmp.ne.s32.totalorder %s128, %s130
      %p137 = scmp.eq.s32.totalorder %s33, 1
      %p138 = por %p136, %p137
      %p139 = scmp.ne.s32.totalorder %s130, %s131
      %p140 = scmp.eq.s32.totalorder %s33, 0
      %p141 = por %p139, %p140
      %p142 = scmp.ne.s32.totalorder %s130, %s131
      %p143 = scmp.eq.s32.totalorder %s34, 1
      %p144 = por %p142, %p143
      %p146 = scmp.ne.s32.totalorder %s131, %s145
      %p147 = scmp.eq.s32.totalorder %s34, 0
      %p148 = por %p146, %p147
      %s150 = sadd.s32 %s149, 1
      %p153 = scmp.eq.s32.totalorder %s28, 1
      %p154 = scmp.ne.s32.totalorder %s149, %s151
      %p155 = scmp.eq.s32.totalorder %s28, 0
      %p156 = por %p154, %p155
      %p157 = scmp.ne.s32.totalorder %s149, %s151
      %p158 = scmp.eq.s32.totalorder %s33, 1
      %p159 = por %p157, %p158
      %p160 = scmp.ne.s32.totalorder %s151, %s152
      %p161 = scmp.eq.s32.totalorder %s33, 0
      %p162 = por %p160, %p161
      %p163 = scmp.ne.s32.totalorder %s151, %s152
      %p164 = scmp.eq.s32.totalorder %s34, 1
      %p165 = por %p163, %p164
      %p167 = scmp.ne.s32.totalorder %s152, %s166
      %p168 = scmp.eq.s32.totalorder %s34, 0
      %p169 = por %p167, %p168
      %s171 = sadd.s32 %s170, 1
      %p174 = scmp.eq.s32.totalorder %s28, 1
      %p175 = scmp.ne.s32.totalorder %s170, %s172
      %p176 = scmp.eq.s32.totalorder %s28, 0
      %p177 = por %p175, %p176
      %p178 = scmp.ne.s32.totalorder %s170, %s172
      %p179 = scmp.eq.s32.totalorder %s33, 1
      %p180 = por %p178, %p179
      %p181 = scmp.ne.s32.totalorder %s172, %s173
      %p182 = scmp.eq.s32.totalorder %s33, 0
      %p183 = por %p181, %p182
      %p184 = scmp.ne.s32.totalorder %s172, %s173
      %p185 = scmp.eq.s32.totalorder %s34, 1
      %p186 = por %p184, %p185
      %p188 = scmp.ne.s32.totalorder %s173, %s187
      %p189 = scmp.eq.s32.totalorder %s34, 0
      %p190 = por %p188, %p189
      %s192 = sadd.s32 %s191, 1
      %p195 = scmp.eq.s32.totalorder %s28, 1
      %p196 = scmp.ne.s32.totalorder %s191, %s193
      %p197 = scmp.eq.s32.totalorder %s28, 0
      %p198 = por %p196, %p197
      %p199 = scmp.ne.s32.totalorder %s191, %s193
      %p200 = scmp.eq.s32.totalorder %s33, 1
      %p201 = por %p199, %p200
      %p202 = scmp.ne.s32.totalorder %s193, %s194
      %p203 = scmp.eq.s32.totalorder %s33, 0
      %p204 = por %p202, %p203
      %p205 = scmp.ne.s32.totalorder %s193, %s194
      %p206 = scmp.eq.s32.totalorder %s34, 1
      %p207 = por %p205, %p206
      %p209 = scmp.ne.s32.totalorder %s194, %s208
      %p210 = scmp.eq.s32.totalorder %s34, 0
      %p211 = por %p209, %p210
      %s212 = ssub.s32 %s35, %s47
      %s213 = ssub.s32 %s36, %s43
      %s214 = sor.u32 %s212, %s213
      %p215 = scmp.eq.s32.totalorder %s214, 0
      %s217 = sadd.s32 %s216, 1
      %s218 = scalar_select %p215, %s216, %s217
      %p221 = pneg %p215
      %p222 = scmp.eq.s32.totalorder %s28, 1
      %p223 = por %p221, %p222
      %p224 = scmp.ne.s32.totalorder %s216, %s219
      %p225 = scmp.eq.s32.totalorder %s28, 0
      %p226 = por %p224, %p225
      %p227 = scmp.ne.s32.totalorder %s216, %s219
      %p228 = scmp.eq.s32.totalorder %s33, 1
      %p229 = por %p227, %p228
      %p230 = scmp.ne.s32.totalorder %s219, %s220
      %p231 = scmp.eq.s32.totalorder %s33, 0
      %p232 = por %p230, %p231
      %p233 = scmp.ne.s32.totalorder %s219, %s220
      %p234 = scmp.eq.s32.totalorder %s34, 1
      %p235 = por %p233, %p234
      %p237 = scmp.ne.s32.totalorder %s220, %s236
      %p238 = scmp.eq.s32.totalorder %s34, 0
      %p239 = por %p237, %p238
      %s240 = ssub.s32 %s35, %s47
      %s241 = ssub.s32 %s36, %s43
      %s242 = sor.u32 %s240, %s241
      %p243 = scmp.eq.s32.totalorder %s242, 0
      %s245 = sadd.s32 %s244, 1
      %s246 = scalar_select %p243, %s244, %s245
      %p249 = pneg %p243
      %p250 = scmp.eq.s32.totalorder %s28, 1
      %p251 = por %p249, %p250
      %p252 = scmp.ne.s32.totalorder %s244, %s247
      %p253 = scmp.eq.s32.totalorder %s28, 0
      %p254 = por %p252, %p253
      %p255 = scmp.ne.s32.totalorder %s244, %s247
      %p256 = scmp.eq.s32.totalorder %s33, 1
      %p257 = por %p255, %p256
      %p258 = scmp.ne.s32.totalorder %s247, %s248
      %p259 = scmp.eq.s32.totalorder %s33, 0
      %p260 = por %p258, %p259
      %p261 = scmp.ne.s32.totalorder %s247, %s248
      %p262 = scmp.eq.s32.totalorder %s34, 1
      %p263 = por %p261, %p262
      %p265 = scmp.ne.s32.totalorder %s248, %s264
      %p266 = scmp.eq.s32.totalorder %s34, 0
      %p267 = por %p265, %p266
      %p268 = scmp.le.s32.totalorder 1, %s28
      %p269 = scmp.lt.s32.totalorder %s28, 3
      %p270 = pnand %p268, %p269
      %p271 = pneg %p270
      // Predicated region
      $region9: #{tpu_custom_call.1} parent=5 // pred_check
        _
      $region10: #{tpu_custom_call.1} parent=5 // pred_check_branch
        %273 = sbr.rel (%p270) target = $region12
      $region11: #{tpu_custom_call.1} parent=5 // pred_region
        %s274 = ssub.s32 %s28, 1
        // Predicated region
        $region13: #{tpu_custom_call.1} parent=11 // pred_check
          %p275 = pneg %p141
        $region14: #{tpu_custom_call.1} parent=11 // pred_check_branch
          %277 = sbr.rel (%p275) target = $region16
        $region15: #{tpu_custom_call.1} parent=11 // pred_region
          %s279 = ssub.s32 1024, 1024
          %280 = vsyncadd [#allocation6], %s279
          %s281 = sshll.u32 [#allocation7], 4
          %s282 = int_to_ptr.vmem [resolvable:$true] %s281
          %287 = dma.hbm_to_vmem [thread:$0]  %s3, 1024, %s282, [#allocation6], 64, 64, 4
        $region16: #{tpu_custom_call.1} parent=11 // pred_fallthru
          _
        // Predicated region
        $region17: #{tpu_custom_call.1} parent=11 // pred_check
          %p288 = pneg %p162
        $region18: #{tpu_custom_call.1} parent=11 // pred_check_branch
          %290 = sbr.rel (%p288) target = $region20
        $region19: #{tpu_custom_call.1} parent=11 // pred_region
          %s292 = ssub.s32 1024, 1024
          %293 = vsyncadd [#allocation9], %s292
          %s294 = sshll.u32 [#allocation8], 4
          %s295 = int_to_ptr.vmem [resolvable:$true] %s294
          %300 = dma.hbm_to_vmem [thread:$0]  %s4, 1024, %s295, [#allocation9], 64, 64, 4
        $region20: #{tpu_custom_call.1} parent=11 // pred_fallthru
          _
        // Predicated region
        $region21: #{tpu_custom_call.1} parent=11 // pred_check
          %p301 = pneg %p183
        $region22: #{tpu_custom_call.1} parent=11 // pred_check_branch
          %303 = sbr.rel (%p301) target = $region24
        $region23: #{tpu_custom_call.1} parent=11 // pred_region
          _
        $region24: #{tpu_custom_call.1} parent=11 // pred_fallthru
          _
        // Predicated region
        $region25: #{tpu_custom_call.1} parent=11 // pred_check
          %p304 = pneg %p204
        $region26: #{tpu_custom_call.1} parent=11 // pred_check_branch
          %306 = sbr.rel (%p304) target = $region28
        $region27: #{tpu_custom_call.1} parent=11 // pred_region
          _
        $region28: #{tpu_custom_call.1} parent=11 // pred_fallthru
          _
      $region12: #{tpu_custom_call.1} parent=5 // pred_fallthru
        _
      %p307 = scmp.lt.s32.totalorder %s28, 2
      // Predicated region
      $region29: #{tpu_custom_call.1} parent=5 // pred_check
        %p308 = pneg %p307
      $region30: #{tpu_custom_call.1} parent=5 // pred_check_branch
        %310 = sbr.rel (%p308) target = $region32
      $region31: #{tpu_custom_call.1} parent=5 // pred_region
        // Predicated region
        $region33: #{tpu_custom_call.1} parent=31 // pred_check
          %p311 = pneg %p62
        $region34: #{tpu_custom_call.1} parent=31 // pred_check_branch
          %313 = sbr.rel (%p311) target = $region36
        $region35: #{tpu_custom_call.1} parent=31 // pred_region
          %s314 = sand.u32 %s52, 1
          %s315 = scalar_lea.sflag [#allocation3], %s314
          %s316 = sand.u32 %s52, 1
          %s317 = smul.addr %s316, 4
          %s318 = scalar_lea.vmem [#allocation2], %s317
          %s320 = ssub.s32 64, 64
          %321 = vsyncadd %s315, %s320
          %s322 = sadd.s32 %s36, %s35
          %s323 = smul.addr %s322, 64
          %s324 = scalar_lea.hbm %s0, %s323
          %s326 = sshll.u32 %s318, 4
          %s327 = int_to_ptr.vmem [resolvable:$true] %s326
          %329 = dma.hbm_to_vmem [thread:$0]  %s324, 64, %s327, %s315
        $region36: #{tpu_custom_call.1} parent=31 // pred_fallthru
          _
        // Predicated region
        $region37: #{tpu_custom_call.1} parent=31 // pred_check
          %p330 = pneg %p88
        $region38: #{tpu_custom_call.1} parent=31 // pred_check_branch
          %332 = sbr.rel (%p330) target = $region40
        $region39: #{tpu_custom_call.1} parent=31 // pred_region
          %s333 = sand.u32 %s28, 1
          %s334 = scalar_lea.sflag [#allocation6], %s333
          %s335 = sand.u32 %s78, 1
          %s336 = smul.addr %s335, 64
          %s337 = scalar_lea.vmem [#allocation5], %s336
          %s339 = ssub.s32 1024, 1024
          %340 = vsyncadd %s334, %s339
          %s341 = smul.addr %s35, 16
          %s342 = smul.addr %s341, 64
          %s343 = scalar_lea.hbm %s1, %s342
          %s344 = sshll.u32 %s337, 4
          %s345 = int_to_ptr.vmem [resolvable:$true] %s344
          %350 = dma.hbm_to_vmem [thread:$0]  %s343, 1024, %s345, %s334, 64, 64, 4
        $region40: #{tpu_custom_call.1} parent=31 // pred_fallthru
          _
        // Predicated region
        $region41: #{tpu_custom_call.1} parent=31 // pred_check
          %p351 = pneg %p114
        $region42: #{tpu_custom_call.1} parent=31 // pred_check_branch
          %353 = sbr.rel (%p351) target = $region44
        $region43: #{tpu_custom_call.1} parent=31 // pred_region
          %p354 = scmp.lt.s32.totalorder %s35, 1
          %s355 = scalar_select %p354, %s35, 1
          %s356 = scalar_lea.vmem %s2, %s355
        $region44: #{tpu_custom_call.1} parent=31 // pred_fallthru
          _
      $region32: #{tpu_custom_call.1} parent=5 // pred_fallthru
        _
      %p357 = scmp.le.s32.totalorder 1, %s28
      %p358 = scmp.lt.s32.totalorder %s28, 3
      %p359 = pnand %p357, %p358
      %p360 = pneg %p359
      // Predicated region
      $region45: #{tpu_custom_call.1} parent=5 // pred_check
        _
      $region46: #{tpu_custom_call.1} parent=5 // pred_check_branch
        %362 = sbr.rel (%p359) target = $region48
      $region47: #{tpu_custom_call.1} parent=5 // pred_region
        %s363 = ssub.s32 %s28, 1
        %s364 = sand.u32 %s55, 1
        %s365 = scalar_lea.sflag [#allocation3], %s364
        %s366 = sand.u32 %s55, 1
        %s367 = smul.addr %s366, 4
        %s368 = scalar_lea.vmem [#allocation2], %s367
        // Predicated region
        $region49: #{tpu_custom_call.1} parent=47 // pred_check
          %p369 = pneg %p68
        $region50: #{tpu_custom_call.1} parent=47 // pred_check_branch
          %371 = sbr.rel (%p369) target = $region52
        $region51: #{tpu_custom_call.1} parent=47 // pred_region
          %372 = dma.done %s365, 64
        $region52: #{tpu_custom_call.1} parent=47 // pred_fallthru
          _
        %s373 = sand.u32 %s33, 1
        %s374 = scalar_lea.sflag [#allocation6], %s373
        %s375 = sand.u32 %s81, 1
        %s376 = smul.addr %s375, 64
        %s377 = scalar_lea.vmem [#allocation5], %s376
        // Predicated region
        $region53: #{tpu_custom_call.1} parent=47 // pred_check
          %p378 = pneg %p94
        $region54: #{tpu_custom_call.1} parent=47 // pred_check_branch
          %380 = sbr.rel (%p378) target = $region56
        $region55: #{tpu_custom_call.1} parent=47 // pred_region
          %381 = dma.done %s374, 1024
        $region56: #{tpu_custom_call.1} parent=47 // pred_fallthru
          _
        // Predicated region
        $region57: #{tpu_custom_call.1} parent=47 // pred_check
          %p382 = pneg %p141
        $region58: #{tpu_custom_call.1} parent=47 // pred_check_branch
          %384 = sbr.rel (%p382) target = $region60
        $region59: #{tpu_custom_call.1} parent=47 // pred_region
          %385 = dma.done [#allocation6], 1024
        $region60: #{tpu_custom_call.1} parent=47 // pred_fallthru
          _
        // Predicated region
        $region61: #{tpu_custom_call.1} parent=47 // pred_check
          %p386 = pneg %p162
        $region62: #{tpu_custom_call.1} parent=47 // pred_check_branch
          %388 = sbr.rel (%p386) target = $region64
        $region63: #{tpu_custom_call.1} parent=47 // pred_region
          %389 = dma.done [#allocation9], 1024
        $region64: #{tpu_custom_call.1} parent=47 // pred_fallthru
          _
        %s390 = sand.u32 %s55, 1
        %s391 = scalar_lea.sflag [#allocation3], %s390
        %s392 = sand.u32 %s55, 1
        %s393 = smul.addr %s392, 4
        %s394 = scalar_lea.vmem [#allocation2], %s393
        %p395 = pneg %p68
        %p396 = pneg %p65
        %s397 = sand.u32 %s33, 1
        %s398 = scalar_lea.sflag [#allocation6], %s397
        %s399 = sand.u32 %s81, 1
        %s400 = smul.addr %s399, 64
        %s401 = scalar_lea.vmem [#allocation5], %s400
        %p402 = pneg %p94
        %p403 = pneg %p91
        %p404 = scmp.lt.s32.totalorder %s37, 1
        %s405 = scalar_select %p404, %s37, 1
        %s406 = scalar_lea.vmem %s2, %s405
        %p407 = pneg %p120
        %p408 = pneg %p117
        %p409 = pneg %p141
        %p410 = pneg %p138
        %p411 = pneg %p162
        %p412 = pneg %p159
        %p413 = pneg %p183
        %p414 = pneg %p180
        %p415 = pneg %p204
        %p416 = pneg %p201
        %p417 = pneg %p232
        %p418 = pneg %p229
        %s419 = sand.u32 %s219, 1
        %s420 = scalar_lea.sflag [#allocation4], %s419
        %s421 = sand.u32 %s219, 1
        %s422 = smul.addr %s421, 8
        %s423 = scalar_lea.vmem [#allocation10], %s422
        %p424 = pneg %p260
        %p425 = pneg %p257
        %s426 = sand.u32 %s247, 1
        %s427 = scalar_lea.sflag [#allocation12], %s426
        %s428 = sand.u32 %s247, 1
        %s429 = smul.addr %s428, 8
        %s430 = scalar_lea.vmem [#allocation11], %s429
        %p431 = scmp.lt.s32.totalorder %s37, 1
        %s432 = scalar_select %p431, %s37, 1
        %s433 = scalar_lea.vmem %s2, %s432
        %v435 = vld [vmem:[%s377] sm:$0xf]
        %v436 = vld [vmem:[%s377 + $0x4] sm:$0xf]
        %v437 = vld [vmem:[%s377 + $0x8] sm:$0xf]
        %v438 = vld [vmem:[%s377 + $0xc] sm:$0xf]
        %v439 = vld [vmem:[%s377 + $0x10] sm:$0xf]
        %v440 = vld [vmem:[%s377 + $0x14] sm:$0xf]
        %v441 = vld [vmem:[%s377 + $0x18] sm:$0xf]
        %v442 = vld [vmem:[%s377 + $0x1c] sm:$0xf]
        %v443 = vld [vmem:[%s377 + $0x20] sm:$0xf]
        %v444 = vld [vmem:[%s377 + $0x24] sm:$0xf]
        %v445 = vld [vmem:[%s377 + $0x28] sm:$0xf]
        %v446 = vld [vmem:[%s377 + $0x2c] sm:$0xf]
        %v447 = vld [vmem:[%s377 + $0x30] sm:$0xf]
        %v448 = vld [vmem:[%s377 + $0x34] sm:$0xf]
        %v449 = vld [vmem:[%s377 + $0x38] sm:$0xf]
        %v450 = vld [vmem:[%s377 + $0x3c] sm:$0xf]
        %v451 = vld [vmem:[%s433] sm:$0x1]
        %v452 = vld [vmem:[%s6] sm:$0x1]
        %v453 = vld [vmem:[#allocation7] sm:$0xf]
        %v454 = vld [vmem:[#allocation7 + $0x4] sm:$0xf]
        %v455 = vld [vmem:[#allocation7 + $0x8] sm:$0xf]
        %v456 = vld [vmem:[#allocation7 + $0xc] sm:$0xf]
        %v457 = vld [vmem:[#allocation7 + $0x10] sm:$0xf]
        %v458 = vld [vmem:[#allocation7 + $0x14] sm:$0xf]
        %v459 = vld [vmem:[#allocation7 + $0x18] sm:$0xf]
        %v460 = vld [vmem:[#allocation7 + $0x1c] sm:$0xf]
        %v461 = vld [vmem:[#allocation7 + $0x20] sm:$0xf]
        %v462 = vld [vmem:[#allocation7 + $0x24] sm:$0xf]
        %v463 = vld [vmem:[#allocation7 + $0x28] sm:$0xf]
        %v464 = vld [vmem:[#allocation7 + $0x2c] sm:$0xf]
        %v465 = vld [vmem:[#allocation7 + $0x30] sm:$0xf]
        %v466 = vld [vmem:[#allocation7 + $0x34] sm:$0xf]
        %v467 = vld [vmem:[#allocation7 + $0x38] sm:$0xf]
        %v468 = vld [vmem:[#allocation7 + $0x3c] sm:$0xf]
        %v485 = vunpack.c.l.b16 %v435
        %v486 = vunpack.c.l.b16 %v436
        %v487 = vunpack.c.l.b16 %v437
        %v488 = vunpack.c.l.b16 %v438
        %v489 = vunpack.c.l.b16 %v439
        %v490 = vunpack.c.l.b16 %v440
        %v491 = vunpack.c.l.b16 %v441
        %v492 = vunpack.c.l.b16 %v442
        %v493 = vunpack.c.l.b16 %v443
        %v494 = vunpack.c.l.b16 %v444
        %v495 = vunpack.c.l.b16 %v445
        %v496 = vunpack.c.l.b16 %v446
        %v497 = vunpack.c.l.b16 %v447
        %v498 = vunpack.c.l.b16 %v448
        %v499 = vunpack.c.l.b16 %v449
        %v500 = vunpack.c.l.b16 %v450
        %v501 = vpack.c.b16 %v486, %v485
        %v502 = vpack.c.b16 %v488, %v487
        %v503 = vpack.c.b16 %v490, %v489
        %v504 = vpack.c.b16 %v492, %v491
        %v505 = vpack.c.b16 %v494, %v493
        %v506 = vpack.c.b16 %v496, %v495
        %v507 = vpack.c.b16 %v498, %v497
        %v508 = vpack.c.b16 %v500, %v499
        %v533 = vunpack.c.l.b16 %v453
        %v534 = vunpack.c.l.b16 %v454
        %v535 = vunpack.c.l.b16 %v455
        %v536 = vunpack.c.l.b16 %v456
        %v537 = vunpack.c.l.b16 %v457
        %v538 = vunpack.c.l.b16 %v458
        %v539 = vunpack.c.l.b16 %v459
        %v540 = vunpack.c.l.b16 %v460
        %v541 = vunpack.c.l.b16 %v461
        %v542 = vunpack.c.l.b16 %v462
        %v543 = vunpack.c.l.b16 %v463
        %v544 = vunpack.c.l.b16 %v464
        %v545 = vunpack.c.l.b16 %v465
        %v546 = vunpack.c.l.b16 %v466
        %v547 = vunpack.c.l.b16 %v467
        %v548 = vunpack.c.l.b16 %v468
        %v549 = vpack.c.b16 %v534, %v533
        %v550 = vpack.c.b16 %v536, %v535
        %v551 = vpack.c.b16 %v538, %v537
        %v552 = vpack.c.b16 %v540, %v539
        %v553 = vpack.c.b16 %v542, %v541
        %v554 = vpack.c.b16 %v544, %v543
        %v555 = vpack.c.b16 %v546, %v545
        %v556 = vpack.c.b16 %v548, %v547
        %565 = vmatprep.subr.bf16.mxu0 0
        %566 = vmatpush1.bf16.msra.mxu0 %v556
        %567 = vmatprep.subr.bf16.mxu0 0
        %568 = vmatpush1.bf16.msra.mxu0 %v555
        %569 = vmatprep.subr.bf16.mxu0 0
        %570 = vmatpush1.bf16.msra.mxu0 %v554
        %571 = vmatprep.subr.bf16.mxu0 0
        %572 = vmatpush1.bf16.msra.mxu0 %v553
        %573 = vmatprep.subr.bf16.mxu0 0
        %574 = vmatpush1.bf16.msra.mxu0 %v552
        %575 = vmatprep.subr.bf16.mxu0 0
        %576 = vmatpush1.bf16.msra.mxu0 %v551
        %577 = vmatprep.subr.bf16.mxu0 0
        %578 = vmatpush1.bf16.msra.mxu0 %v550
        %579 = vmatprep.subr.bf16.mxu0 0
        %580 = vmatpush1.bf16.msra.mxu0 %v549
        %581 = vmatprep.subr.bf16.mxu0 0
        %582 = vmatpush2.bf16.msra.mxu0 0
        %583 = vmatprep.subr.bf16.mxu0 0
        %584 = vmatpush2.bf16.msra.mxu0 0
        %585 = vmatprep.subr.bf16.mxu0 0
        %586 = vmatpush2.bf16.msra.mxu0 0
        %587 = vmatprep.subr.bf16.mxu0 0
        %588 = vmatpush2.bf16.msra.mxu0 0
        %589 = vmatprep.subr.bf16.mxu0 0
        %590 = vmatpush2.bf16.msra.mxu0 0
        %591 = vmatprep.subr.bf16.mxu0 0
        %592 = vmatpush2.bf16.msra.mxu0 0
        %593 = vmatprep.subr.bf16.mxu0 0
        %594 = vmatpush2.bf16.msra.mxu0 0
        %595 = vmatprep.subr.bf16.mxu0 0
        %596 = vmatpush2.bf16.msra.mxu0 0
        %597 = vmatprep.mubr.bf16.mxu0 0
        %598 = vmatmul.mubr.bf16.gmra.mxu0 %v501
        %v599 = vpop.f32.mrf.mxu0
        %v600 = vadd.f32 0.0, %v599
        %v601 = vpop.f32.mrf.mxu0
        %v602 = vpop.f32.mrf.mxu0
        %v603 = vadd.f32 0.0, %v602
        %v604 = vpop.f32.mrf.mxu0
        %605 = vmatprep.mubr.bf16.mxu0 0
        %606 = vmatmul.mubr.bf16.gmra.mxu0 %v502
        %v607 = vpop.f32.mrf.mxu0
        %v608 = vadd.f32 0.0, %v607
        %v609 = vpop.f32.mrf.mxu0
        %v610 = vpop.f32.mrf.mxu0
        %v611 = vadd.f32 0.0, %v610
        %v612 = vpop.f32.mrf.mxu0
        %613 = vmatprep.mubr.bf16.mxu0 0
        %614 = vmatmul.mubr.bf16.gmra.mxu0 %v503
        %v615 = vpop.f32.mrf.mxu0
        %v616 = vadd.f32 0.0, %v615
        %v617 = vpop.f32.mrf.mxu0
        %v618 = vpop.f32.mrf.mxu0
        %v619 = vadd.f32 0.0, %v618
        %v620 = vpop.f32.mrf.mxu0
        %621 = vmatprep.mubr.bf16.mxu0 0
        %622 = vmatmul.mubr.bf16.gmra.mxu0 %v504
        %v623 = vpop.f32.mrf.mxu0
        %v624 = vadd.f32 0.0, %v623
        %v625 = vpop.f32.mrf.mxu0
        %v626 = vpop.f32.mrf.mxu0
        %v627 = vadd.f32 0.0, %v626
        %v628 = vpop.f32.mrf.mxu0
        %629 = vmatprep.mubr.bf16.mxu0 0
        %630 = vmatmul.mubr.bf16.gmra.mxu0 %v505
        %v631 = vpop.f32.mrf.mxu0
        %v632 = vadd.f32 0.0, %v631
        %v633 = vpop.f32.mrf.mxu0
        %v634 = vpop.f32.mrf.mxu0
        %v635 = vadd.f32 0.0, %v634
        %v636 = vpop.f32.mrf.mxu0
        %637 = vmatprep.mubr.bf16.mxu0 0
        %638 = vmatmul.mubr.bf16.gmra.mxu0 %v506
        %v639 = vpop.f32.mrf.mxu0
        %v640 = vadd.f32 0.0, %v639
        %v641 = vpop.f32.mrf.mxu0
        %v642 = vpop.f32.mrf.mxu0
        %v643 = vadd.f32 0.0, %v642
        %v644 = vpop.f32.mrf.mxu0
        %645 = vmatprep.mubr.bf16.mxu0 0
        %646 = vmatmul.mubr.bf16.gmra.mxu0 %v507
        %v647 = vpop.f32.mrf.mxu0
        %v648 = vadd.f32 0.0, %v647
        %v649 = vpop.f32.mrf.mxu0
        %v650 = vpop.f32.mrf.mxu0
        %v651 = vadd.f32 0.0, %v650
        %v652 = vpop.f32.mrf.mxu0
        %653 = vmatprep.mubr.bf16.mxu0 0
        %654 = vmatmul.mubr.bf16.gmra.mxu0 %v508
        %v655 = vpop.f32.mrf.mxu0
        %v656 = vadd.f32 0.0, %v655
        %v657 = vpop.f32.mrf.mxu0
        %v658 = vpop.f32.mrf.mxu0
        %v659 = vadd.f32 0.0, %v658
        %v660 = vpop.f32.mrf.mxu0
        %661 = vdwg.mxu0
        %v662 = vld [vmem:[%s368] sm:$0xf]
        %v663 = vld [vmem:[#allocation8] sm:$0xf]
        %v664 = vld [vmem:[#allocation8 + $0x4] sm:$0xf]
        %v665 = vld [vmem:[#allocation8 + $0x8] sm:$0xf]
        %v666 = vld [vmem:[#allocation8 + $0xc] sm:$0xf]
        %v667 = vld [vmem:[#allocation8 + $0x10] sm:$0xf]
        %v668 = vld [vmem:[#allocation8 + $0x14] sm:$0xf]
        %v669 = vld [vmem:[#allocation8 + $0x18] sm:$0xf]
        %v670 = vld [vmem:[#allocation8 + $0x1c] sm:$0xf]
        %v671 = vld [vmem:[#allocation8 + $0x20] sm:$0xf]
        %v672 = vld [vmem:[#allocation8 + $0x24] sm:$0xf]
        %v673 = vld [vmem:[#allocation8 + $0x28] sm:$0xf]
        %v674 = vld [vmem:[#allocation8 + $0x2c] sm:$0xf]
        %v675 = vld [vmem:[#allocation8 + $0x30] sm:$0xf]
        %v676 = vld [vmem:[#allocation8 + $0x34] sm:$0xf]
        %v677 = vld [vmem:[#allocation8 + $0x38] sm:$0xf]
        %v678 = vld [vmem:[#allocation8 + $0x3c] sm:$0xf]
        %v679 = vld [vmem:[%s5] sm:$0x1]
        %v681 = vlaneseq
        %v682 = vshrl.u32 %v681, 7
        %v683 = vsub.s32 0, %v682
        %v684 = vrot.slane %v679, %v683
        %v702 = vunpack.c.l.b16 %v663
        %v703 = vunpack.c.l.b16 %v664
        %v704 = vunpack.c.l.b16 %v665
        %v705 = vunpack.c.l.b16 %v666
        %v706 = vunpack.c.l.b16 %v667
        %v707 = vunpack.c.l.b16 %v668
        %v708 = vunpack.c.l.b16 %v669
        %v709 = vunpack.c.l.b16 %v670
        %v710 = vunpack.c.l.b16 %v671
        %v711 = vunpack.c.l.b16 %v672
        %v712 = vunpack.c.l.b16 %v673
        %v713 = vunpack.c.l.b16 %v674
        %v714 = vunpack.c.l.b16 %v675
        %v715 = vunpack.c.l.b16 %v676
        %v716 = vunpack.c.l.b16 %v677
        %v717 = vunpack.c.l.b16 %v678
        %v718 = vpack.c.b16 %v703, %v702
        %v719 = vpack.c.b16 %v705, %v704
        %v720 = vpack.c.b16 %v707, %v706
        %v721 = vpack.c.b16 %v709, %v708
        %v722 = vpack.c.b16 %v711, %v710
        %v723 = vpack.c.b16 %v713, %v712
        %v724 = vpack.c.b16 %v715, %v714
        %v725 = vpack.c.b16 %v717, %v716
        %734 = vmatprep.subr.bf16.mxu0 0
        %735 = vmatpush1.bf16.msra.mxu0 %v725
        %736 = vmatprep.subr.bf16.mxu0 0
        %737 = vmatpush1.bf16.msra.mxu0 %v724
        %738 = vmatprep.subr.bf16.mxu0 0
        %739 = vmatpush1.bf16.msra.mxu0 %v723
        %740 = vmatprep.subr.bf16.mxu0 0
        %741 = vmatpush1.bf16.msra.mxu0 %v722
        %742 = vmatprep.subr.bf16.mxu0 0
        %743 = vmatpush1.bf16.msra.mxu0 %v721
        %744 = vmatprep.subr.bf16.mxu0 0
        %745 = vmatpush1.bf16.msra.mxu0 %v720
        %746 = vmatprep.subr.bf16.mxu0 0
        %747 = vmatpush1.bf16.msra.mxu0 %v719
        %748 = vmatprep.subr.bf16.mxu0 0
        %749 = vmatpush1.bf16.msra.mxu0 %v718
        %750 = vmatprep.subr.bf16.mxu0 0
        %751 = vmatpush2.bf16.msra.mxu0 0
        %752 = vmatprep.subr.bf16.mxu0 0
        %753 = vmatpush2.bf16.msra.mxu0 0
        %754 = vmatprep.subr.bf16.mxu0 0
        %755 = vmatpush2.bf16.msra.mxu0 0
        %756 = vmatprep.subr.bf16.mxu0 0
        %757 = vmatpush2.bf16.msra.mxu0 0
        %758 = vmatprep.subr.bf16.mxu0 0
        %759 = vmatpush2.bf16.msra.mxu0 0
        %760 = vmatprep.subr.bf16.mxu0 0
        %761 = vmatpush2.bf16.msra.mxu0 0
        %762 = vmatprep.subr.bf16.mxu0 0
        %763 = vmatpush2.bf16.msra.mxu0 0
        %764 = vmatprep.subr.bf16.mxu0 0
        %765 = vmatpush2.bf16.msra.mxu0 0
        %766 = vmatprep.mubr.bf16.mxu0 0
        %767 = vmatmul.mubr.bf16.gmra.mxu0 %v662
        %v768 = vpop.f32.mrf.mxu0
        %v769 = vadd.f32 %v684, %v768
        %v770 = vpop.f32.mrf.mxu0
        %v771 = vpop.f32.mrf.mxu0
        %v772 = vpop.f32.mrf.mxu0
        %773 = vdwg.mxu0
        %v775 = vcombine.high %v769, %v769
        %v777 = vunpack.c.l.s4 1966171168
        %v778 = vunpack.c.0.s8 %v777
        %v779 = vlaneseq
        %v780 = vshrl.u32 %v779, 7
        %v781 = vsub.s32 %v778, %v780
        %v782 = vrot.slane %v769, %v781
        %v784 = vunpack.c.l.s4 1966171168
        %v785 = vunpack.c.0.s8 %v784
        %v786 = vlaneseq
        %v787 = vshrl.u32 %v786, 7
        %v788 = vsub.s32 %v785, %v787
        %v789 = vrot.slane %v775, %v788
        %v790 = vcombine.high %v782, %v782
        %v791 = vcombine.high %v789, %v789
        %v793 = vunpack.c.l.s4 1966171168
        %v794 = vunpack.c.0.s8 %v793
        %v795 = vlaneseq
        %v796 = vshrl.u32 %v795, 7
        %v797 = vsub.s32 %v794, %v796
        %v798 = vrot.slane %v782, %v797
        %v800 = vunpack.c.l.s4 1966171168
        %v801 = vunpack.c.0.s8 %v800
        %v802 = vlaneseq
        %v803 = vshrl.u32 %v802, 7
        %v804 = vsub.s32 %v801, %v803
        %v805 = vrot.slane %v789, %v804
        %v807 = vunpack.c.l.s4 1966171168
        %v808 = vunpack.c.0.s8 %v807
        %v809 = vlaneseq
        %v810 = vshrl.u32 %v809, 7
        %v811 = vsub.s32 %v808, %v810
        %v812 = vrot.slane %v790, %v811
        %v814 = vunpack.c.l.s4 1966171168
        %v815 = vunpack.c.0.s8 %v814
        %v816 = vlaneseq
        %v817 = vshrl.u32 %v816, 7
        %v818 = vsub.s32 %v815, %v817
        %v819 = vrot.slane %v791, %v818
        %v820 = vcombine.high %v798, %v798
        %v821 = vcombine.high %v805, %v805
        %v822 = vcombine.high %v812, %v812
        %v823 = vcombine.high %v819, %v819
        %v824 = vlaneseq
        %v825 = vshrl.u32 %v824, 7
        %v826 = vsub.s32 0, %v825
        %v827 = vrot.slane %v798, %v826
        %v828 = vlaneseq
        %v829 = vshrl.u32 %v828, 7
        %v830 = vsub.s32 0, %v829
        %v831 = vrot.slane %v812, %v830
        %v832 = vlaneseq
        %v833 = vshrl.u32 %v832, 7
        %v834 = vsub.s32 0, %v833
        %v835 = vrot.slane %v820, %v834
        %v836 = vlaneseq
        %v837 = vshrl.u32 %v836, 7
        %v838 = vsub.s32 0, %v837
        %v839 = vrot.slane %v822, %v838
        %v840 = vlaneseq
        %v841 = vshrl.u32 %v840, 7
        %v842 = vsub.s32 0, %v841
        %v843 = vrot.slane %v805, %v842
        %v844 = vlaneseq
        %v845 = vshrl.u32 %v844, 7
        %v846 = vsub.s32 0, %v845
        %v847 = vrot.slane %v819, %v846
        %v848 = vlaneseq
        %v849 = vshrl.u32 %v848, 7
        %v850 = vsub.s32 0, %v849
        %v851 = vrot.slane %v821, %v850
        %v852 = vlaneseq
        %v853 = vshrl.u32 %v852, 7
        %v854 = vsub.s32 0, %v853
        %v855 = vrot.slane %v823, %v854
        %v864 = vadd.f32 %v600, %v827
        %v865 = vadd.f32 %v603, %v827
        %v866 = vadd.f32 %v608, %v827
        %v867 = vadd.f32 %v611, %v827
        %v868 = vadd.f32 %v616, %v827
        %v869 = vadd.f32 %v619, %v827
        %v870 = vadd.f32 %v624, %v827
        %v871 = vadd.f32 %v627, %v827
        %v872 = vadd.f32 %v632, %v827
        %v873 = vadd.f32 %v635, %v827
        %v874 = vadd.f32 %v640, %v827
        %v875 = vadd.f32 %v643, %v827
        %v876 = vadd.f32 %v648, %v827
        %v877 = vadd.f32 %v651, %v827
        %v878 = vadd.f32 %v656, %v827
        %v879 = vadd.f32 %v659, %v827
        %v880 = vadd.f32 %v600, %v831
        %v881 = vadd.f32 %v603, %v831
        %v882 = vadd.f32 %v608, %v831
        %v883 = vadd.f32 %v611, %v831
        %v884 = vadd.f32 %v616, %v831
        %v885 = vadd.f32 %v619, %v831
        %v886 = vadd.f32 %v624, %v831
        %v887 = vadd.f32 %v627, %v831
        %v888 = vadd.f32 %v632, %v831
        %v889 = vadd.f32 %v635, %v831
        %v890 = vadd.f32 %v640, %v831
        %v891 = vadd.f32 %v643, %v831
        %v892 = vadd.f32 %v648, %v831
        %v893 = vadd.f32 %v651, %v831
        %v894 = vadd.f32 %v656, %v831
        %v895 = vadd.f32 %v659, %v831
        %v896 = vadd.f32 %v600, %v835
        %v897 = vadd.f32 %v603, %v835
        %v898 = vadd.f32 %v608, %v835
        %v899 = vadd.f32 %v611, %v835
        %v900 = vadd.f32 %v616, %v835
        %v901 = vadd.f32 %v619, %v835
        %v902 = vadd.f32 %v624, %v835
        %v903 = vadd.f32 %v627, %v835
        %v904 = vadd.f32 %v632, %v835
        %v905 = vadd.f32 %v635, %v835
        %v906 = vadd.f32 %v640, %v835
        %v907 = vadd.f32 %v643, %v835
        %v908 = vadd.f32 %v648, %v835
        %v909 = vadd.f32 %v651, %v835
        %v910 = vadd.f32 %v656, %v835
        %v911 = vadd.f32 %v659, %v835
        %v912 = vadd.f32 %v600, %v839
        %v913 = vadd.f32 %v603, %v839
        %v914 = vadd.f32 %v608, %v839
        %v915 = vadd.f32 %v611, %v839
        %v916 = vadd.f32 %v616, %v839
        %v917 = vadd.f32 %v619, %v839
        %v918 = vadd.f32 %v624, %v839
        %v919 = vadd.f32 %v627, %v839
        %v920 = vadd.f32 %v632, %v839
        %v921 = vadd.f32 %v635, %v839
        %v922 = vadd.f32 %v640, %v839
        %v923 = vadd.f32 %v643, %v839
        %v924 = vadd.f32 %v648, %v839
        %v925 = vadd.f32 %v651, %v839
        %v926 = vadd.f32 %v656, %v839
        %v927 = vadd.f32 %v659, %v839
        %v928 = vadd.f32 %v600, %v843
        %v929 = vadd.f32 %v603, %v843
        %v930 = vadd.f32 %v608, %v843
        %v931 = vadd.f32 %v611, %v843
        %v932 = vadd.f32 %v616, %v843
        %v933 = vadd.f32 %v619, %v843
        %v934 = vadd.f32 %v624, %v843
        %v935 = vadd.f32 %v627, %v843
        %v936 = vadd.f32 %v632, %v843
        %v937 = vadd.f32 %v635, %v843
        %v938 = vadd.f32 %v640, %v843
        %v939 = vadd.f32 %v643, %v843
        %v940 = vadd.f32 %v648, %v843
        %v941 = vadd.f32 %v651, %v843
        %v942 = vadd.f32 %v656, %v843
        %v943 = vadd.f32 %v659, %v843
        %v944 = vadd.f32 %v600, %v847
        %v945 = vadd.f32 %v603, %v847
        %v946 = vadd.f32 %v608, %v847
        %v947 = vadd.f32 %v611, %v847
        %v948 = vadd.f32 %v616, %v847
        %v949 = vadd.f32 %v619, %v847
        %v950 = vadd.f32 %v624, %v847
        %v951 = vadd.f32 %v627, %v847
        %v952 = vadd.f32 %v632, %v847
        %v953 = vadd.f32 %v635, %v847
        %v954 = vadd.f32 %v640, %v847
        %v955 = vadd.f32 %v643, %v847
        %v956 = vadd.f32 %v648, %v847
        %v957 = vadd.f32 %v651, %v847
        %v958 = vadd.f32 %v656, %v847
        %v959 = vadd.f32 %v659, %v847
        %v960 = vadd.f32 %v600, %v851
        %v961 = vadd.f32 %v603, %v851
        %v962 = vadd.f32 %v608, %v851
        %v963 = vadd.f32 %v611, %v851
        %v964 = vadd.f32 %v616, %v851
        %v965 = vadd.f32 %v619, %v851
        %v966 = vadd.f32 %v624, %v851
        %v967 = vadd.f32 %v627, %v851
        %v968 = vadd.f32 %v632, %v851
        %v969 = vadd.f32 %v635, %v851
        %v970 = vadd.f32 %v640, %v851
        %v971 = vadd.f32 %v643, %v851
        %v972 = vadd.f32 %v648, %v851
        %v973 = vadd.f32 %v651, %v851
        %v974 = vadd.f32 %v656, %v851
        %v975 = vadd.f32 %v659, %v851
        %v976 = vadd.f32 %v600, %v855
        %v977 = vadd.f32 %v603, %v855
        %v978 = vadd.f32 %v608, %v855
        %v979 = vadd.f32 %v611, %v855
        %v980 = vadd.f32 %v616, %v855
        %v981 = vadd.f32 %v619, %v855
        %v982 = vadd.f32 %v624, %v855
        %v983 = vadd.f32 %v627, %v855
        %v984 = vadd.f32 %v632, %v855
        %v985 = vadd.f32 %v635, %v855
        %v986 = vadd.f32 %v640, %v855
        %v987 = vadd.f32 %v643, %v855
        %v988 = vadd.f32 %v648, %v855
        %v989 = vadd.f32 %v651, %v855
        %v990 = vadd.f32 %v656, %v855
        %v991 = vadd.f32 %v659, %v855
        %v992 = vtanh.pop %v864
        %v993 = vtanh.pop %v865
        %v994 = vtanh.pop %v866
        %v995 = vtanh.pop %v867
        %v996 = vtanh.pop %v868
        %v997 = vtanh.pop %v869
        %v998 = vtanh.pop %v870
        %v999 = vtanh.pop %v871
        %v1000 = vtanh.pop %v872
        %v1001 = vtanh.pop %v873
        %v1002 = vtanh.pop %v874
        %v1003 = vtanh.pop %v875
        %v1004 = vtanh.pop %v876
        %v1005 = vtanh.pop %v877
        %v1006 = vtanh.pop %v878
        %v1007 = vtanh.pop %v879
        %v1008 = vtanh.pop %v880
        %v1009 = vtanh.pop %v881
        %v1010 = vtanh.pop %v882
        %v1011 = vtanh.pop %v883
        %v1012 = vtanh.pop %v884
        %v1013 = vtanh.pop %v885
        %v1014 = vtanh.pop %v886
        %v1015 = vtanh.pop %v887
        %v1016 = vtanh.pop %v888
        %v1017 = vtanh.pop %v889
        %v1018 = vtanh.pop %v890
        %v1019 = vtanh.pop %v891
        %v1020 = vtanh.pop %v892
        %v1021 = vtanh.pop %v893
        %v1022 = vtanh.pop %v894
        %v1023 = vtanh.pop %v895
        %v1024 = vtanh.pop %v896
        %v1025 = vtanh.pop %v897
        %v1026 = vtanh.pop %v898
        %v1027 = vtanh.pop %v899
        %v1028 = vtanh.pop %v900
        %v1029 = vtanh.pop %v901
        %v1030 = vtanh.pop %v902
        %v1031 = vtanh.pop %v903
        %v1032 = vtanh.pop %v904
        %v1033 = vtanh.pop %v905
        %v1034 = vtanh.pop %v906
        %v1035 = vtanh.pop %v907
        %v1036 = vtanh.pop %v908
        %v1037 = vtanh.pop %v909
        %v1038 = vtanh.pop %v910
        %v1039 = vtanh.pop %v911
        %v1040 = vtanh.pop %v912
        %v1041 = vtanh.pop %v913
        %v1042 = vtanh.pop %v914
        %v1043 = vtanh.pop %v915
        %v1044 = vtanh.pop %v916
        %v1045 = vtanh.pop %v917
        %v1046 = vtanh.pop %v918
        %v1047 = vtanh.pop %v919
        %v1048 = vtanh.pop %v920
        %v1049 = vtanh.pop %v921
        %v1050 = vtanh.pop %v922
        %v1051 = vtanh.pop %v923
        %v1052 = vtanh.pop %v924
        %v1053 = vtanh.pop %v925
        %v1054 = vtanh.pop %v926
        %v1055 = vtanh.pop %v927
        %v1056 = vtanh.pop %v928
        %v1057 = vtanh.pop %v929
        %v1058 = vtanh.pop %v930
        %v1059 = vtanh.pop %v931
        %v1060 = vtanh.pop %v932
        %v1061 = vtanh.pop %v933
        %v1062 = vtanh.pop %v934
        %v1063 = vtanh.pop %v935
        %v1064 = vtanh.pop %v936
        %v1065 = vtanh.pop %v937
        %v1066 = vtanh.pop %v938
        %v1067 = vtanh.pop %v939
        %v1068 = vtanh.pop %v940
        %v1069 = vtanh.pop %v941
        %v1070 = vtanh.pop %v942
        %v1071 = vtanh.pop %v943
        %v1072 = vtanh.pop %v944
        %v1073 = vtanh.pop %v945
        %v1074 = vtanh.pop %v946
        %v1075 = vtanh.pop %v947
        %v1076 = vtanh.pop %v948
        %v1077 = vtanh.pop %v949
        %v1078 = vtanh.pop %v950
        %v1079 = vtanh.pop %v951
        %v1080 = vtanh.pop %v952
        %v1081 = vtanh.pop %v953
        %v1082 = vtanh.pop %v954
        %v1083 = vtanh.pop %v955
        %v1084 = vtanh.pop %v956
        %v1085 = vtanh.pop %v957
        %v1086 = vtanh.pop %v958
        %v1087 = vtanh.pop %v959
        %v1088 = vtanh.pop %v960
        %v1089 = vtanh.pop %v961
        %v1090 = vtanh.pop %v962
        %v1091 = vtanh.pop %v963
        %v1092 = vtanh.pop %v964
        %v1093 = vtanh.pop %v965
        %v1094 = vtanh.pop %v966
        %v1095 = vtanh.pop %v967
        %v1096 = vtanh.pop %v968
        %v1097 = vtanh.pop %v969
        %v1098 = vtanh.pop %v970
        %v1099 = vtanh.pop %v971
        %v1100 = vtanh.pop %v972
        %v1101 = vtanh.pop %v973
        %v1102 = vtanh.pop %v974
        %v1103 = vtanh.pop %v975
        %v1104 = vtanh.pop %v976
        %v1105 = vtanh.pop %v977
        %v1106 = vtanh.pop %v978
        %v1107 = vtanh.pop %v979
        %v1108 = vtanh.pop %v980
        %v1109 = vtanh.pop %v981
        %v1110 = vtanh.pop %v982
        %v1111 = vtanh.pop %v983
        %v1112 = vtanh.pop %v984
        %v1113 = vtanh.pop %v985
        %v1114 = vtanh.pop %v986
        %v1115 = vtanh.pop %v987
        %v1116 = vtanh.pop %v988
        %v1117 = vtanh.pop %v989
        %v1118 = vtanh.pop %v990
        %v1119 = vtanh.pop %v991
        %v1121 = vlaneseq
        %v1122 = vshrl.u32 %v1121, 7
        %v1123 = vsub.s32 0, %v1122
        %v1124 = vrot.slane %v452, %v1123
        %v1126 = vmul.f32 %v992, %v1124
        %v1127 = vmul.f32 %v993, %v1124
        %v1128 = vmul.f32 %v994, %v1124
        %v1129 = vmul.f32 %v995, %v1124
        %v1130 = vmul.f32 %v996, %v1124
        %v1131 = vmul.f32 %v997, %v1124
        %v1132 = vmul.f32 %v998, %v1124
        %v1133 = vmul.f32 %v999, %v1124
        %v1134 = vmul.f32 %v1000, %v1124
        %v1135 = vmul.f32 %v1001, %v1124
        %v1136 = vmul.f32 %v1002, %v1124
        %v1137 = vmul.f32 %v1003, %v1124
        %v1138 = vmul.f32 %v1004, %v1124
        %v1139 = vmul.f32 %v1005, %v1124
        %v1140 = vmul.f32 %v1006, %v1124
        %v1141 = vmul.f32 %v1007, %v1124
        %v1142 = vmul.f32 %v1008, %v1124
        %v1143 = vmul.f32 %v1009, %v1124
        %v1144 = vmul.f32 %v1010, %v1124
        %v1145 = vmul.f32 %v1011, %v1124
        %v1146 = vmul.f32 %v1012, %v1124
        %v1147 = vmul.f32 %v1013, %v1124
        %v1148 = vmul.f32 %v1014, %v1124
        %v1149 = vmul.f32 %v1015, %v1124
        %v1150 = vmul.f32 %v1016, %v1124
        %v1151 = vmul.f32 %v1017, %v1124
        %v1152 = vmul.f32 %v1018, %v1124
        %v1153 = vmul.f32 %v1019, %v1124
        %v1154 = vmul.f32 %v1020, %v1124
        %v1155 = vmul.f32 %v1021, %v1124
        %v1156 = vmul.f32 %v1022, %v1124
        %v1157 = vmul.f32 %v1023, %v1124
        %v1158 = vmul.f32 %v1024, %v1124
        %v1159 = vmul.f32 %v1025, %v1124
        %v1160 = vmul.f32 %v1026, %v1124
        %v1161 = vmul.f32 %v1027, %v1124
        %v1162 = vmul.f32 %v1028, %v1124
        %v1163 = vmul.f32 %v1029, %v1124
        %v1164 = vmul.f32 %v1030, %v1124
        %v1165 = vmul.f32 %v1031, %v1124
        %v1166 = vmul.f32 %v1032, %v1124
        %v1167 = vmul.f32 %v1033, %v1124
        %v1168 = vmul.f32 %v1034, %v1124
        %v1169 = vmul.f32 %v1035, %v1124
        %v1170 = vmul.f32 %v1036, %v1124
        %v1171 = vmul.f32 %v1037, %v1124
        %v1172 = vmul.f32 %v1038, %v1124
        %v1173 = vmul.f32 %v1039, %v1124
        %v1174 = vmul.f32 %v1040, %v1124
        %v1175 = vmul.f32 %v1041, %v1124
        %v1176 = vmul.f32 %v1042, %v1124
        %v1177 = vmul.f32 %v1043, %v1124
        %v1178 = vmul.f32 %v1044, %v1124
        %v1179 = vmul.f32 %v1045, %v1124
        %v1180 = vmul.f32 %v1046, %v1124
        %v1181 = vmul.f32 %v1047, %v1124
        %v1182 = vmul.f32 %v1048, %v1124
        %v1183 = vmul.f32 %v1049, %v1124
        %v1184 = vmul.f32 %v1050, %v1124
        %v1185 = vmul.f32 %v1051, %v1124
        %v1186 = vmul.f32 %v1052, %v1124
        %v1187 = vmul.f32 %v1053, %v1124
        %v1188 = vmul.f32 %v1054, %v1124
        %v1189 = vmul.f32 %v1055, %v1124
        %v1190 = vmul.f32 %v1056, %v1124
        %v1191 = vmul.f32 %v1057, %v1124
        %v1192 = vmul.f32 %v1058, %v1124
        %v1193 = vmul.f32 %v1059, %v1124
        %v1194 = vmul.f32 %v1060, %v1124
        %v1195 = vmul.f32 %v1061, %v1124
        %v1196 = vmul.f32 %v1062, %v1124
        %v1197 = vmul.f32 %v1063, %v1124
        %v1198 = vmul.f32 %v1064, %v1124
        %v1199 = vmul.f32 %v1065, %v1124
        %v1200 = vmul.f32 %v1066, %v1124
        %v1201 = vmul.f32 %v1067, %v1124
        %v1202 = vmul.f32 %v1068, %v1124
        %v1203 = vmul.f32 %v1069, %v1124
        %v1204 = vmul.f32 %v1070, %v1124
        %v1205 = vmul.f32 %v1071, %v1124
        %v1206 = vmul.f32 %v1072, %v1124
        %v1207 = vmul.f32 %v1073, %v1124
        %v1208 = vmul.f32 %v1074, %v1124
        %v1209 = vmul.f32 %v1075, %v1124
        %v1210 = vmul.f32 %v1076, %v1124
        %v1211 = vmul.f32 %v1077, %v1124
        %v1212 = vmul.f32 %v1078, %v1124
        %v1213 = vmul.f32 %v1079, %v1124
        %v1214 = vmul.f32 %v1080, %v1124
        %v1215 = vmul.f32 %v1081, %v1124
        %v1216 = vmul.f32 %v1082, %v1124
        %v1217 = vmul.f32 %v1083, %v1124
        %v1218 = vmul.f32 %v1084, %v1124
        %v1219 = vmul.f32 %v1085, %v1124
        %v1220 = vmul.f32 %v1086, %v1124
        %v1221 = vmul.f32 %v1087, %v1124
        %v1222 = vmul.f32 %v1088, %v1124
        %v1223 = vmul.f32 %v1089, %v1124
        %v1224 = vmul.f32 %v1090, %v1124
        %v1225 = vmul.f32 %v1091, %v1124
        %v1226 = vmul.f32 %v1092, %v1124
        %v1227 = vmul.f32 %v1093, %v1124
        %v1228 = vmul.f32 %v1094, %v1124
        %v1229 = vmul.f32 %v1095, %v1124
        %v1230 = vmul.f32 %v1096, %v1124
        %v1231 = vmul.f32 %v1097, %v1124
        %v1232 = vmul.f32 %v1098, %v1124
        %v1233 = vmul.f32 %v1099, %v1124
        %v1234 = vmul.f32 %v1100, %v1124
        %v1235 = vmul.f32 %v1101, %v1124
        %v1236 = vmul.f32 %v1102, %v1124
        %v1237 = vmul.f32 %v1103, %v1124
        %v1238 = vmul.f32 %v1104, %v1124
        %v1239 = vmul.f32 %v1105, %v1124
        %v1240 = vmul.f32 %v1106, %v1124
        %v1241 = vmul.f32 %v1107, %v1124
        %v1242 = vmul.f32 %v1108, %v1124
        %v1243 = vmul.f32 %v1109, %v1124
        %v1244 = vmul.f32 %v1110, %v1124
        %v1245 = vmul.f32 %v1111, %v1124
        %v1246 = vmul.f32 %v1112, %v1124
        %v1247 = vmul.f32 %v1113, %v1124
        %v1248 = vmul.f32 %v1114, %v1124
        %v1249 = vmul.f32 %v1115, %v1124
        %v1250 = vmul.f32 %v1116, %v1124
        %v1251 = vmul.f32 %v1117, %v1124
        %v1252 = vmul.f32 %v1118, %v1124
        %v1253 = vmul.f32 %v1119, %v1124
        %1254 = vadd.xlane.f32.xlu0 %v1126
        %v1255 = vpop.xlane.xlu0 %1254
        %1256 = vadd.xlane.f32.xlu0 %v1127
        %v1257 = vpop.xlane.xlu0 %1256
        %1258 = vadd.xlane.f32.xlu0 %v1128
        %v1259 = vpop.xlane.xlu0 %1258
        %1260 = vadd.xlane.f32.xlu0 %v1129
        %v1261 = vpop.xlane.xlu0 %1260
        %1262 = vadd.xlane.f32.xlu0 %v1130
        %v1263 = vpop.xlane.xlu0 %1262
        %1264 = vadd.xlane.f32.xlu0 %v1131
        %v1265 = vpop.xlane.xlu0 %1264
        %1266 = vadd.xlane.f32.xlu0 %v1132
        %v1267 = vpop.xlane.xlu0 %1266
        %1268 = vadd.xlane.f32.xlu0 %v1133
        %v1269 = vpop.xlane.xlu0 %1268
        %1270 = vadd.xlane.f32.xlu0 %v1134
        %v1271 = vpop.xlane.xlu0 %1270
        %1272 = vadd.xlane.f32.xlu0 %v1135
        %v1273 = vpop.xlane.xlu0 %1272
        %1274 = vadd.xlane.f32.xlu0 %v1136
        %v1275 = vpop.xlane.xlu0 %1274
        %1276 = vadd.xlane.f32.xlu0 %v1137
        %v1277 = vpop.xlane.xlu0 %1276
        %1278 = vadd.xlane.f32.xlu0 %v1138
        %v1279 = vpop.xlane.xlu0 %1278
        %1280 = vadd.xlane.f32.xlu0 %v1139
        %v1281 = vpop.xlane.xlu0 %1280
        %1282 = vadd.xlane.f32.xlu0 %v1140
        %v1283 = vpop.xlane.xlu0 %1282
        %1284 = vadd.xlane.f32.xlu0 %v1141
        %v1285 = vpop.xlane.xlu0 %1284
        %1286 = vadd.xlane.f32.xlu0 %v1142
        %v1287 = vpop.xlane.xlu0 %1286
        %1288 = vadd.xlane.f32.xlu0 %v1143
        %v1289 = vpop.xlane.xlu0 %1288
        %1290 = vadd.xlane.f32.xlu0 %v1144
        %v1291 = vpop.xlane.xlu0 %1290
        %1292 = vadd.xlane.f32.xlu0 %v1145
        %v1293 = vpop.xlane.xlu0 %1292
        %1294 = vadd.xlane.f32.xlu0 %v1146
        %v1295 = vpop.xlane.xlu0 %1294
        %1296 = vadd.xlane.f32.xlu0 %v1147
        %v1297 = vpop.xlane.xlu0 %1296
        %1298 = vadd.xlane.f32.xlu0 %v1148
        %v1299 = vpop.xlane.xlu0 %1298
        %1300 = vadd.xlane.f32.xlu0 %v1149
        %v1301 = vpop.xlane.xlu0 %1300
        %1302 = vadd.xlane.f32.xlu0 %v1150
        %v1303 = vpop.xlane.xlu0 %1302
        %1304 = vadd.xlane.f32.xlu0 %v1151
        %v1305 = vpop.xlane.xlu0 %1304
        %1306 = vadd.xlane.f32.xlu0 %v1152
        %v1307 = vpop.xlane.xlu0 %1306
        %1308 = vadd.xlane.f32.xlu0 %v1153
        %v1309 = vpop.xlane.xlu0 %1308
        %1310 = vadd.xlane.f32.xlu0 %v1154
        %v1311 = vpop.xlane.xlu0 %1310
        %1312 = vadd.xlane.f32.xlu0 %v1155
        %v1313 = vpop.xlane.xlu0 %1312
        %1314 = vadd.xlane.f32.xlu0 %v1156
        %v1315 = vpop.xlane.xlu0 %1314
        %1316 = vadd.xlane.f32.xlu0 %v1157
        %v1317 = vpop.xlane.xlu0 %1316
        %1318 = vadd.xlane.f32.xlu0 %v1158
        %v1319 = vpop.xlane.xlu0 %1318
        %1320 = vadd.xlane.f32.xlu0 %v1159
        %v1321 = vpop.xlane.xlu0 %1320
        %1322 = vadd.xlane.f32.xlu0 %v1160
        %v1323 = vpop.xlane.xlu0 %1322
        %1324 = vadd.xlane.f32.xlu0 %v1161
        %v1325 = vpop.xlane.xlu0 %1324
        %1326 = vadd.xlane.f32.xlu0 %v1162
        %v1327 = vpop.xlane.xlu0 %1326
        %1328 = vadd.xlane.f32.xlu0 %v1163
        %v1329 = vpop.xlane.xlu0 %1328
        %1330 = vadd.xlane.f32.xlu0 %v1164
        %v1331 = vpop.xlane.xlu0 %1330
        %1332 = vadd.xlane.f32.xlu0 %v1165
        %v1333 = vpop.xlane.xlu0 %1332
        %1334 = vadd.xlane.f32.xlu0 %v1166
        %v1335 = vpop.xlane.xlu0 %1334
        %1336 = vadd.xlane.f32.xlu0 %v1167
        %v1337 = vpop.xlane.xlu0 %1336
        %1338 = vadd.xlane.f32.xlu0 %v1168
        %v1339 = vpop.xlane.xlu0 %1338
        %1340 = vadd.xlane.f32.xlu0 %v1169
        %v1341 = vpop.xlane.xlu0 %1340
        %1342 = vadd.xlane.f32.xlu0 %v1170
        %v1343 = vpop.xlane.xlu0 %1342
        %1344 = vadd.xlane.f32.xlu0 %v1171
        %v1345 = vpop.xlane.xlu0 %1344
        %1346 = vadd.xlane.f32.xlu0 %v1172
        %v1347 = vpop.xlane.xlu0 %1346
        %1348 = vadd.xlane.f32.xlu0 %v1173
        %v1349 = vpop.xlane.xlu0 %1348
        %1350 = vadd.xlane.f32.xlu0 %v1174
        %v1351 = vpop.xlane.xlu0 %1350
        %1352 = vadd.xlane.f32.xlu0 %v1175
        %v1353 = vpop.xlane.xlu0 %1352
        %1354 = vadd.xlane.f32.xlu0 %v1176
        %v1355 = vpop.xlane.xlu0 %1354
        %1356 = vadd.xlane.f32.xlu0 %v1177
        %v1357 = vpop.xlane.xlu0 %1356
        %1358 = vadd.xlane.f32.xlu0 %v1178
        %v1359 = vpop.xlane.xlu0 %1358
        %1360 = vadd.xlane.f32.xlu0 %v1179
        %v1361 = vpop.xlane.xlu0 %1360
        %1362 = vadd.xlane.f32.xlu0 %v1180
        %v1363 = vpop.xlane.xlu0 %1362
        %1364 = vadd.xlane.f32.xlu0 %v1181
        %v1365 = vpop.xlane.xlu0 %1364
        %1366 = vadd.xlane.f32.xlu0 %v1182
        %v1367 = vpop.xlane.xlu0 %1366
        %1368 = vadd.xlane.f32.xlu0 %v1183
        %v1369 = vpop.xlane.xlu0 %1368
        %1370 = vadd.xlane.f32.xlu0 %v1184
        %v1371 = vpop.xlane.xlu0 %1370
        %1372 = vadd.xlane.f32.xlu0 %v1185
        %v1373 = vpop.xlane.xlu0 %1372
        %1374 = vadd.xlane.f32.xlu0 %v1186
        %v1375 = vpop.xlane.xlu0 %1374
        %1376 = vadd.xlane.f32.xlu0 %v1187
        %v1377 = vpop.xlane.xlu0 %1376
        %1378 = vadd.xlane.f32.xlu0 %v1188
        %v1379 = vpop.xlane.xlu0 %1378
        %1380 = vadd.xlane.f32.xlu0 %v1189
        %v1381 = vpop.xlane.xlu0 %1380
        %1382 = vadd.xlane.f32.xlu0 %v1190
        %v1383 = vpop.xlane.xlu0 %1382
        %1384 = vadd.xlane.f32.xlu0 %v1191
        %v1385 = vpop.xlane.xlu0 %1384
        %1386 = vadd.xlane.f32.xlu0 %v1192
        %v1387 = vpop.xlane.xlu0 %1386
        %1388 = vadd.xlane.f32.xlu0 %v1193
        %v1389 = vpop.xlane.xlu0 %1388
        %1390 = vadd.xlane.f32.xlu0 %v1194
        %v1391 = vpop.xlane.xlu0 %1390
        %1392 = vadd.xlane.f32.xlu0 %v1195
        %v1393 = vpop.xlane.xlu0 %1392
        %1394 = vadd.xlane.f32.xlu0 %v1196
        %v1395 = vpop.xlane.xlu0 %1394
        %1396 = vadd.xlane.f32.xlu0 %v1197
        %v1397 = vpop.xlane.xlu0 %1396
        %1398 = vadd.xlane.f32.xlu0 %v1198
        %v1399 = vpop.xlane.xlu0 %1398
        %1400 = vadd.xlane.f32.xlu0 %v1199
        %v1401 = vpop.xlane.xlu0 %1400
        %1402 = vadd.xlane.f32.xlu0 %v1200
        %v1403 = vpop.xlane.xlu0 %1402
        %1404 = vadd.xlane.f32.xlu0 %v1201
        %v1405 = vpop.xlane.xlu0 %1404
        %1406 = vadd.xlane.f32.xlu0 %v1202
        %v1407 = vpop.xlane.xlu0 %1406
        %1408 = vadd.xlane.f32.xlu0 %v1203
        %v1409 = vpop.xlane.xlu0 %1408
        %1410 = vadd.xlane.f32.xlu0 %v1204
        %v1411 = vpop.xlane.xlu0 %1410
        %1412 = vadd.xlane.f32.xlu0 %v1205
        %v1413 = vpop.xlane.xlu0 %1412
        %1414 = vadd.xlane.f32.xlu0 %v1206
        %v1415 = vpop.xlane.xlu0 %1414
        %1416 = vadd.xlane.f32.xlu0 %v1207
        %v1417 = vpop.xlane.xlu0 %1416
        %1418 = vadd.xlane.f32.xlu0 %v1208
        %v1419 = vpop.xlane.xlu0 %1418
        %1420 = vadd.xlane.f32.xlu0 %v1209
        %v1421 = vpop.xlane.xlu0 %1420
        %1422 = vadd.xlane.f32.xlu0 %v1210
        %v1423 = vpop.xlane.xlu0 %1422
        %1424 = vadd.xlane.f32.xlu0 %v1211
        %v1425 = vpop.xlane.xlu0 %1424
        %1426 = vadd.xlane.f32.xlu0 %v1212
        %v1427 = vpop.xlane.xlu0 %1426
        %1428 = vadd.xlane.f32.xlu0 %v1213
        %v1429 = vpop.xlane.xlu0 %1428
        %1430 = vadd.xlane.f32.xlu0 %v1214
        %v1431 = vpop.xlane.xlu0 %1430
        %1432 = vadd.xlane.f32.xlu0 %v1215
        %v1433 = vpop.xlane.xlu0 %1432
        %1434 = vadd.xlane.f32.xlu0 %v1216
        %v1435 = vpop.xlane.xlu0 %1434
        %1436 = vadd.xlane.f32.xlu0 %v1217
        %v1437 = vpop.xlane.xlu0 %1436
        %1438 = vadd.xlane.f32.xlu0 %v1218
        %v1439 = vpop.xlane.xlu0 %1438
        %1440 = vadd.xlane.f32.xlu0 %v1219
        %v1441 = vpop.xlane.xlu0 %1440
        %1442 = vadd.xlane.f32.xlu0 %v1220
        %v1443 = vpop.xlane.xlu0 %1442
        %1444 = vadd.xlane.f32.xlu0 %v1221
        %v1445 = vpop.xlane.xlu0 %1444
        %1446 = vadd.xlane.f32.xlu0 %v1222
        %v1447 = vpop.xlane.xlu0 %1446
        %1448 = vadd.xlane.f32.xlu0 %v1223
        %v1449 = vpop.xlane.xlu0 %1448
        %1450 = vadd.xlane.f32.xlu0 %v1224
        %v1451 = vpop.xlane.xlu0 %1450
        %1452 = vadd.xlane.f32.xlu0 %v1225
        %v1453 = vpop.xlane.xlu0 %1452
        %1454 = vadd.xlane.f32.xlu0 %v1226
        %v1455 = vpop.xlane.xlu0 %1454
        %1456 = vadd.xlane.f32.xlu0 %v1227
        %v1457 = vpop.xlane.xlu0 %1456
        %1458 = vadd.xlane.f32.xlu0 %v1228
        %v1459 = vpop.xlane.xlu0 %1458
        %1460 = vadd.xlane.f32.xlu0 %v1229
        %v1461 = vpop.xlane.xlu0 %1460
        %1462 = vadd.xlane.f32.xlu0 %v1230
        %v1463 = vpop.xlane.xlu0 %1462
        %1464 = vadd.xlane.f32.xlu0 %v1231
        %v1465 = vpop.xlane.xlu0 %1464
        %1466 = vadd.xlane.f32.xlu0 %v1232
        %v1467 = vpop.xlane.xlu0 %1466
        %1468 = vadd.xlane.f32.xlu0 %v1233
        %v1469 = vpop.xlane.xlu0 %1468
        %1470 = vadd.xlane.f32.xlu0 %v1234
        %v1471 = vpop.xlane.xlu0 %1470
        %1472 = vadd.xlane.f32.xlu0 %v1235
        %v1473 = vpop.xlane.xlu0 %1472
        %1474 = vadd.xlane.f32.xlu0 %v1236
        %v1475 = vpop.xlane.xlu0 %1474
        %1476 = vadd.xlane.f32.xlu0 %v1237
        %v1477 = vpop.xlane.xlu0 %1476
        %1478 = vadd.xlane.f32.xlu0 %v1238
        %v1479 = vpop.xlane.xlu0 %1478
        %1480 = vadd.xlane.f32.xlu0 %v1239
        %v1481 = vpop.xlane.xlu0 %1480
        %1482 = vadd.xlane.f32.xlu0 %v1240
        %v1483 = vpop.xlane.xlu0 %1482
        %1484 = vadd.xlane.f32.xlu0 %v1241
        %v1485 = vpop.xlane.xlu0 %1484
        %1486 = vadd.xlane.f32.xlu0 %v1242
        %v1487 = vpop.xlane.xlu0 %1486
        %1488 = vadd.xlane.f32.xlu0 %v1243
        %v1489 = vpop.xlane.xlu0 %1488
        %1490 = vadd.xlane.f32.xlu0 %v1244
        %v1491 = vpop.xlane.xlu0 %1490
        %1492 = vadd.xlane.f32.xlu0 %v1245
        %v1493 = vpop.xlane.xlu0 %1492
        %1494 = vadd.xlane.f32.xlu0 %v1246
        %v1495 = vpop.xlane.xlu0 %1494
        %1496 = vadd.xlane.f32.xlu0 %v1247
        %v1497 = vpop.xlane.xlu0 %1496
        %1498 = vadd.xlane.f32.xlu0 %v1248
        %v1499 = vpop.xlane.xlu0 %1498
        %1500 = vadd.xlane.f32.xlu0 %v1249
        %v1501 = vpop.xlane.xlu0 %1500
        %1502 = vadd.xlane.f32.xlu0 %v1250
        %v1503 = vpop.xlane.xlu0 %1502
        %1504 = vadd.xlane.f32.xlu0 %v1251
        %v1505 = vpop.xlane.xlu0 %1504
        %1506 = vadd.xlane.f32.xlu0 %v1252
        %v1507 = vpop.xlane.xlu0 %1506
        %1508 = vadd.xlane.f32.xlu0 %v1253
        %v1509 = vpop.xlane.xlu0 %1508
        %v1638 = vlaneseq
        %v1639 = vand.u32 %v1638, 127
        %v1640 = vlaneseq
        %v1641 = vshrl.u32 %v1640, 7
        %v1642 = vsub.s32 %v1639, %v1641
        %v1643 = vrot.slane %v1255, %v1642
        %v1644 = vadd.s32 %v1639, 4294967288
        %v1645 = vlaneseq
        %v1646 = vshrl.u32 %v1645, 7
        %v1647 = vsub.s32 %v1644, %v1646
        %v1648 = vrot.slane %v1257, %v1647
        %vm1649 = vcmask 130112
        %v1650 = vsel %vm1649, %v1648, %v1643
        %v1651 = vadd.s32 %v1639, 4294967280
        %v1652 = vlaneseq
        %v1653 = vshrl.u32 %v1652, 7
        %v1654 = vsub.s32 %v1651, %v1653
        %v1655 = vrot.slane %v1259, %v1654
        %vm1656 = vcmask 195712
        %v1657 = vsel %vm1656, %v1655, %v1650
        %v1658 = vadd.s32 %v1639, 4294967272
        %v1659 = vlaneseq
        %v1660 = vshrl.u32 %v1659, 7
        %v1661 = vsub.s32 %v1658, %v1660
        %v1662 = vrot.slane %v1261, %v1661
        %vm1663 = vcmask 261312
        %v1664 = vsel %vm1663, %v1662, %v1657
        %v1665 = vadd.s32 %v1639, 4294967264
        %v1666 = vlaneseq
        %v1667 = vshrl.u32 %v1666, 7
        %v1668 = vsub.s32 %v1665, %v1667
        %v1669 = vrot.slane %v1263, %v1668
        %vm1670 = vcmask 326912
        %v1671 = vsel %vm1670, %v1669, %v1664
        %v1672 = vadd.s32 %v1639, 4294967256
        %v1673 = vlaneseq
        %v1674 = vshrl.u32 %v1673, 7
        %v1675 = vsub.s32 %v1672, %v1674
        %v1676 = vrot.slane %v1265, %v1675
        %vm1677 = vcmask 392512
        %v1678 = vsel %vm1677, %v1676, %v1671
        %v1679 = vadd.s32 %v1639, 4294967248
        %v1680 = vlaneseq
        %v1681 = vshrl.u32 %v1680, 7
        %v1682 = vsub.s32 %v1679, %v1681
        %v1683 = vrot.slane %v1267, %v1682
        %vm1684 = vcmask 458112
        %v1685 = vsel %vm1684, %v1683, %v1678
        %v1686 = vadd.s32 %v1639, 4294967240
        %v1687 = vlaneseq
        %v1688 = vshrl.u32 %v1687, 7
        %v1689 = vsub.s32 %v1686, %v1688
        %v1690 = vrot.slane %v1269, %v1689
        %vm1691 = vcmask 523712
        %v1692 = vsel %vm1691, %v1690, %v1685
        %v1693 = vadd.s32 %v1639, 4294967232
        %v1694 = vlaneseq
        %v1695 = vshrl.u32 %v1694, 7
        %v1696 = vsub.s32 %v1693, %v1695
        %v1697 = vrot.slane %v1271, %v1696
        %vm1698 = vcmask 589312
        %v1699 = vsel %vm1698, %v1697, %v1692
        %v1700 = vadd.s32 %v1639, 4294967224
        %v1701 = vlaneseq
        %v1702 = vshrl.u32 %v1701, 7
        %v1703 = vsub.s32 %v1700, %v1702
        %v1704 = vrot.slane %v1273, %v1703
        %vm1705 = vcmask 654912
        %v1706 = vsel %vm1705, %v1704, %v1699
        %v1707 = vadd.s32 %v1639, 4294967216
        %v1708 = vlaneseq
        %v1709 = vshrl.u32 %v1708, 7
        %v1710 = vsub.s32 %v1707, %v1709
        %v1711 = vrot.slane %v1275, %v1710
        %vm1712 = vcmask 720512
        %v1713 = vsel %vm1712, %v1711, %v1706
        %v1714 = vadd.s32 %v1639, 4294967208
        %v1715 = vlaneseq
        %v1716 = vshrl.u32 %v1715, 7
        %v1717 = vsub.s32 %v1714, %v1716
        %v1718 = vrot.slane %v1277, %v1717
        %vm1719 = vcmask 786112
        %v1720 = vsel %vm1719, %v1718, %v1713
        %v1721 = vadd.s32 %v1639, 4294967200
        %v1722 = vlaneseq
        %v1723 = vshrl.u32 %v1722, 7
        %v1724 = vsub.s32 %v1721, %v1723
        %v1725 = vrot.slane %v1279, %v1724
        %vm1726 = vcmask 851712
        %v1727 = vsel %vm1726, %v1725, %v1720
        %v1728 = vadd.s32 %v1639, 4294967192
        %v1729 = vlaneseq
        %v1730 = vshrl.u32 %v1729, 7
        %v1731 = vsub.s32 %v1728, %v1730
        %v1732 = vrot.slane %v1281, %v1731
        %vm1733 = vcmask 917312
        %v1734 = vsel %vm1733, %v1732, %v1727
        %v1735 = vadd.s32 %v1639, 4294967184
        %v1736 = vlaneseq
        %v1737 = vshrl.u32 %v1736, 7
        %v1738 = vsub.s32 %v1735, %v1737
        %v1739 = vrot.slane %v1283, %v1738
        %vm1740 = vcmask 982912
        %v1741 = vsel %vm1740, %v1739, %v1734
        %v1742 = vadd.s32 %v1639, 4294967176
        %v1743 = vlaneseq
        %v1744 = vshrl.u32 %v1743, 7
        %v1745 = vsub.s32 %v1742, %v1744
        %v1746 = vrot.slane %v1285, %v1745
        %vm1747 = vcmask 1048512
        %v1748 = vsel %vm1747, %v1746, %v1741
        %v1749 = vlaneseq
        %v1750 = vshrl.u32 %v1749, 7
        %v1751 = vsub.s32 %v1639, %v1750
        %v1752 = vrot.slane %v1287, %v1751
        %v1753 = vlaneseq
        %v1754 = vshrl.u32 %v1753, 7
        %v1755 = vsub.s32 %v1644, %v1754
        %v1756 = vrot.slane %v1289, %v1755
        %v1757 = vsel %vm1649, %v1756, %v1752
        %v1758 = vlaneseq
        %v1759 = vshrl.u32 %v1758, 7
        %v1760 = vsub.s32 %v1651, %v1759
        %v1761 = vrot.slane %v1291, %v1760
        %v1762 = vsel %vm1656, %v1761, %v1757
        %v1763 = vlaneseq
        %v1764 = vshrl.u32 %v1763, 7
        %v1765 = vsub.s32 %v1658, %v1764
        %v1766 = vrot.slane %v1293, %v1765
        %v1767 = vsel %vm1663, %v1766, %v1762
        %v1768 = vlaneseq
        %v1769 = vshrl.u32 %v1768, 7
        %v1770 = vsub.s32 %v1665, %v1769
        %v1771 = vrot.slane %v1295, %v1770
        %v1772 = vsel %vm1670, %v1771, %v1767
        %v1773 = vlaneseq
        %v1774 = vshrl.u32 %v1773, 7
        %v1775 = vsub.s32 %v1672, %v1774
        %v1776 = vrot.slane %v1297, %v1775
        %v1777 = vsel %vm1677, %v1776, %v1772
        %v1778 = vlaneseq
        %v1779 = vshrl.u32 %v1778, 7
        %v1780 = vsub.s32 %v1679, %v1779
        %v1781 = vrot.slane %v1299, %v1780
        %v1782 = vsel %vm1684, %v1781, %v1777
        %v1783 = vlaneseq
        %v1784 = vshrl.u32 %v1783, 7
        %v1785 = vsub.s32 %v1686, %v1784
        %v1786 = vrot.slane %v1301, %v1785
        %v1787 = vsel %vm1691, %v1786, %v1782
        %v1788 = vlaneseq
        %v1789 = vshrl.u32 %v1788, 7
        %v1790 = vsub.s32 %v1693, %v1789
        %v1791 = vrot.slane %v1303, %v1790
        %v1792 = vsel %vm1698, %v1791, %v1787
        %v1793 = vlaneseq
        %v1794 = vshrl.u32 %v1793, 7
        %v1795 = vsub.s32 %v1700, %v1794
        %v1796 = vrot.slane %v1305, %v1795
        %v1797 = vsel %vm1705, %v1796, %v1792
        %v1798 = vlaneseq
        %v1799 = vshrl.u32 %v1798, 7
        %v1800 = vsub.s32 %v1707, %v1799
        %v1801 = vrot.slane %v1307, %v1800
        %v1802 = vsel %vm1712, %v1801, %v1797
        %v1803 = vlaneseq
        %v1804 = vshrl.u32 %v1803, 7
        %v1805 = vsub.s32 %v1714, %v1804
        %v1806 = vrot.slane %v1309, %v1805
        %v1807 = vsel %vm1719, %v1806, %v1802
        %v1808 = vlaneseq
        %v1809 = vshrl.u32 %v1808, 7
        %v1810 = vsub.s32 %v1721, %v1809
        %v1811 = vrot.slane %v1311, %v1810
        %v1812 = vsel %vm1726, %v1811, %v1807
        %v1813 = vlaneseq
        %v1814 = vshrl.u32 %v1813, 7
        %v1815 = vsub.s32 %v1728, %v1814
        %v1816 = vrot.slane %v1313, %v1815
        %v1817 = vsel %vm1733, %v1816, %v1812
        %v1818 = vlaneseq
        %v1819 = vshrl.u32 %v1818, 7
        %v1820 = vsub.s32 %v1735, %v1819
        %v1821 = vrot.slane %v1315, %v1820
        %v1822 = vsel %vm1740, %v1821, %v1817
        %v1823 = vlaneseq
        %v1824 = vshrl.u32 %v1823, 7
        %v1825 = vsub.s32 %v1742, %v1824
        %v1826 = vrot.slane %v1317, %v1825
        %v1827 = vsel %vm1747, %v1826, %v1822
        %v1828 = vlaneseq
        %v1829 = vshrl.u32 %v1828, 7
        %v1830 = vsub.s32 %v1639, %v1829
        %v1831 = vrot.slane %v1319, %v1830
        %v1832 = vlaneseq
        %v1833 = vshrl.u32 %v1832, 7
        %v1834 = vsub.s32 %v1644, %v1833
        %v1835 = vrot.slane %v1321, %v1834
        %v1836 = vsel %vm1649, %v1835, %v1831
        %v1837 = vlaneseq
        %v1838 = vshrl.u32 %v1837, 7
        %v1839 = vsub.s32 %v1651, %v1838
        %v1840 = vrot.slane %v1323, %v1839
        %v1841 = vsel %vm1656, %v1840, %v1836
        %v1842 = vlaneseq
        %v1843 = vshrl.u32 %v1842, 7
        %v1844 = vsub.s32 %v1658, %v1843
        %v1845 = vrot.slane %v1325, %v1844
        %v1846 = vsel %vm1663, %v1845, %v1841
        %v1847 = vlaneseq
        %v1848 = vshrl.u32 %v1847, 7
        %v1849 = vsub.s32 %v1665, %v1848
        %v1850 = vrot.slane %v1327, %v1849
        %v1851 = vsel %vm1670, %v1850, %v1846
        %v1852 = vlaneseq
        %v1853 = vshrl.u32 %v1852, 7
        %v1854 = vsub.s32 %v1672, %v1853
        %v1855 = vrot.slane %v1329, %v1854
        %v1856 = vsel %vm1677, %v1855, %v1851
        %v1857 = vlaneseq
        %v1858 = vshrl.u32 %v1857, 7
        %v1859 = vsub.s32 %v1679, %v1858
        %v1860 = vrot.slane %v1331, %v1859
        %v1861 = vsel %vm1684, %v1860, %v1856
        %v1862 = vlaneseq
        %v1863 = vshrl.u32 %v1862, 7
        %v1864 = vsub.s32 %v1686, %v1863
        %v1865 = vrot.slane %v1333, %v1864
        %v1866 = vsel %vm1691, %v1865, %v1861
        %v1867 = vlaneseq
        %v1868 = vshrl.u32 %v1867, 7
        %v1869 = vsub.s32 %v1693, %v1868
        %v1870 = vrot.slane %v1335, %v1869
        %v1871 = vsel %vm1698, %v1870, %v1866
        %v1872 = vlaneseq
        %v1873 = vshrl.u32 %v1872, 7
        %v1874 = vsub.s32 %v1700, %v1873
        %v1875 = vrot.slane %v1337, %v1874
        %v1876 = vsel %vm1705, %v1875, %v1871
        %v1877 = vlaneseq
        %v1878 = vshrl.u32 %v1877, 7
        %v1879 = vsub.s32 %v1707, %v1878
        %v1880 = vrot.slane %v1339, %v1879
        %v1881 = vsel %vm1712, %v1880, %v1876
        %v1882 = vlaneseq
        %v1883 = vshrl.u32 %v1882, 7
        %v1884 = vsub.s32 %v1714, %v1883
        %v1885 = vrot.slane %v1341, %v1884
        %v1886 = vsel %vm1719, %v1885, %v1881
        %v1887 = vlaneseq
        %v1888 = vshrl.u32 %v1887, 7
        %v1889 = vsub.s32 %v1721, %v1888
        %v1890 = vrot.slane %v1343, %v1889
        %v1891 = vsel %vm1726, %v1890, %v1886
        %v1892 = vlaneseq
        %v1893 = vshrl.u32 %v1892, 7
        %v1894 = vsub.s32 %v1728, %v1893
        %v1895 = vrot.slane %v1345, %v1894
        %v1896 = vsel %vm1733, %v1895, %v1891
        %v1897 = vlaneseq
        %v1898 = vshrl.u32 %v1897, 7
        %v1899 = vsub.s32 %v1735, %v1898
        %v1900 = vrot.slane %v1347, %v1899
        %v1901 = vsel %vm1740, %v1900, %v1896
        %v1902 = vlaneseq
        %v1903 = vshrl.u32 %v1902, 7
        %v1904 = vsub.s32 %v1742, %v1903
        %v1905 = vrot.slane %v1349, %v1904
        %v1906 = vsel %vm1747, %v1905, %v1901
        %v1907 = vlaneseq
        %v1908 = vshrl.u32 %v1907, 7
        %v1909 = vsub.s32 %v1639, %v1908
        %v1910 = vrot.slane %v1351, %v1909
        %v1911 = vlaneseq
        %v1912 = vshrl.u32 %v1911, 7
        %v1913 = vsub.s32 %v1644, %v1912
        %v1914 = vrot.slane %v1353, %v1913
        %v1915 = vsel %vm1649, %v1914, %v1910
        %v1916 = vlaneseq
        %v1917 = vshrl.u32 %v1916, 7
        %v1918 = vsub.s32 %v1651, %v1917
        %v1919 = vrot.slane %v1355, %v1918
        %v1920 = vsel %vm1656, %v1919, %v1915
        %v1921 = vlaneseq
        %v1922 = vshrl.u32 %v1921, 7
        %v1923 = vsub.s32 %v1658, %v1922
        %v1924 = vrot.slane %v1357, %v1923
        %v1925 = vsel %vm1663, %v1924, %v1920
        %v1926 = vlaneseq
        %v1927 = vshrl.u32 %v1926, 7
        %v1928 = vsub.s32 %v1665, %v1927
        %v1929 = vrot.slane %v1359, %v1928
        %v1930 = vsel %vm1670, %v1929, %v1925
        %v1931 = vlaneseq
        %v1932 = vshrl.u32 %v1931, 7
        %v1933 = vsub.s32 %v1672, %v1932
        %v1934 = vrot.slane %v1361, %v1933
        %v1935 = vsel %vm1677, %v1934, %v1930
        %v1936 = vlaneseq
        %v1937 = vshrl.u32 %v1936, 7
        %v1938 = vsub.s32 %v1679, %v1937
        %v1939 = vrot.slane %v1363, %v1938
        %v1940 = vsel %vm1684, %v1939, %v1935
        %v1941 = vlaneseq
        %v1942 = vshrl.u32 %v1941, 7
        %v1943 = vsub.s32 %v1686, %v1942
        %v1944 = vrot.slane %v1365, %v1943
        %v1945 = vsel %vm1691, %v1944, %v1940
        %v1946 = vlaneseq
        %v1947 = vshrl.u32 %v1946, 7
        %v1948 = vsub.s32 %v1693, %v1947
        %v1949 = vrot.slane %v1367, %v1948
        %v1950 = vsel %vm1698, %v1949, %v1945
        %v1951 = vlaneseq
        %v1952 = vshrl.u32 %v1951, 7
        %v1953 = vsub.s32 %v1700, %v1952
        %v1954 = vrot.slane %v1369, %v1953
        %v1955 = vsel %vm1705, %v1954, %v1950
        %v1956 = vlaneseq
        %v1957 = vshrl.u32 %v1956, 7
        %v1958 = vsub.s32 %v1707, %v1957
        %v1959 = vrot.slane %v1371, %v1958
        %v1960 = vsel %vm1712, %v1959, %v1955
        %v1961 = vlaneseq
        %v1962 = vshrl.u32 %v1961, 7
        %v1963 = vsub.s32 %v1714, %v1962
        %v1964 = vrot.slane %v1373, %v1963
        %v1965 = vsel %vm1719, %v1964, %v1960
        %v1966 = vlaneseq
        %v1967 = vshrl.u32 %v1966, 7
        %v1968 = vsub.s32 %v1721, %v1967
        %v1969 = vrot.slane %v1375, %v1968
        %v1970 = vsel %vm1726, %v1969, %v1965
        %v1971 = vlaneseq
        %v1972 = vshrl.u32 %v1971, 7
        %v1973 = vsub.s32 %v1728, %v1972
        %v1974 = vrot.slane %v1377, %v1973
        %v1975 = vsel %vm1733, %v1974, %v1970
        %v1976 = vlaneseq
        %v1977 = vshrl.u32 %v1976, 7
        %v1978 = vsub.s32 %v1735, %v1977
        %v1979 = vrot.slane %v1379, %v1978
        %v1980 = vsel %vm1740, %v1979, %v1975
        %v1981 = vlaneseq
        %v1982 = vshrl.u32 %v1981, 7
        %v1983 = vsub.s32 %v1742, %v1982
        %v1984 = vrot.slane %v1381, %v1983
        %v1985 = vsel %vm1747, %v1984, %v1980
        %v1986 = vlaneseq
        %v1987 = vshrl.u32 %v1986, 7
        %v1988 = vsub.s32 %v1639, %v1987
        %v1989 = vrot.slane %v1383, %v1988
        %v1990 = vlaneseq
        %v1991 = vshrl.u32 %v1990, 7
        %v1992 = vsub.s32 %v1644, %v1991
        %v1993 = vrot.slane %v1385, %v1992
        %v1994 = vsel %vm1649, %v1993, %v1989
        %v1995 = vlaneseq
        %v1996 = vshrl.u32 %v1995, 7
        %v1997 = vsub.s32 %v1651, %v1996
        %v1998 = vrot.slane %v1387, %v1997
        %v1999 = vsel %vm1656, %v1998, %v1994
        %v2000 = vlaneseq
        %v2001 = vshrl.u32 %v2000, 7
        %v2002 = vsub.s32 %v1658, %v2001
        %v2003 = vrot.slane %v1389, %v2002
        %v2004 = vsel %vm1663, %v2003, %v1999
        %v2005 = vlaneseq
        %v2006 = vshrl.u32 %v2005, 7
        %v2007 = vsub.s32 %v1665, %v2006
        %v2008 = vrot.slane %v1391, %v2007
        %v2009 = vsel %vm1670, %v2008, %v2004
        %v2010 = vlaneseq
        %v2011 = vshrl.u32 %v2010, 7
        %v2012 = vsub.s32 %v1672, %v2011
        %v2013 = vrot.slane %v1393, %v2012
        %v2014 = vsel %vm1677, %v2013, %v2009
        %v2015 = vlaneseq
        %v2016 = vshrl.u32 %v2015, 7
        %v2017 = vsub.s32 %v1679, %v2016
        %v2018 = vrot.slane %v1395, %v2017
        %v2019 = vsel %vm1684, %v2018, %v2014
        %v2020 = vlaneseq
        %v2021 = vshrl.u32 %v2020, 7
        %v2022 = vsub.s32 %v1686, %v2021
        %v2023 = vrot.slane %v1397, %v2022
        %v2024 = vsel %vm1691, %v2023, %v2019
        %v2025 = vlaneseq
        %v2026 = vshrl.u32 %v2025, 7
        %v2027 = vsub.s32 %v1693, %v2026
        %v2028 = vrot.slane %v1399, %v2027
        %v2029 = vsel %vm1698, %v2028, %v2024
        %v2030 = vlaneseq
        %v2031 = vshrl.u32 %v2030, 7
        %v2032 = vsub.s32 %v1700, %v2031
        %v2033 = vrot.slane %v1401, %v2032
        %v2034 = vsel %vm1705, %v2033, %v2029
        %v2035 = vlaneseq
        %v2036 = vshrl.u32 %v2035, 7
        %v2037 = vsub.s32 %v1707, %v2036
        %v2038 = vrot.slane %v1403, %v2037
        %v2039 = vsel %vm1712, %v2038, %v2034
        %v2040 = vlaneseq
        %v2041 = vshrl.u32 %v2040, 7
        %v2042 = vsub.s32 %v1714, %v2041
        %v2043 = vrot.slane %v1405, %v2042
        %v2044 = vsel %vm1719, %v2043, %v2039
        %v2045 = vlaneseq
        %v2046 = vshrl.u32 %v2045, 7
        %v2047 = vsub.s32 %v1721, %v2046
        %v2048 = vrot.slane %v1407, %v2047
        %v2049 = vsel %vm1726, %v2048, %v2044
        %v2050 = vlaneseq
        %v2051 = vshrl.u32 %v2050, 7
        %v2052 = vsub.s32 %v1728, %v2051
        %v2053 = vrot.slane %v1409, %v2052
        %v2054 = vsel %vm1733, %v2053, %v2049
        %v2055 = vlaneseq
        %v2056 = vshrl.u32 %v2055, 7
        %v2057 = vsub.s32 %v1735, %v2056
        %v2058 = vrot.slane %v1411, %v2057
        %v2059 = vsel %vm1740, %v2058, %v2054
        %v2060 = vlaneseq
        %v2061 = vshrl.u32 %v2060, 7
        %v2062 = vsub.s32 %v1742, %v2061
        %v2063 = vrot.slane %v1413, %v2062
        %v2064 = vsel %vm1747, %v2063, %v2059
        %v2065 = vlaneseq
        %v2066 = vshrl.u32 %v2065, 7
        %v2067 = vsub.s32 %v1639, %v2066
        %v2068 = vrot.slane %v1415, %v2067
        %v2069 = vlaneseq
        %v2070 = vshrl.u32 %v2069, 7
        %v2071 = vsub.s32 %v1644, %v2070
        %v2072 = vrot.slane %v1417, %v2071
        %v2073 = vsel %vm1649, %v2072, %v2068
        %v2074 = vlaneseq
        %v2075 = vshrl.u32 %v2074, 7
        %v2076 = vsub.s32 %v1651, %v2075
        %v2077 = vrot.slane %v1419, %v2076
        %v2078 = vsel %vm1656, %v2077, %v2073
        %v2079 = vlaneseq
        %v2080 = vshrl.u32 %v2079, 7
        %v2081 = vsub.s32 %v1658, %v2080
        %v2082 = vrot.slane %v1421, %v2081
        %v2083 = vsel %vm1663, %v2082, %v2078
        %v2084 = vlaneseq
        %v2085 = vshrl.u32 %v2084, 7
        %v2086 = vsub.s32 %v1665, %v2085
        %v2087 = vrot.slane %v1423, %v2086
        %v2088 = vsel %vm1670, %v2087, %v2083
        %v2089 = vlaneseq
        %v2090 = vshrl.u32 %v2089, 7
        %v2091 = vsub.s32 %v1672, %v2090
        %v2092 = vrot.slane %v1425, %v2091
        %v2093 = vsel %vm1677, %v2092, %v2088
        %v2094 = vlaneseq
        %v2095 = vshrl.u32 %v2094, 7
        %v2096 = vsub.s32 %v1679, %v2095
        %v2097 = vrot.slane %v1427, %v2096
        %v2098 = vsel %vm1684, %v2097, %v2093
        %v2099 = vlaneseq
        %v2100 = vshrl.u32 %v2099, 7
        %v2101 = vsub.s32 %v1686, %v2100
        %v2102 = vrot.slane %v1429, %v2101
        %v2103 = vsel %vm1691, %v2102, %v2098
        %v2104 = vlaneseq
        %v2105 = vshrl.u32 %v2104, 7
        %v2106 = vsub.s32 %v1693, %v2105
        %v2107 = vrot.slane %v1431, %v2106
        %v2108 = vsel %vm1698, %v2107, %v2103
        %v2109 = vlaneseq
        %v2110 = vshrl.u32 %v2109, 7
        %v2111 = vsub.s32 %v1700, %v2110
        %v2112 = vrot.slane %v1433, %v2111
        %v2113 = vsel %vm1705, %v2112, %v2108
        %v2114 = vlaneseq
        %v2115 = vshrl.u32 %v2114, 7
        %v2116 = vsub.s32 %v1707, %v2115
        %v2117 = vrot.slane %v1435, %v2116
        %v2118 = vsel %vm1712, %v2117, %v2113
        %v2119 = vlaneseq
        %v2120 = vshrl.u32 %v2119, 7
        %v2121 = vsub.s32 %v1714, %v2120
        %v2122 = vrot.slane %v1437, %v2121
        %v2123 = vsel %vm1719, %v2122, %v2118
        %v2124 = vlaneseq
        %v2125 = vshrl.u32 %v2124, 7
        %v2126 = vsub.s32 %v1721, %v2125
        %v2127 = vrot.slane %v1439, %v2126
        %v2128 = vsel %vm1726, %v2127, %v2123
        %v2129 = vlaneseq
        %v2130 = vshrl.u32 %v2129, 7
        %v2131 = vsub.s32 %v1728, %v2130
        %v2132 = vrot.slane %v1441, %v2131
        %v2133 = vsel %vm1733, %v2132, %v2128
        %v2134 = vlaneseq
        %v2135 = vshrl.u32 %v2134, 7
        %v2136 = vsub.s32 %v1735, %v2135
        %v2137 = vrot.slane %v1443, %v2136
        %v2138 = vsel %vm1740, %v2137, %v2133
        %v2139 = vlaneseq
        %v2140 = vshrl.u32 %v2139, 7
        %v2141 = vsub.s32 %v1742, %v2140
        %v2142 = vrot.slane %v1445, %v2141
        %v2143 = vsel %vm1747, %v2142, %v2138
        %v2144 = vlaneseq
        %v2145 = vshrl.u32 %v2144, 7
        %v2146 = vsub.s32 %v1639, %v2145
        %v2147 = vrot.slane %v1447, %v2146
        %v2148 = vlaneseq
        %v2149 = vshrl.u32 %v2148, 7
        %v2150 = vsub.s32 %v1644, %v2149
        %v2151 = vrot.slane %v1449, %v2150
        %v2152 = vsel %vm1649, %v2151, %v2147
        %v2153 = vlaneseq
        %v2154 = vshrl.u32 %v2153, 7
        %v2155 = vsub.s32 %v1651, %v2154
        %v2156 = vrot.slane %v1451, %v2155
        %v2157 = vsel %vm1656, %v2156, %v2152
        %v2158 = vlaneseq
        %v2159 = vshrl.u32 %v2158, 7
        %v2160 = vsub.s32 %v1658, %v2159
        %v2161 = vrot.slane %v1453, %v2160
        %v2162 = vsel %vm1663, %v2161, %v2157
        %v2163 = vlaneseq
        %v2164 = vshrl.u32 %v2163, 7
        %v2165 = vsub.s32 %v1665, %v2164
        %v2166 = vrot.slane %v1455, %v2165
        %v2167 = vsel %vm1670, %v2166, %v2162
        %v2168 = vlaneseq
        %v2169 = vshrl.u32 %v2168, 7
        %v2170 = vsub.s32 %v1672, %v2169
        %v2171 = vrot.slane %v1457, %v2170
        %v2172 = vsel %vm1677, %v2171, %v2167
        %v2173 = vlaneseq
        %v2174 = vshrl.u32 %v2173, 7
        %v2175 = vsub.s32 %v1679, %v2174
        %v2176 = vrot.slane %v1459, %v2175
        %v2177 = vsel %vm1684, %v2176, %v2172
        %v2178 = vlaneseq
        %v2179 = vshrl.u32 %v2178, 7
        %v2180 = vsub.s32 %v1686, %v2179
        %v2181 = vrot.slane %v1461, %v2180
        %v2182 = vsel %vm1691, %v2181, %v2177
        %v2183 = vlaneseq
        %v2184 = vshrl.u32 %v2183, 7
        %v2185 = vsub.s32 %v1693, %v2184
        %v2186 = vrot.slane %v1463, %v2185
        %v2187 = vsel %vm1698, %v2186, %v2182
        %v2188 = vlaneseq
        %v2189 = vshrl.u32 %v2188, 7
        %v2190 = vsub.s32 %v1700, %v2189
        %v2191 = vrot.slane %v1465, %v2190
        %v2192 = vsel %vm1705, %v2191, %v2187
        %v2193 = vlaneseq
        %v2194 = vshrl.u32 %v2193, 7
        %v2195 = vsub.s32 %v1707, %v2194
        %v2196 = vrot.slane %v1467, %v2195
        %v2197 = vsel %vm1712, %v2196, %v2192
        %v2198 = vlaneseq
        %v2199 = vshrl.u32 %v2198, 7
        %v2200 = vsub.s32 %v1714, %v2199
        %v2201 = vrot.slane %v1469, %v2200
        %v2202 = vsel %vm1719, %v2201, %v2197
        %v2203 = vlaneseq
        %v2204 = vshrl.u32 %v2203, 7
        %v2205 = vsub.s32 %v1721, %v2204
        %v2206 = vrot.slane %v1471, %v2205
        %v2207 = vsel %vm1726, %v2206, %v2202
        %v2208 = vlaneseq
        %v2209 = vshrl.u32 %v2208, 7
        %v2210 = vsub.s32 %v1728, %v2209
        %v2211 = vrot.slane %v1473, %v2210
        %v2212 = vsel %vm1733, %v2211, %v2207
        %v2213 = vlaneseq
        %v2214 = vshrl.u32 %v2213, 7
        %v2215 = vsub.s32 %v1735, %v2214
        %v2216 = vrot.slane %v1475, %v2215
        %v2217 = vsel %vm1740, %v2216, %v2212
        %v2218 = vlaneseq
        %v2219 = vshrl.u32 %v2218, 7
        %v2220 = vsub.s32 %v1742, %v2219
        %v2221 = vrot.slane %v1477, %v2220
        %v2222 = vsel %vm1747, %v2221, %v2217
        %v2223 = vlaneseq
        %v2224 = vshrl.u32 %v2223, 7
        %v2225 = vsub.s32 %v1639, %v2224
        %v2226 = vrot.slane %v1479, %v2225
        %v2227 = vlaneseq
        %v2228 = vshrl.u32 %v2227, 7
        %v2229 = vsub.s32 %v1644, %v2228
        %v2230 = vrot.slane %v1481, %v2229
        %v2231 = vsel %vm1649, %v2230, %v2226
        %v2232 = vlaneseq
        %v2233 = vshrl.u32 %v2232, 7
        %v2234 = vsub.s32 %v1651, %v2233
        %v2235 = vrot.slane %v1483, %v2234
        %v2236 = vsel %vm1656, %v2235, %v2231
        %v2237 = vlaneseq
        %v2238 = vshrl.u32 %v2237, 7
        %v2239 = vsub.s32 %v1658, %v2238
        %v2240 = vrot.slane %v1485, %v2239
        %v2241 = vsel %vm1663, %v2240, %v2236
        %v2242 = vlaneseq
        %v2243 = vshrl.u32 %v2242, 7
        %v2244 = vsub.s32 %v1665, %v2243
        %v2245 = vrot.slane %v1487, %v2244
        %v2246 = vsel %vm1670, %v2245, %v2241
        %v2247 = vlaneseq
        %v2248 = vshrl.u32 %v2247, 7
        %v2249 = vsub.s32 %v1672, %v2248
        %v2250 = vrot.slane %v1489, %v2249
        %v2251 = vsel %vm1677, %v2250, %v2246
        %v2252 = vlaneseq
        %v2253 = vshrl.u32 %v2252, 7
        %v2254 = vsub.s32 %v1679, %v2253
        %v2255 = vrot.slane %v1491, %v2254
        %v2256 = vsel %vm1684, %v2255, %v2251
        %v2257 = vlaneseq
        %v2258 = vshrl.u32 %v2257, 7
        %v2259 = vsub.s32 %v1686, %v2258
        %v2260 = vrot.slane %v1493, %v2259
        %v2261 = vsel %vm1691, %v2260, %v2256
        %v2262 = vlaneseq
        %v2263 = vshrl.u32 %v2262, 7
        %v2264 = vsub.s32 %v1693, %v2263
        %v2265 = vrot.slane %v1495, %v2264
        %v2266 = vsel %vm1698, %v2265, %v2261
        %v2267 = vlaneseq
        %v2268 = vshrl.u32 %v2267, 7
        %v2269 = vsub.s32 %v1700, %v2268
        %v2270 = vrot.slane %v1497, %v2269
        %v2271 = vsel %vm1705, %v2270, %v2266
        %v2272 = vlaneseq
        %v2273 = vshrl.u32 %v2272, 7
        %v2274 = vsub.s32 %v1707, %v2273
        %v2275 = vrot.slane %v1499, %v2274
        %v2276 = vsel %vm1712, %v2275, %v2271
        %v2277 = vlaneseq
        %v2278 = vshrl.u32 %v2277, 7
        %v2279 = vsub.s32 %v1714, %v2278
        %v2280 = vrot.slane %v1501, %v2279
        %v2281 = vsel %vm1719, %v2280, %v2276
        %v2282 = vlaneseq
        %v2283 = vshrl.u32 %v2282, 7
        %v2284 = vsub.s32 %v1721, %v2283
        %v2285 = vrot.slane %v1503, %v2284
        %v2286 = vsel %vm1726, %v2285, %v2281
        %v2287 = vlaneseq
        %v2288 = vshrl.u32 %v2287, 7
        %v2289 = vsub.s32 %v1728, %v2288
        %v2290 = vrot.slane %v1505, %v2289
        %v2291 = vsel %vm1733, %v2290, %v2286
        %v2292 = vlaneseq
        %v2293 = vshrl.u32 %v2292, 7
        %v2294 = vsub.s32 %v1735, %v2293
        %v2295 = vrot.slane %v1507, %v2294
        %v2296 = vsel %vm1740, %v2295, %v2291
        %v2297 = vlaneseq
        %v2298 = vshrl.u32 %v2297, 7
        %v2299 = vsub.s32 %v1742, %v2298
        %v2300 = vrot.slane %v1509, %v2299
        %v2301 = vsel %vm1747, %v2300, %v2296
        %vm2302 = vcmask 1041409
        %v2303 = vsel %vm2302, %v1827, %v1748
        %vm2304 = vcmask 1042434
        %v2305 = vsel %vm2304, %v1906, %v2303
        %vm2306 = vcmask 1043459
        %v2307 = vsel %vm2306, %v1985, %v2305
        %vm2308 = vcmask 1044484
        %v2309 = vsel %vm2308, %v2064, %v2307
        %vm2310 = vcmask 1045509
        %v2311 = vsel %vm2310, %v2143, %v2309
        %vm2312 = vcmask 1046534
        %v2313 = vsel %vm2312, %v2222, %v2311
        %vm2314 = vcmask 1047559
        %v2315 = vsel %vm2314, %v2301, %v2313
        %2317 = vmax.xlane.f32.xlu0 %v2315
        %v2318 = vpop.xlane.xlu0 %2317
        %v2320 = vlaneseq
        %v2321 = vshrl.u32 %v2320, 7
        %v2322 = vsub.s32 0, %v2321
        %v2323 = vrot.slane %v2318, %v2322
        %v2324 = vlaneseq
        %v2325 = vshrl.u32 %v2324, 7
        %v2326 = vsub.s32 1, %v2325
        %v2327 = vrot.slane %v2318, %v2326
        %v2328 = vlaneseq
        %v2329 = vshrl.u32 %v2328, 7
        %v2330 = vsub.s32 2, %v2329
        %v2331 = vrot.slane %v2318, %v2330
        %v2332 = vlaneseq
        %v2333 = vshrl.u32 %v2332, 7
        %v2334 = vsub.s32 3, %v2333
        %v2335 = vrot.slane %v2318, %v2334
        %v2336 = vlaneseq
        %v2337 = vshrl.u32 %v2336, 7
        %v2338 = vsub.s32 4, %v2337
        %v2339 = vrot.slane %v2318, %v2338
        %v2340 = vlaneseq
        %v2341 = vshrl.u32 %v2340, 7
        %v2342 = vsub.s32 5, %v2341
        %v2343 = vrot.slane %v2318, %v2342
        %v2344 = vlaneseq
        %v2345 = vshrl.u32 %v2344, 7
        %v2346 = vsub.s32 6, %v2345
        %v2347 = vrot.slane %v2318, %v2346
        %v2348 = vlaneseq
        %v2349 = vshrl.u32 %v2348, 7
        %v2350 = vsub.s32 7, %v2349
        %v2351 = vrot.slane %v2318, %v2350
        %v2360 = vsub.f32 %v1255, %v2323
        %v2361 = vsub.f32 %v1257, %v2323
        %v2362 = vsub.f32 %v1259, %v2323
        %v2363 = vsub.f32 %v1261, %v2323
        %v2364 = vsub.f32 %v1263, %v2323
        %v2365 = vsub.f32 %v1265, %v2323
        %v2366 = vsub.f32 %v1267, %v2323
        %v2367 = vsub.f32 %v1269, %v2323
        %v2368 = vsub.f32 %v1271, %v2323
        %v2369 = vsub.f32 %v1273, %v2323
        %v2370 = vsub.f32 %v1275, %v2323
        %v2371 = vsub.f32 %v1277, %v2323
        %v2372 = vsub.f32 %v1279, %v2323
        %v2373 = vsub.f32 %v1281, %v2323
        %v2374 = vsub.f32 %v1283, %v2323
        %v2375 = vsub.f32 %v1285, %v2323
        %v2376 = vsub.f32 %v1287, %v2327
        %v2377 = vsub.f32 %v1289, %v2327
        %v2378 = vsub.f32 %v1291, %v2327
        %v2379 = vsub.f32 %v1293, %v2327
        %v2380 = vsub.f32 %v1295, %v2327
        %v2381 = vsub.f32 %v1297, %v2327
        %v2382 = vsub.f32 %v1299, %v2327
        %v2383 = vsub.f32 %v1301, %v2327
        %v2384 = vsub.f32 %v1303, %v2327
        %v2385 = vsub.f32 %v1305, %v2327
        %v2386 = vsub.f32 %v1307, %v2327
        %v2387 = vsub.f32 %v1309, %v2327
        %v2388 = vsub.f32 %v1311, %v2327
        %v2389 = vsub.f32 %v1313, %v2327
        %v2390 = vsub.f32 %v1315, %v2327
        %v2391 = vsub.f32 %v1317, %v2327
        %v2392 = vsub.f32 %v1319, %v2331
        %v2393 = vsub.f32 %v1321, %v2331
        %v2394 = vsub.f32 %v1323, %v2331
        %v2395 = vsub.f32 %v1325, %v2331
        %v2396 = vsub.f32 %v1327, %v2331
        %v2397 = vsub.f32 %v1329, %v2331
        %v2398 = vsub.f32 %v1331, %v2331
        %v2399 = vsub.f32 %v1333, %v2331
        %v2400 = vsub.f32 %v1335, %v2331
        %v2401 = vsub.f32 %v1337, %v2331
        %v2402 = vsub.f32 %v1339, %v2331
        %v2403 = vsub.f32 %v1341, %v2331
        %v2404 = vsub.f32 %v1343, %v2331
        %v2405 = vsub.f32 %v1345, %v2331
        %v2406 = vsub.f32 %v1347, %v2331
        %v2407 = vsub.f32 %v1349, %v2331
        %v2408 = vsub.f32 %v1351, %v2335
        %v2409 = vsub.f32 %v1353, %v2335
        %v2410 = vsub.f32 %v1355, %v2335
        %v2411 = vsub.f32 %v1357, %v2335
        %v2412 = vsub.f32 %v1359, %v2335
        %v2413 = vsub.f32 %v1361, %v2335
        %v2414 = vsub.f32 %v1363, %v2335
        %v2415 = vsub.f32 %v1365, %v2335
        %v2416 = vsub.f32 %v1367, %v2335
        %v2417 = vsub.f32 %v1369, %v2335
        %v2418 = vsub.f32 %v1371, %v2335
        %v2419 = vsub.f32 %v1373, %v2335
        %v2420 = vsub.f32 %v1375, %v2335
        %v2421 = vsub.f32 %v1377, %v2335
        %v2422 = vsub.f32 %v1379, %v2335
        %v2423 = vsub.f32 %v1381, %v2335
        %v2424 = vsub.f32 %v1383, %v2339
        %v2425 = vsub.f32 %v1385, %v2339
        %v2426 = vsub.f32 %v1387, %v2339
        %v2427 = vsub.f32 %v1389, %v2339
        %v2428 = vsub.f32 %v1391, %v2339
        %v2429 = vsub.f32 %v1393, %v2339
        %v2430 = vsub.f32 %v1395, %v2339
        %v2431 = vsub.f32 %v1397, %v2339
        %v2432 = vsub.f32 %v1399, %v2339
        %v2433 = vsub.f32 %v1401, %v2339
        %v2434 = vsub.f32 %v1403, %v2339
        %v2435 = vsub.f32 %v1405, %v2339
        %v2436 = vsub.f32 %v1407, %v2339
        %v2437 = vsub.f32 %v1409, %v2339
        %v2438 = vsub.f32 %v1411, %v2339
        %v2439 = vsub.f32 %v1413, %v2339
        %v2440 = vsub.f32 %v1415, %v2343
        %v2441 = vsub.f32 %v1417, %v2343
        %v2442 = vsub.f32 %v1419, %v2343
        %v2443 = vsub.f32 %v1421, %v2343
        %v2444 = vsub.f32 %v1423, %v2343
        %v2445 = vsub.f32 %v1425, %v2343
        %v2446 = vsub.f32 %v1427, %v2343
        %v2447 = vsub.f32 %v1429, %v2343
        %v2448 = vsub.f32 %v1431, %v2343
        %v2449 = vsub.f32 %v1433, %v2343
        %v2450 = vsub.f32 %v1435, %v2343
        %v2451 = vsub.f32 %v1437, %v2343
        %v2452 = vsub.f32 %v1439, %v2343
        %v2453 = vsub.f32 %v1441, %v2343
        %v2454 = vsub.f32 %v1443, %v2343
        %v2455 = vsub.f32 %v1445, %v2343
        %v2456 = vsub.f32 %v1447, %v2347
        %v2457 = vsub.f32 %v1449, %v2347
        %v2458 = vsub.f32 %v1451, %v2347
        %v2459 = vsub.f32 %v1453, %v2347
        %v2460 = vsub.f32 %v1455, %v2347
        %v2461 = vsub.f32 %v1457, %v2347
        %v2462 = vsub.f32 %v1459, %v2347
        %v2463 = vsub.f32 %v1461, %v2347
        %v2464 = vsub.f32 %v1463, %v2347
        %v2465 = vsub.f32 %v1465, %v2347
        %v2466 = vsub.f32 %v1467, %v2347
        %v2467 = vsub.f32 %v1469, %v2347
        %v2468 = vsub.f32 %v1471, %v2347
        %v2469 = vsub.f32 %v1473, %v2347
        %v2470 = vsub.f32 %v1475, %v2347
        %v2471 = vsub.f32 %v1477, %v2347
        %v2472 = vsub.f32 %v1479, %v2351
        %v2473 = vsub.f32 %v1481, %v2351
        %v2474 = vsub.f32 %v1483, %v2351
        %v2475 = vsub.f32 %v1485, %v2351
        %v2476 = vsub.f32 %v1487, %v2351
        %v2477 = vsub.f32 %v1489, %v2351
        %v2478 = vsub.f32 %v1491, %v2351
        %v2479 = vsub.f32 %v1493, %v2351
        %v2480 = vsub.f32 %v1495, %v2351
        %v2481 = vsub.f32 %v1497, %v2351
        %v2482 = vsub.f32 %v1499, %v2351
        %v2483 = vsub.f32 %v1501, %v2351
        %v2484 = vsub.f32 %v1503, %v2351
        %v2485 = vsub.f32 %v1505, %v2351
        %v2486 = vsub.f32 %v1507, %v2351
        %v2487 = vsub.f32 %v1509, %v2351
        %v2488 = vmul.f32 %v2360, 1.442695
        %v2489 = vpow.pop %v2488
        %v2490 = vmul.f32 %v2361, 1.442695
        %v2491 = vpow.pop %v2490
        %v2492 = vmul.f32 %v2362, 1.442695
        %v2493 = vpow.pop %v2492
        %v2494 = vmul.f32 %v2363, 1.442695
        %v2495 = vpow.pop %v2494
        %v2496 = vmul.f32 %v2364, 1.442695
        %v2497 = vpow.pop %v2496
        %v2498 = vmul.f32 %v2365, 1.442695
        %v2499 = vpow.pop %v2498
        %v2500 = vmul.f32 %v2366, 1.442695
        %v2501 = vpow.pop %v2500
        %v2502 = vmul.f32 %v2367, 1.442695
        %v2503 = vpow.pop %v2502
        %v2504 = vmul.f32 %v2368, 1.442695
        %v2505 = vpow.pop %v2504
        %v2506 = vmul.f32 %v2369, 1.442695
        %v2507 = vpow.pop %v2506
        %v2508 = vmul.f32 %v2370, 1.442695
        %v2509 = vpow.pop %v2508
        %v2510 = vmul.f32 %v2371, 1.442695
        %v2511 = vpow.pop %v2510
        %v2512 = vmul.f32 %v2372, 1.442695
        %v2513 = vpow.pop %v2512
        %v2514 = vmul.f32 %v2373, 1.442695
        %v2515 = vpow.pop %v2514
        %v2516 = vmul.f32 %v2374, 1.442695
        %v2517 = vpow.pop %v2516
        %v2518 = vmul.f32 %v2375, 1.442695
        %v2519 = vpow.pop %v2518
        %v2520 = vmul.f32 %v2376, 1.442695
        %v2521 = vpow.pop %v2520
        %v2522 = vmul.f32 %v2377, 1.442695
        %v2523 = vpow.pop %v2522
        %v2524 = vmul.f32 %v2378, 1.442695
        %v2525 = vpow.pop %v2524
        %v2526 = vmul.f32 %v2379, 1.442695
        %v2527 = vpow.pop %v2526
        %v2528 = vmul.f32 %v2380, 1.442695
        %v2529 = vpow.pop %v2528
        %v2530 = vmul.f32 %v2381, 1.442695
        %v2531 = vpow.pop %v2530
        %v2532 = vmul.f32 %v2382, 1.442695
        %v2533 = vpow.pop %v2532
        %v2534 = vmul.f32 %v2383, 1.442695
        %v2535 = vpow.pop %v2534
        %v2536 = vmul.f32 %v2384, 1.442695
        %v2537 = vpow.pop %v2536
        %v2538 = vmul.f32 %v2385, 1.442695
        %v2539 = vpow.pop %v2538
        %v2540 = vmul.f32 %v2386, 1.442695
        %v2541 = vpow.pop %v2540
        %v2542 = vmul.f32 %v2387, 1.442695
        %v2543 = vpow.pop %v2542
        %v2544 = vmul.f32 %v2388, 1.442695
        %v2545 = vpow.pop %v2544
        %v2546 = vmul.f32 %v2389, 1.442695
        %v2547 = vpow.pop %v2546
        %v2548 = vmul.f32 %v2390, 1.442695
        %v2549 = vpow.pop %v2548
        %v2550 = vmul.f32 %v2391, 1.442695
        %v2551 = vpow.pop %v2550
        %v2552 = vmul.f32 %v2392, 1.442695
        %v2553 = vpow.pop %v2552
        %v2554 = vmul.f32 %v2393, 1.442695
        %v2555 = vpow.pop %v2554
        %v2556 = vmul.f32 %v2394, 1.442695
        %v2557 = vpow.pop %v2556
        %v2558 = vmul.f32 %v2395, 1.442695
        %v2559 = vpow.pop %v2558
        %v2560 = vmul.f32 %v2396, 1.442695
        %v2561 = vpow.pop %v2560
        %v2562 = vmul.f32 %v2397, 1.442695
        %v2563 = vpow.pop %v2562
        %v2564 = vmul.f32 %v2398, 1.442695
        %v2565 = vpow.pop %v2564
        %v2566 = vmul.f32 %v2399, 1.442695
        %v2567 = vpow.pop %v2566
        %v2568 = vmul.f32 %v2400, 1.442695
        %v2569 = vpow.pop %v2568
        %v2570 = vmul.f32 %v2401, 1.442695
        %v2571 = vpow.pop %v2570
        %v2572 = vmul.f32 %v2402, 1.442695
        %v2573 = vpow.pop %v2572
        %v2574 = vmul.f32 %v2403, 1.442695
        %v2575 = vpow.pop %v2574
        %v2576 = vmul.f32 %v2404, 1.442695
        %v2577 = vpow.pop %v2576
        %v2578 = vmul.f32 %v2405, 1.442695
        %v2579 = vpow.pop %v2578
        %v2580 = vmul.f32 %v2406, 1.442695
        %v2581 = vpow.pop %v2580
        %v2582 = vmul.f32 %v2407, 1.442695
        %v2583 = vpow.pop %v2582
        %v2584 = vmul.f32 %v2408, 1.442695
        %v2585 = vpow.pop %v2584
        %v2586 = vmul.f32 %v2409, 1.442695
        %v2587 = vpow.pop %v2586
        %v2588 = vmul.f32 %v2410, 1.442695
        %v2589 = vpow.pop %v2588
        %v2590 = vmul.f32 %v2411, 1.442695
        %v2591 = vpow.pop %v2590
        %v2592 = vmul.f32 %v2412, 1.442695
        %v2593 = vpow.pop %v2592
        %v2594 = vmul.f32 %v2413, 1.442695
        %v2595 = vpow.pop %v2594
        %v2596 = vmul.f32 %v2414, 1.442695
        %v2597 = vpow.pop %v2596
        %v2598 = vmul.f32 %v2415, 1.442695
        %v2599 = vpow.pop %v2598
        %v2600 = vmul.f32 %v2416, 1.442695
        %v2601 = vpow.pop %v2600
        %v2602 = vmul.f32 %v2417, 1.442695
        %v2603 = vpow.pop %v2602
        %v2604 = vmul.f32 %v2418, 1.442695
        %v2605 = vpow.pop %v2604
        %v2606 = vmul.f32 %v2419, 1.442695
        %v2607 = vpow.pop %v2606
        %v2608 = vmul.f32 %v2420, 1.442695
        %v2609 = vpow.pop %v2608
        %v2610 = vmul.f32 %v2421, 1.442695
        %v2611 = vpow.pop %v2610
        %v2612 = vmul.f32 %v2422, 1.442695
        %v2613 = vpow.pop %v2612
        %v2614 = vmul.f32 %v2423, 1.442695
        %v2615 = vpow.pop %v2614
        %v2616 = vmul.f32 %v2424, 1.442695
        %v2617 = vpow.pop %v2616
        %v2618 = vmul.f32 %v2425, 1.442695
        %v2619 = vpow.pop %v2618
        %v2620 = vmul.f32 %v2426, 1.442695
        %v2621 = vpow.pop %v2620
        %v2622 = vmul.f32 %v2427, 1.442695
        %v2623 = vpow.pop %v2622
        %v2624 = vmul.f32 %v2428, 1.442695
        %v2625 = vpow.pop %v2624
        %v2626 = vmul.f32 %v2429, 1.442695
        %v2627 = vpow.pop %v2626
        %v2628 = vmul.f32 %v2430, 1.442695
        %v2629 = vpow.pop %v2628
        %v2630 = vmul.f32 %v2431, 1.442695
        %v2631 = vpow.pop %v2630
        %v2632 = vmul.f32 %v2432, 1.442695
        %v2633 = vpow.pop %v2632
        %v2634 = vmul.f32 %v2433, 1.442695
        %v2635 = vpow.pop %v2634
        %v2636 = vmul.f32 %v2434, 1.442695
        %v2637 = vpow.pop %v2636
        %v2638 = vmul.f32 %v2435, 1.442695
        %v2639 = vpow.pop %v2638
        %v2640 = vmul.f32 %v2436, 1.442695
        %v2641 = vpow.pop %v2640
        %v2642 = vmul.f32 %v2437, 1.442695
        %v2643 = vpow.pop %v2642
        %v2644 = vmul.f32 %v2438, 1.442695
        %v2645 = vpow.pop %v2644
        %v2646 = vmul.f32 %v2439, 1.442695
        %v2647 = vpow.pop %v2646
        %v2648 = vmul.f32 %v2440, 1.442695
        %v2649 = vpow.pop %v2648
        %v2650 = vmul.f32 %v2441, 1.442695
        %v2651 = vpow.pop %v2650
        %v2652 = vmul.f32 %v2442, 1.442695
        %v2653 = vpow.pop %v2652
        %v2654 = vmul.f32 %v2443, 1.442695
        %v2655 = vpow.pop %v2654
        %v2656 = vmul.f32 %v2444, 1.442695
        %v2657 = vpow.pop %v2656
        %v2658 = vmul.f32 %v2445, 1.442695
        %v2659 = vpow.pop %v2658
        %v2660 = vmul.f32 %v2446, 1.442695
        %v2661 = vpow.pop %v2660
        %v2662 = vmul.f32 %v2447, 1.442695
        %v2663 = vpow.pop %v2662
        %v2664 = vmul.f32 %v2448, 1.442695
        %v2665 = vpow.pop %v2664
        %v2666 = vmul.f32 %v2449, 1.442695
        %v2667 = vpow.pop %v2666
        %v2668 = vmul.f32 %v2450, 1.442695
        %v2669 = vpow.pop %v2668
        %v2670 = vmul.f32 %v2451, 1.442695
        %v2671 = vpow.pop %v2670
        %v2672 = vmul.f32 %v2452, 1.442695
        %v2673 = vpow.pop %v2672
        %v2674 = vmul.f32 %v2453, 1.442695
        %v2675 = vpow.pop %v2674
        %v2676 = vmul.f32 %v2454, 1.442695
        %v2677 = vpow.pop %v2676
        %v2678 = vmul.f32 %v2455, 1.442695
        %v2679 = vpow.pop %v2678
        %v2680 = vmul.f32 %v2456, 1.442695
        %v2681 = vpow.pop %v2680
        %v2682 = vmul.f32 %v2457, 1.442695
        %v2683 = vpow.pop %v2682
        %v2684 = vmul.f32 %v2458, 1.442695
        %v2685 = vpow.pop %v2684
        %v2686 = vmul.f32 %v2459, 1.442695
        %v2687 = vpow.pop %v2686
        %v2688 = vmul.f32 %v2460, 1.442695
        %v2689 = vpow.pop %v2688
        %v2690 = vmul.f32 %v2461, 1.442695
        %v2691 = vpow.pop %v2690
        %v2692 = vmul.f32 %v2462, 1.442695
        %v2693 = vpow.pop %v2692
        %v2694 = vmul.f32 %v2463, 1.442695
        %v2695 = vpow.pop %v2694
        %v2696 = vmul.f32 %v2464, 1.442695
        %v2697 = vpow.pop %v2696
        %v2698 = vmul.f32 %v2465, 1.442695
        %v2699 = vpow.pop %v2698
        %v2700 = vmul.f32 %v2466, 1.442695
        %v2701 = vpow.pop %v2700
        %v2702 = vmul.f32 %v2467, 1.442695
        %v2703 = vpow.pop %v2702
        %v2704 = vmul.f32 %v2468, 1.442695
        %v2705 = vpow.pop %v2704
        %v2706 = vmul.f32 %v2469, 1.442695
        %v2707 = vpow.pop %v2706
        %v2708 = vmul.f32 %v2470, 1.442695
        %v2709 = vpow.pop %v2708
        %v2710 = vmul.f32 %v2471, 1.442695
        %v2711 = vpow.pop %v2710
        %v2712 = vmul.f32 %v2472, 1.442695
        %v2713 = vpow.pop %v2712
        %v2714 = vmul.f32 %v2473, 1.442695
        %v2715 = vpow.pop %v2714
        %v2716 = vmul.f32 %v2474, 1.442695
        %v2717 = vpow.pop %v2716
        %v2718 = vmul.f32 %v2475, 1.442695
        %v2719 = vpow.pop %v2718
        %v2720 = vmul.f32 %v2476, 1.442695
        %v2721 = vpow.pop %v2720
        %v2722 = vmul.f32 %v2477, 1.442695
        %v2723 = vpow.pop %v2722
        %v2724 = vmul.f32 %v2478, 1.442695
        %v2725 = vpow.pop %v2724
        %v2726 = vmul.f32 %v2479, 1.442695
        %v2727 = vpow.pop %v2726
        %v2728 = vmul.f32 %v2480, 1.442695
        %v2729 = vpow.pop %v2728
        %v2730 = vmul.f32 %v2481, 1.442695
        %v2731 = vpow.pop %v2730
        %v2732 = vmul.f32 %v2482, 1.442695
        %v2733 = vpow.pop %v2732
        %v2734 = vmul.f32 %v2483, 1.442695
        %v2735 = vpow.pop %v2734
        %v2736 = vmul.f32 %v2484, 1.442695
        %v2737 = vpow.pop %v2736
        %v2738 = vmul.f32 %v2485, 1.442695
        %v2739 = vpow.pop %v2738
        %v2740 = vmul.f32 %v2486, 1.442695
        %v2741 = vpow.pop %v2740
        %v2742 = vmul.f32 %v2487, 1.442695
        %v2743 = vpow.pop %v2742
        %v2745 = vlaneseq
        %v2746 = vshrl.u32 %v2745, 7
        %v2747 = vsub.s32 0, %v2746
        %v2748 = vrot.slane %v451, %v2747
        %2750 = vbcast.lane.b32.xlu0 %v2748, 256
        %v2751 = vpop.permute.xlu0 %2750
        %s2753 = sor.u32 256, 8
        %2754 = vbcast.lane.b32.xlu0 %v2748, %s2753
        %v2755 = vpop.permute.xlu0 %2754
        %s2757 = sor.u32 256, 16
        %2758 = vbcast.lane.b32.xlu0 %v2748, %s2757
        %v2759 = vpop.permute.xlu0 %2758
        %s2761 = sor.u32 256, 24
        %2762 = vbcast.lane.b32.xlu0 %v2748, %s2761
        %v2763 = vpop.permute.xlu0 %2762
        %s2765 = sor.u32 256, 32
        %2766 = vbcast.lane.b32.xlu0 %v2748, %s2765
        %v2767 = vpop.permute.xlu0 %2766
        %s2769 = sor.u32 256, 40
        %2770 = vbcast.lane.b32.xlu0 %v2748, %s2769
        %v2771 = vpop.permute.xlu0 %2770
        %s2773 = sor.u32 256, 48
        %2774 = vbcast.lane.b32.xlu0 %v2748, %s2773
        %v2775 = vpop.permute.xlu0 %2774
        %s2777 = sor.u32 256, 56
        %2778 = vbcast.lane.b32.xlu0 %v2748, %s2777
        %v2779 = vpop.permute.xlu0 %2778
        %s2781 = sor.u32 256, 64
        %2782 = vbcast.lane.b32.xlu0 %v2748, %s2781
        %v2783 = vpop.permute.xlu0 %2782
        %s2785 = sor.u32 256, 72
        %2786 = vbcast.lane.b32.xlu0 %v2748, %s2785
        %v2787 = vpop.permute.xlu0 %2786
        %s2789 = sor.u32 256, 80
        %2790 = vbcast.lane.b32.xlu0 %v2748, %s2789
        %v2791 = vpop.permute.xlu0 %2790
        %s2793 = sor.u32 256, 88
        %2794 = vbcast.lane.b32.xlu0 %v2748, %s2793
        %v2795 = vpop.permute.xlu0 %2794
        %s2797 = sor.u32 256, 96
        %2798 = vbcast.lane.b32.xlu0 %v2748, %s2797
        %v2799 = vpop.permute.xlu0 %2798
        %s2801 = sor.u32 256, 104
        %2802 = vbcast.lane.b32.xlu0 %v2748, %s2801
        %v2803 = vpop.permute.xlu0 %2802
        %s2805 = sor.u32 256, 112
        %2806 = vbcast.lane.b32.xlu0 %v2748, %s2805
        %v2807 = vpop.permute.xlu0 %2806
        %s2809 = sor.u32 256, 120
        %2810 = vbcast.lane.b32.xlu0 %v2748, %s2809
        %v2811 = vpop.permute.xlu0 %2810
        %v2828 = vmul.f32 %v2489, %v2751
        %v2829 = vmul.f32 %v2491, %v2755
        %v2830 = vmul.f32 %v2493, %v2759
        %v2831 = vmul.f32 %v2495, %v2763
        %v2832 = vmul.f32 %v2497, %v2767
        %v2833 = vmul.f32 %v2499, %v2771
        %v2834 = vmul.f32 %v2501, %v2775
        %v2835 = vmul.f32 %v2503, %v2779
        %v2836 = vmul.f32 %v2505, %v2783
        %v2837 = vmul.f32 %v2507, %v2787
        %v2838 = vmul.f32 %v2509, %v2791
        %v2839 = vmul.f32 %v2511, %v2795
        %v2840 = vmul.f32 %v2513, %v2799
        %v2841 = vmul.f32 %v2515, %v2803
        %v2842 = vmul.f32 %v2517, %v2807
        %v2843 = vmul.f32 %v2519, %v2811
        %v2844 = vmul.f32 %v2521, %v2751
        %v2845 = vmul.f32 %v2523, %v2755
        %v2846 = vmul.f32 %v2525, %v2759
        %v2847 = vmul.f32 %v2527, %v2763
        %v2848 = vmul.f32 %v2529, %v2767
        %v2849 = vmul.f32 %v2531, %v2771
        %v2850 = vmul.f32 %v2533, %v2775
        %v2851 = vmul.f32 %v2535, %v2779
        %v2852 = vmul.f32 %v2537, %v2783
        %v2853 = vmul.f32 %v2539, %v2787
        %v2854 = vmul.f32 %v2541, %v2791
        %v2855 = vmul.f32 %v2543, %v2795
        %v2856 = vmul.f32 %v2545, %v2799
        %v2857 = vmul.f32 %v2547, %v2803
        %v2858 = vmul.f32 %v2549, %v2807
        %v2859 = vmul.f32 %v2551, %v2811
        %v2860 = vmul.f32 %v2553, %v2751
        %v2861 = vmul.f32 %v2555, %v2755
        %v2862 = vmul.f32 %v2557, %v2759
        %v2863 = vmul.f32 %v2559, %v2763
        %v2864 = vmul.f32 %v2561, %v2767
        %v2865 = vmul.f32 %v2563, %v2771
        %v2866 = vmul.f32 %v2565, %v2775
        %v2867 = vmul.f32 %v2567, %v2779
        %v2868 = vmul.f32 %v2569, %v2783
        %v2869 = vmul.f32 %v2571, %v2787
        %v2870 = vmul.f32 %v2573, %v2791
        %v2871 = vmul.f32 %v2575, %v2795
        %v2872 = vmul.f32 %v2577, %v2799
        %v2873 = vmul.f32 %v2579, %v2803
        %v2874 = vmul.f32 %v2581, %v2807
        %v2875 = vmul.f32 %v2583, %v2811
        %v2876 = vmul.f32 %v2585, %v2751
        %v2877 = vmul.f32 %v2587, %v2755
        %v2878 = vmul.f32 %v2589, %v2759
        %v2879 = vmul.f32 %v2591, %v2763
        %v2880 = vmul.f32 %v2593, %v2767
        %v2881 = vmul.f32 %v2595, %v2771
        %v2882 = vmul.f32 %v2597, %v2775
        %v2883 = vmul.f32 %v2599, %v2779
        %v2884 = vmul.f32 %v2601, %v2783
        %v2885 = vmul.f32 %v2603, %v2787
        %v2886 = vmul.f32 %v2605, %v2791
        %v2887 = vmul.f32 %v2607, %v2795
        %v2888 = vmul.f32 %v2609, %v2799
        %v2889 = vmul.f32 %v2611, %v2803
        %v2890 = vmul.f32 %v2613, %v2807
        %v2891 = vmul.f32 %v2615, %v2811
        %v2892 = vmul.f32 %v2617, %v2751
        %v2893 = vmul.f32 %v2619, %v2755
        %v2894 = vmul.f32 %v2621, %v2759
        %v2895 = vmul.f32 %v2623, %v2763
        %v2896 = vmul.f32 %v2625, %v2767
        %v2897 = vmul.f32 %v2627, %v2771
        %v2898 = vmul.f32 %v2629, %v2775
        %v2899 = vmul.f32 %v2631, %v2779
        %v2900 = vmul.f32 %v2633, %v2783
        %v2901 = vmul.f32 %v2635, %v2787
        %v2902 = vmul.f32 %v2637, %v2791
        %v2903 = vmul.f32 %v2639, %v2795
        %v2904 = vmul.f32 %v2641, %v2799
        %v2905 = vmul.f32 %v2643, %v2803
        %v2906 = vmul.f32 %v2645, %v2807
        %v2907 = vmul.f32 %v2647, %v2811
        %v2908 = vmul.f32 %v2649, %v2751
        %v2909 = vmul.f32 %v2651, %v2755
        %v2910 = vmul.f32 %v2653, %v2759
        %v2911 = vmul.f32 %v2655, %v2763
        %v2912 = vmul.f32 %v2657, %v2767
        %v2913 = vmul.f32 %v2659, %v2771
        %v2914 = vmul.f32 %v2661, %v2775
        %v2915 = vmul.f32 %v2663, %v2779
        %v2916 = vmul.f32 %v2665, %v2783
        %v2917 = vmul.f32 %v2667, %v2787
        %v2918 = vmul.f32 %v2669, %v2791
        %v2919 = vmul.f32 %v2671, %v2795
        %v2920 = vmul.f32 %v2673, %v2799
        %v2921 = vmul.f32 %v2675, %v2803
        %v2922 = vmul.f32 %v2677, %v2807
        %v2923 = vmul.f32 %v2679, %v2811
        %v2924 = vmul.f32 %v2681, %v2751
        %v2925 = vmul.f32 %v2683, %v2755
        %v2926 = vmul.f32 %v2685, %v2759
        %v2927 = vmul.f32 %v2687, %v2763
        %v2928 = vmul.f32 %v2689, %v2767
        %v2929 = vmul.f32 %v2691, %v2771
        %v2930 = vmul.f32 %v2693, %v2775
        %v2931 = vmul.f32 %v2695, %v2779
        %v2932 = vmul.f32 %v2697, %v2783
        %v2933 = vmul.f32 %v2699, %v2787
        %v2934 = vmul.f32 %v2701, %v2791
        %v2935 = vmul.f32 %v2703, %v2795
        %v2936 = vmul.f32 %v2705, %v2799
        %v2937 = vmul.f32 %v2707, %v2803
        %v2938 = vmul.f32 %v2709, %v2807
        %v2939 = vmul.f32 %v2711, %v2811
        %v2940 = vmul.f32 %v2713, %v2751
        %v2941 = vmul.f32 %v2715, %v2755
        %v2942 = vmul.f32 %v2717, %v2759
        %v2943 = vmul.f32 %v2719, %v2763
        %v2944 = vmul.f32 %v2721, %v2767
        %v2945 = vmul.f32 %v2723, %v2771
        %v2946 = vmul.f32 %v2725, %v2775
        %v2947 = vmul.f32 %v2727, %v2779
        %v2948 = vmul.f32 %v2729, %v2783
        %v2949 = vmul.f32 %v2731, %v2787
        %v2950 = vmul.f32 %v2733, %v2791
        %v2951 = vmul.f32 %v2735, %v2795
        %v2952 = vmul.f32 %v2737, %v2799
        %v2953 = vmul.f32 %v2739, %v2803
        %v2954 = vmul.f32 %v2741, %v2807
        %v2955 = vmul.f32 %v2743, %v2811
        %3084 = vset.pattern.permute.xlu0 0
        %3085 = vperm.xlu0 %3084, %v2828
        %v3086 = vpop.permute.xlu0 %3085
        %3087 = vset.pattern.permute.xlu0 0
        %3088 = vperm.xlu0 %3087, %v2829
        %v3089 = vpop.permute.xlu0 %3088
        %3090 = vset.pattern.permute.xlu0 0
        %3091 = vperm.xlu0 %3090, %v2830
        %v3092 = vpop.permute.xlu0 %3091
        %3093 = vset.pattern.permute.xlu0 0
        %3094 = vperm.xlu0 %3093, %v2831
        %v3095 = vpop.permute.xlu0 %3094
        %3096 = vset.pattern.permute.xlu0 0
        %3097 = vperm.xlu0 %3096, %v2832
        %v3098 = vpop.permute.xlu0 %3097
        %3099 = vset.pattern.permute.xlu0 0
        %3100 = vperm.xlu0 %3099, %v2833
        %v3101 = vpop.permute.xlu0 %3100
        %3102 = vset.pattern.permute.xlu0 0
        %3103 = vperm.xlu0 %3102, %v2834
        %v3104 = vpop.permute.xlu0 %3103
        %3105 = vset.pattern.permute.xlu0 0
        %3106 = vperm.xlu0 %3105, %v2835
        %v3107 = vpop.permute.xlu0 %3106
        %3108 = vset.pattern.permute.xlu0 0
        %3109 = vperm.xlu0 %3108, %v2836
        %v3110 = vpop.permute.xlu0 %3109
        %3111 = vset.pattern.permute.xlu0 0
        %3112 = vperm.xlu0 %3111, %v2837
        %v3113 = vpop.permute.xlu0 %3112
        %3114 = vset.pattern.permute.xlu0 0
        %3115 = vperm.xlu0 %3114, %v2838
        %v3116 = vpop.permute.xlu0 %3115
        %3117 = vset.pattern.permute.xlu0 0
        %3118 = vperm.xlu0 %3117, %v2839
        %v3119 = vpop.permute.xlu0 %3118
        %3120 = vset.pattern.permute.xlu0 0
        %3121 = vperm.xlu0 %3120, %v2840
        %v3122 = vpop.permute.xlu0 %3121
        %3123 = vset.pattern.permute.xlu0 0
        %3124 = vperm.xlu0 %3123, %v2841
        %v3125 = vpop.permute.xlu0 %3124
        %3126 = vset.pattern.permute.xlu0 0
        %3127 = vperm.xlu0 %3126, %v2842
        %v3128 = vpop.permute.xlu0 %3127
        %3129 = vset.pattern.permute.xlu0 0
        %3130 = vperm.xlu0 %3129, %v2843
        %v3131 = vpop.permute.xlu0 %3130
        %3132 = vset.pattern.permute.xlu0 0
        %3133 = vperm.xlu0 %3132, %v2844
        %v3134 = vpop.permute.xlu0 %3133
        %3135 = vset.pattern.permute.xlu0 0
        %3136 = vperm.xlu0 %3135, %v2845
        %v3137 = vpop.permute.xlu0 %3136
        %3138 = vset.pattern.permute.xlu0 0
        %3139 = vperm.xlu0 %3138, %v2846
        %v3140 = vpop.permute.xlu0 %3139
        %3141 = vset.pattern.permute.xlu0 0
        %3142 = vperm.xlu0 %3141, %v2847
        %v3143 = vpop.permute.xlu0 %3142
        %3144 = vset.pattern.permute.xlu0 0
        %3145 = vperm.xlu0 %3144, %v2848
        %v3146 = vpop.permute.xlu0 %3145
        %3147 = vset.pattern.permute.xlu0 0
        %3148 = vperm.xlu0 %3147, %v2849
        %v3149 = vpop.permute.xlu0 %3148
        %3150 = vset.pattern.permute.xlu0 0
        %3151 = vperm.xlu0 %3150, %v2850
        %v3152 = vpop.permute.xlu0 %3151
        %3153 = vset.pattern.permute.xlu0 0
        %3154 = vperm.xlu0 %3153, %v2851
        %v3155 = vpop.permute.xlu0 %3154
        %3156 = vset.pattern.permute.xlu0 0
        %3157 = vperm.xlu0 %3156, %v2852
        %v3158 = vpop.permute.xlu0 %3157
        %3159 = vset.pattern.permute.xlu0 0
        %3160 = vperm.xlu0 %3159, %v2853
        %v3161 = vpop.permute.xlu0 %3160
        %3162 = vset.pattern.permute.xlu0 0
        %3163 = vperm.xlu0 %3162, %v2854
        %v3164 = vpop.permute.xlu0 %3163
        %3165 = vset.pattern.permute.xlu0 0
        %3166 = vperm.xlu0 %3165, %v2855
        %v3167 = vpop.permute.xlu0 %3166
        %3168 = vset.pattern.permute.xlu0 0
        %3169 = vperm.xlu0 %3168, %v2856
        %v3170 = vpop.permute.xlu0 %3169
        %3171 = vset.pattern.permute.xlu0 0
        %3172 = vperm.xlu0 %3171, %v2857
        %v3173 = vpop.permute.xlu0 %3172
        %3174 = vset.pattern.permute.xlu0 0
        %3175 = vperm.xlu0 %3174, %v2858
        %v3176 = vpop.permute.xlu0 %3175
        %3177 = vset.pattern.permute.xlu0 0
        %3178 = vperm.xlu0 %3177, %v2859
        %v3179 = vpop.permute.xlu0 %3178
        %3180 = vset.pattern.permute.xlu0 0
        %3181 = vperm.xlu0 %3180, %v2860
        %v3182 = vpop.permute.xlu0 %3181
        %3183 = vset.pattern.permute.xlu0 0
        %3184 = vperm.xlu0 %3183, %v2861
        %v3185 = vpop.permute.xlu0 %3184
        %3186 = vset.pattern.permute.xlu0 0
        %3187 = vperm.xlu0 %3186, %v2862
        %v3188 = vpop.permute.xlu0 %3187
        %3189 = vset.pattern.permute.xlu0 0
        %3190 = vperm.xlu0 %3189, %v2863
        %v3191 = vpop.permute.xlu0 %3190
        %3192 = vset.pattern.permute.xlu0 0
        %3193 = vperm.xlu0 %3192, %v2864
        %v3194 = vpop.permute.xlu0 %3193
        %3195 = vset.pattern.permute.xlu0 0
        %3196 = vperm.xlu0 %3195, %v2865
        %v3197 = vpop.permute.xlu0 %3196
        %3198 = vset.pattern.permute.xlu0 0
        %3199 = vperm.xlu0 %3198, %v2866
        %v3200 = vpop.permute.xlu0 %3199
        %3201 = vset.pattern.permute.xlu0 0
        %3202 = vperm.xlu0 %3201, %v2867
        %v3203 = vpop.permute.xlu0 %3202
        %3204 = vset.pattern.permute.xlu0 0
        %3205 = vperm.xlu0 %3204, %v2868
        %v3206 = vpop.permute.xlu0 %3205
        %3207 = vset.pattern.permute.xlu0 0
        %3208 = vperm.xlu0 %3207, %v2869
        %v3209 = vpop.permute.xlu0 %3208
        %3210 = vset.pattern.permute.xlu0 0
        %3211 = vperm.xlu0 %3210, %v2870
        %v3212 = vpop.permute.xlu0 %3211
        %3213 = vset.pattern.permute.xlu0 0
        %3214 = vperm.xlu0 %3213, %v2871
        %v3215 = vpop.permute.xlu0 %3214
        %3216 = vset.pattern.permute.xlu0 0
        %3217 = vperm.xlu0 %3216, %v2872
        %v3218 = vpop.permute.xlu0 %3217
        %3219 = vset.pattern.permute.xlu0 0
        %3220 = vperm.xlu0 %3219, %v2873
        %v3221 = vpop.permute.xlu0 %3220
        %3222 = vset.pattern.permute.xlu0 0
        %3223 = vperm.xlu0 %3222, %v2874
        %v3224 = vpop.permute.xlu0 %3223
        %3225 = vset.pattern.permute.xlu0 0
        %3226 = vperm.xlu0 %3225, %v2875
        %v3227 = vpop.permute.xlu0 %3226
        %3228 = vset.pattern.permute.xlu0 0
        %3229 = vperm.xlu0 %3228, %v2876
        %v3230 = vpop.permute.xlu0 %3229
        %3231 = vset.pattern.permute.xlu0 0
        %3232 = vperm.xlu0 %3231, %v2877
        %v3233 = vpop.permute.xlu0 %3232
        %3234 = vset.pattern.permute.xlu0 0
        %3235 = vperm.xlu0 %3234, %v2878
        %v3236 = vpop.permute.xlu0 %3235
        %3237 = vset.pattern.permute.xlu0 0
        %3238 = vperm.xlu0 %3237, %v2879
        %v3239 = vpop.permute.xlu0 %3238
        %3240 = vset.pattern.permute.xlu0 0
        %3241 = vperm.xlu0 %3240, %v2880
        %v3242 = vpop.permute.xlu0 %3241
        %3243 = vset.pattern.permute.xlu0 0
        %3244 = vperm.xlu0 %3243, %v2881
        %v3245 = vpop.permute.xlu0 %3244
        %3246 = vset.pattern.permute.xlu0 0
        %3247 = vperm.xlu0 %3246, %v2882
        %v3248 = vpop.permute.xlu0 %3247
        %3249 = vset.pattern.permute.xlu0 0
        %3250 = vperm.xlu0 %3249, %v2883
        %v3251 = vpop.permute.xlu0 %3250
        %3252 = vset.pattern.permute.xlu0 0
        %3253 = vperm.xlu0 %3252, %v2884
        %v3254 = vpop.permute.xlu0 %3253
        %3255 = vset.pattern.permute.xlu0 0
        %3256 = vperm.xlu0 %3255, %v2885
        %v3257 = vpop.permute.xlu0 %3256
        %3258 = vset.pattern.permute.xlu0 0
        %3259 = vperm.xlu0 %3258, %v2886
        %v3260 = vpop.permute.xlu0 %3259
        %3261 = vset.pattern.permute.xlu0 0
        %3262 = vperm.xlu0 %3261, %v2887
        %v3263 = vpop.permute.xlu0 %3262
        %3264 = vset.pattern.permute.xlu0 0
        %3265 = vperm.xlu0 %3264, %v2888
        %v3266 = vpop.permute.xlu0 %3265
        %3267 = vset.pattern.permute.xlu0 0
        %3268 = vperm.xlu0 %3267, %v2889
        %v3269 = vpop.permute.xlu0 %3268
        %3270 = vset.pattern.permute.xlu0 0
        %3271 = vperm.xlu0 %3270, %v2890
        %v3272 = vpop.permute.xlu0 %3271
        %3273 = vset.pattern.permute.xlu0 0
        %3274 = vperm.xlu0 %3273, %v2891
        %v3275 = vpop.permute.xlu0 %3274
        %3276 = vset.pattern.permute.xlu0 0
        %3277 = vperm.xlu0 %3276, %v2892
        %v3278 = vpop.permute.xlu0 %3277
        %3279 = vset.pattern.permute.xlu0 0
        %3280 = vperm.xlu0 %3279, %v2893
        %v3281 = vpop.permute.xlu0 %3280
        %3282 = vset.pattern.permute.xlu0 0
        %3283 = vperm.xlu0 %3282, %v2894
        %v3284 = vpop.permute.xlu0 %3283
        %3285 = vset.pattern.permute.xlu0 0
        %3286 = vperm.xlu0 %3285, %v2895
        %v3287 = vpop.permute.xlu0 %3286
        %3288 = vset.pattern.permute.xlu0 0
        %3289 = vperm.xlu0 %3288, %v2896
        %v3290 = vpop.permute.xlu0 %3289
        %3291 = vset.pattern.permute.xlu0 0
        %3292 = vperm.xlu0 %3291, %v2897
        %v3293 = vpop.permute.xlu0 %3292
        %3294 = vset.pattern.permute.xlu0 0
        %3295 = vperm.xlu0 %3294, %v2898
        %v3296 = vpop.permute.xlu0 %3295
        %3297 = vset.pattern.permute.xlu0 0
        %3298 = vperm.xlu0 %3297, %v2899
        %v3299 = vpop.permute.xlu0 %3298
        %3300 = vset.pattern.permute.xlu0 0
        %3301 = vperm.xlu0 %3300, %v2900
        %v3302 = vpop.permute.xlu0 %3301
        %3303 = vset.pattern.permute.xlu0 0
        %3304 = vperm.xlu0 %3303, %v2901
        %v3305 = vpop.permute.xlu0 %3304
        %3306 = vset.pattern.permute.xlu0 0
        %3307 = vperm.xlu0 %3306, %v2902
        %v3308 = vpop.permute.xlu0 %3307
        %3309 = vset.pattern.permute.xlu0 0
        %3310 = vperm.xlu0 %3309, %v2903
        %v3311 = vpop.permute.xlu0 %3310
        %3312 = vset.pattern.permute.xlu0 0
        %3313 = vperm.xlu0 %3312, %v2904
        %v3314 = vpop.permute.xlu0 %3313
        %3315 = vset.pattern.permute.xlu0 0
        %3316 = vperm.xlu0 %3315, %v2905
        %v3317 = vpop.permute.xlu0 %3316
        %3318 = vset.pattern.permute.xlu0 0
        %3319 = vperm.xlu0 %3318, %v2906
        %v3320 = vpop.permute.xlu0 %3319
        %3321 = vset.pattern.permute.xlu0 0
        %3322 = vperm.xlu0 %3321, %v2907
        %v3323 = vpop.permute.xlu0 %3322
        %3324 = vset.pattern.permute.xlu0 0
        %3325 = vperm.xlu0 %3324, %v2908
        %v3326 = vpop.permute.xlu0 %3325
        %3327 = vset.pattern.permute.xlu0 0
        %3328 = vperm.xlu0 %3327, %v2909
        %v3329 = vpop.permute.xlu0 %3328
        %3330 = vset.pattern.permute.xlu0 0
        %3331 = vperm.xlu0 %3330, %v2910
        %v3332 = vpop.permute.xlu0 %3331
        %3333 = vset.pattern.permute.xlu0 0
        %3334 = vperm.xlu0 %3333, %v2911
        %v3335 = vpop.permute.xlu0 %3334
        %3336 = vset.pattern.permute.xlu0 0
        %3337 = vperm.xlu0 %3336, %v2912
        %v3338 = vpop.permute.xlu0 %3337
        %3339 = vset.pattern.permute.xlu0 0
        %3340 = vperm.xlu0 %3339, %v2913
        %v3341 = vpop.permute.xlu0 %3340
        %3342 = vset.pattern.permute.xlu0 0
        %3343 = vperm.xlu0 %3342, %v2914
        %v3344 = vpop.permute.xlu0 %3343
        %3345 = vset.pattern.permute.xlu0 0
        %3346 = vperm.xlu0 %3345, %v2915
        %v3347 = vpop.permute.xlu0 %3346
        %3348 = vset.pattern.permute.xlu0 0
        %3349 = vperm.xlu0 %3348, %v2916
        %v3350 = vpop.permute.xlu0 %3349
        %3351 = vset.pattern.permute.xlu0 0
        %3352 = vperm.xlu0 %3351, %v2917
        %v3353 = vpop.permute.xlu0 %3352
        %3354 = vset.pattern.permute.xlu0 0
        %3355 = vperm.xlu0 %3354, %v2918
        %v3356 = vpop.permute.xlu0 %3355
        %3357 = vset.pattern.permute.xlu0 0
        %3358 = vperm.xlu0 %3357, %v2919
        %v3359 = vpop.permute.xlu0 %3358
        %3360 = vset.pattern.permute.xlu0 0
        %3361 = vperm.xlu0 %3360, %v2920
        %v3362 = vpop.permute.xlu0 %3361
        %3363 = vset.pattern.permute.xlu0 0
        %3364 = vperm.xlu0 %3363, %v2921
        %v3365 = vpop.permute.xlu0 %3364
        %3366 = vset.pattern.permute.xlu0 0
        %3367 = vperm.xlu0 %3366, %v2922
        %v3368 = vpop.permute.xlu0 %3367
        %3369 = vset.pattern.permute.xlu0 0
        %3370 = vperm.xlu0 %3369, %v2923
        %v3371 = vpop.permute.xlu0 %3370
        %3372 = vset.pattern.permute.xlu0 0
        %3373 = vperm.xlu0 %3372, %v2924
        %v3374 = vpop.permute.xlu0 %3373
        %3375 = vset.pattern.permute.xlu0 0
        %3376 = vperm.xlu0 %3375, %v2925
        %v3377 = vpop.permute.xlu0 %3376
        %3378 = vset.pattern.permute.xlu0 0
        %3379 = vperm.xlu0 %3378, %v2926
        %v3380 = vpop.permute.xlu0 %3379
        %3381 = vset.pattern.permute.xlu0 0
        %3382 = vperm.xlu0 %3381, %v2927
        %v3383 = vpop.permute.xlu0 %3382
        %3384 = vset.pattern.permute.xlu0 0
        %3385 = vperm.xlu0 %3384, %v2928
        %v3386 = vpop.permute.xlu0 %3385
        %3387 = vset.pattern.permute.xlu0 0
        %3388 = vperm.xlu0 %3387, %v2929
        %v3389 = vpop.permute.xlu0 %3388
        %3390 = vset.pattern.permute.xlu0 0
        %3391 = vperm.xlu0 %3390, %v2930
        %v3392 = vpop.permute.xlu0 %3391
        %3393 = vset.pattern.permute.xlu0 0
        %3394 = vperm.xlu0 %3393, %v2931
        %v3395 = vpop.permute.xlu0 %3394
        %3396 = vset.pattern.permute.xlu0 0
        %3397 = vperm.xlu0 %3396, %v2932
        %v3398 = vpop.permute.xlu0 %3397
        %3399 = vset.pattern.permute.xlu0 0
        %3400 = vperm.xlu0 %3399, %v2933
        %v3401 = vpop.permute.xlu0 %3400
        %3402 = vset.pattern.permute.xlu0 0
        %3403 = vperm.xlu0 %3402, %v2934
        %v3404 = vpop.permute.xlu0 %3403
        %3405 = vset.pattern.permute.xlu0 0
        %3406 = vperm.xlu0 %3405, %v2935
        %v3407 = vpop.permute.xlu0 %3406
        %3408 = vset.pattern.permute.xlu0 0
        %3409 = vperm.xlu0 %3408, %v2936
        %v3410 = vpop.permute.xlu0 %3409
        %3411 = vset.pattern.permute.xlu0 0
        %3412 = vperm.xlu0 %3411, %v2937
        %v3413 = vpop.permute.xlu0 %3412
        %3414 = vset.pattern.permute.xlu0 0
        %3415 = vperm.xlu0 %3414, %v2938
        %v3416 = vpop.permute.xlu0 %3415
        %3417 = vset.pattern.permute.xlu0 0
        %3418 = vperm.xlu0 %3417, %v2939
        %v3419 = vpop.permute.xlu0 %3418
        %3420 = vset.pattern.permute.xlu0 0
        %3421 = vperm.xlu0 %3420, %v2940
        %v3422 = vpop.permute.xlu0 %3421
        %3423 = vset.pattern.permute.xlu0 0
        %3424 = vperm.xlu0 %3423, %v2941
        %v3425 = vpop.permute.xlu0 %3424
        %3426 = vset.pattern.permute.xlu0 0
        %3427 = vperm.xlu0 %3426, %v2942
        %v3428 = vpop.permute.xlu0 %3427
        %3429 = vset.pattern.permute.xlu0 0
        %3430 = vperm.xlu0 %3429, %v2943
        %v3431 = vpop.permute.xlu0 %3430
        %3432 = vset.pattern.permute.xlu0 0
        %3433 = vperm.xlu0 %3432, %v2944
        %v3434 = vpop.permute.xlu0 %3433
        %3435 = vset.pattern.permute.xlu0 0
        %3436 = vperm.xlu0 %3435, %v2945
        %v3437 = vpop.permute.xlu0 %3436
        %3438 = vset.pattern.permute.xlu0 0
        %3439 = vperm.xlu0 %3438, %v2946
        %v3440 = vpop.permute.xlu0 %3439
        %3441 = vset.pattern.permute.xlu0 0
        %3442 = vperm.xlu0 %3441, %v2947
        %v3443 = vpop.permute.xlu0 %3442
        %3444 = vset.pattern.permute.xlu0 0
        %3445 = vperm.xlu0 %3444, %v2948
        %v3446 = vpop.permute.xlu0 %3445
        %3447 = vset.pattern.permute.xlu0 0
        %3448 = vperm.xlu0 %3447, %v2949
        %v3449 = vpop.permute.xlu0 %3448
        %3450 = vset.pattern.permute.xlu0 0
        %3451 = vperm.xlu0 %3450, %v2950
        %v3452 = vpop.permute.xlu0 %3451
        %3453 = vset.pattern.permute.xlu0 0
        %3454 = vperm.xlu0 %3453, %v2951
        %v3455 = vpop.permute.xlu0 %3454
        %3456 = vset.pattern.permute.xlu0 0
        %3457 = vperm.xlu0 %3456, %v2952
        %v3458 = vpop.permute.xlu0 %3457
        %3459 = vset.pattern.permute.xlu0 0
        %3460 = vperm.xlu0 %3459, %v2953
        %v3461 = vpop.permute.xlu0 %3460
        %3462 = vset.pattern.permute.xlu0 0
        %3463 = vperm.xlu0 %3462, %v2954
        %v3464 = vpop.permute.xlu0 %3463
        %3465 = vset.pattern.permute.xlu0 0
        %3466 = vperm.xlu0 %3465, %v2955
        %v3467 = vpop.permute.xlu0 %3466
        %v3468 = vlaneseq
        %v3469 = vshrl.u32 %v3468, 7
        %v3470 = vsub.s32 %v1639, %v3469
        %v3471 = vrot.slane %v3086, %v3470
        %v3472 = vlaneseq
        %v3473 = vshrl.u32 %v3472, 7
        %v3474 = vsub.s32 %v1644, %v3473
        %v3475 = vrot.slane %v3089, %v3474
        %v3476 = vsel %vm1649, %v3475, %v3471
        %v3477 = vlaneseq
        %v3478 = vshrl.u32 %v3477, 7
        %v3479 = vsub.s32 %v1651, %v3478
        %v3480 = vrot.slane %v3092, %v3479
        %v3481 = vsel %vm1656, %v3480, %v3476
        %v3482 = vlaneseq
        %v3483 = vshrl.u32 %v3482, 7
        %v3484 = vsub.s32 %v1658, %v3483
        %v3485 = vrot.slane %v3095, %v3484
        %v3486 = vsel %vm1663, %v3485, %v3481
        %v3487 = vlaneseq
        %v3488 = vshrl.u32 %v3487, 7
        %v3489 = vsub.s32 %v1665, %v3488
        %v3490 = vrot.slane %v3098, %v3489
        %v3491 = vsel %vm1670, %v3490, %v3486
        %v3492 = vlaneseq
        %v3493 = vshrl.u32 %v3492, 7
        %v3494 = vsub.s32 %v1672, %v3493
        %v3495 = vrot.slane %v3101, %v3494
        %v3496 = vsel %vm1677, %v3495, %v3491
        %v3497 = vlaneseq
        %v3498 = vshrl.u32 %v3497, 7
        %v3499 = vsub.s32 %v1679, %v3498
        %v3500 = vrot.slane %v3104, %v3499
        %v3501 = vsel %vm1684, %v3500, %v3496
        %v3502 = vlaneseq
        %v3503 = vshrl.u32 %v3502, 7
        %v3504 = vsub.s32 %v1686, %v3503
        %v3505 = vrot.slane %v3107, %v3504
        %v3506 = vsel %vm1691, %v3505, %v3501
        %v3507 = vlaneseq
        %v3508 = vshrl.u32 %v3507, 7
        %v3509 = vsub.s32 %v1693, %v3508
        %v3510 = vrot.slane %v3110, %v3509
        %v3511 = vsel %vm1698, %v3510, %v3506
        %v3512 = vlaneseq
        %v3513 = vshrl.u32 %v3512, 7
        %v3514 = vsub.s32 %v1700, %v3513
        %v3515 = vrot.slane %v3113, %v3514
        %v3516 = vsel %vm1705, %v3515, %v3511
        %v3517 = vlaneseq
        %v3518 = vshrl.u32 %v3517, 7
        %v3519 = vsub.s32 %v1707, %v3518
        %v3520 = vrot.slane %v3116, %v3519
        %v3521 = vsel %vm1712, %v3520, %v3516
        %v3522 = vlaneseq
        %v3523 = vshrl.u32 %v3522, 7
        %v3524 = vsub.s32 %v1714, %v3523
        %v3525 = vrot.slane %v3119, %v3524
        %v3526 = vsel %vm1719, %v3525, %v3521
        %v3527 = vlaneseq
        %v3528 = vshrl.u32 %v3527, 7
        %v3529 = vsub.s32 %v1721, %v3528
        %v3530 = vrot.slane %v3122, %v3529
        %v3531 = vsel %vm1726, %v3530, %v3526
        %v3532 = vlaneseq
        %v3533 = vshrl.u32 %v3532, 7
        %v3534 = vsub.s32 %v1728, %v3533
        %v3535 = vrot.slane %v3125, %v3534
        %v3536 = vsel %vm1733, %v3535, %v3531
        %v3537 = vlaneseq
        %v3538 = vshrl.u32 %v3537, 7
        %v3539 = vsub.s32 %v1735, %v3538
        %v3540 = vrot.slane %v3128, %v3539
        %v3541 = vsel %vm1740, %v3540, %v3536
        %v3542 = vlaneseq
        %v3543 = vshrl.u32 %v3542, 7
        %v3544 = vsub.s32 %v1742, %v3543
        %v3545 = vrot.slane %v3131, %v3544
        %v3546 = vsel %vm1747, %v3545, %v3541
        %v3547 = vlaneseq
        %v3548 = vshrl.u32 %v3547, 7
        %v3549 = vsub.s32 %v1639, %v3548
        %v3550 = vrot.slane %v3134, %v3549
        %v3551 = vlaneseq
        %v3552 = vshrl.u32 %v3551, 7
        %v3553 = vsub.s32 %v1644, %v3552
        %v3554 = vrot.slane %v3137, %v3553
        %v3555 = vsel %vm1649, %v3554, %v3550
        %v3556 = vlaneseq
        %v3557 = vshrl.u32 %v3556, 7
        %v3558 = vsub.s32 %v1651, %v3557
        %v3559 = vrot.slane %v3140, %v3558
        %v3560 = vsel %vm1656, %v3559, %v3555
        %v3561 = vlaneseq
        %v3562 = vshrl.u32 %v3561, 7
        %v3563 = vsub.s32 %v1658, %v3562
        %v3564 = vrot.slane %v3143, %v3563
        %v3565 = vsel %vm1663, %v3564, %v3560
        %v3566 = vlaneseq
        %v3567 = vshrl.u32 %v3566, 7
        %v3568 = vsub.s32 %v1665, %v3567
        %v3569 = vrot.slane %v3146, %v3568
        %v3570 = vsel %vm1670, %v3569, %v3565
        %v3571 = vlaneseq
        %v3572 = vshrl.u32 %v3571, 7
        %v3573 = vsub.s32 %v1672, %v3572
        %v3574 = vrot.slane %v3149, %v3573
        %v3575 = vsel %vm1677, %v3574, %v3570
        %v3576 = vlaneseq
        %v3577 = vshrl.u32 %v3576, 7
        %v3578 = vsub.s32 %v1679, %v3577
        %v3579 = vrot.slane %v3152, %v3578
        %v3580 = vsel %vm1684, %v3579, %v3575
        %v3581 = vlaneseq
        %v3582 = vshrl.u32 %v3581, 7
        %v3583 = vsub.s32 %v1686, %v3582
        %v3584 = vrot.slane %v3155, %v3583
        %v3585 = vsel %vm1691, %v3584, %v3580
        %v3586 = vlaneseq
        %v3587 = vshrl.u32 %v3586, 7
        %v3588 = vsub.s32 %v1693, %v3587
        %v3589 = vrot.slane %v3158, %v3588
        %v3590 = vsel %vm1698, %v3589, %v3585
        %v3591 = vlaneseq
        %v3592 = vshrl.u32 %v3591, 7
        %v3593 = vsub.s32 %v1700, %v3592
        %v3594 = vrot.slane %v3161, %v3593
        %v3595 = vsel %vm1705, %v3594, %v3590
        %v3596 = vlaneseq
        %v3597 = vshrl.u32 %v3596, 7
        %v3598 = vsub.s32 %v1707, %v3597
        %v3599 = vrot.slane %v3164, %v3598
        %v3600 = vsel %vm1712, %v3599, %v3595
        %v3601 = vlaneseq
        %v3602 = vshrl.u32 %v3601, 7
        %v3603 = vsub.s32 %v1714, %v3602
        %v3604 = vrot.slane %v3167, %v3603
        %v3605 = vsel %vm1719, %v3604, %v3600
        %v3606 = vlaneseq
        %v3607 = vshrl.u32 %v3606, 7
        %v3608 = vsub.s32 %v1721, %v3607
        %v3609 = vrot.slane %v3170, %v3608
        %v3610 = vsel %vm1726, %v3609, %v3605
        %v3611 = vlaneseq
        %v3612 = vshrl.u32 %v3611, 7
        %v3613 = vsub.s32 %v1728, %v3612
        %v3614 = vrot.slane %v3173, %v3613
        %v3615 = vsel %vm1733, %v3614, %v3610
        %v3616 = vlaneseq
        %v3617 = vshrl.u32 %v3616, 7
        %v3618 = vsub.s32 %v1735, %v3617
        %v3619 = vrot.slane %v3176, %v3618
        %v3620 = vsel %vm1740, %v3619, %v3615
        %v3621 = vlaneseq
        %v3622 = vshrl.u32 %v3621, 7
        %v3623 = vsub.s32 %v1742, %v3622
        %v3624 = vrot.slane %v3179, %v3623
        %v3625 = vsel %vm1747, %v3624, %v3620
        %v3626 = vlaneseq
        %v3627 = vshrl.u32 %v3626, 7
        %v3628 = vsub.s32 %v1639, %v3627
        %v3629 = vrot.slane %v3182, %v3628
        %v3630 = vlaneseq
        %v3631 = vshrl.u32 %v3630, 7
        %v3632 = vsub.s32 %v1644, %v3631
        %v3633 = vrot.slane %v3185, %v3632
        %v3634 = vsel %vm1649, %v3633, %v3629
        %v3635 = vlaneseq
        %v3636 = vshrl.u32 %v3635, 7
        %v3637 = vsub.s32 %v1651, %v3636
        %v3638 = vrot.slane %v3188, %v3637
        %v3639 = vsel %vm1656, %v3638, %v3634
        %v3640 = vlaneseq
        %v3641 = vshrl.u32 %v3640, 7
        %v3642 = vsub.s32 %v1658, %v3641
        %v3643 = vrot.slane %v3191, %v3642
        %v3644 = vsel %vm1663, %v3643, %v3639
        %v3645 = vlaneseq
        %v3646 = vshrl.u32 %v3645, 7
        %v3647 = vsub.s32 %v1665, %v3646
        %v3648 = vrot.slane %v3194, %v3647
        %v3649 = vsel %vm1670, %v3648, %v3644
        %v3650 = vlaneseq
        %v3651 = vshrl.u32 %v3650, 7
        %v3652 = vsub.s32 %v1672, %v3651
        %v3653 = vrot.slane %v3197, %v3652
        %v3654 = vsel %vm1677, %v3653, %v3649
        %v3655 = vlaneseq
        %v3656 = vshrl.u32 %v3655, 7
        %v3657 = vsub.s32 %v1679, %v3656
        %v3658 = vrot.slane %v3200, %v3657
        %v3659 = vsel %vm1684, %v3658, %v3654
        %v3660 = vlaneseq
        %v3661 = vshrl.u32 %v3660, 7
        %v3662 = vsub.s32 %v1686, %v3661
        %v3663 = vrot.slane %v3203, %v3662
        %v3664 = vsel %vm1691, %v3663, %v3659
        %v3665 = vlaneseq
        %v3666 = vshrl.u32 %v3665, 7
        %v3667 = vsub.s32 %v1693, %v3666
        %v3668 = vrot.slane %v3206, %v3667
        %v3669 = vsel %vm1698, %v3668, %v3664
        %v3670 = vlaneseq
        %v3671 = vshrl.u32 %v3670, 7
        %v3672 = vsub.s32 %v1700, %v3671
        %v3673 = vrot.slane %v3209, %v3672
        %v3674 = vsel %vm1705, %v3673, %v3669
        %v3675 = vlaneseq
        %v3676 = vshrl.u32 %v3675, 7
        %v3677 = vsub.s32 %v1707, %v3676
        %v3678 = vrot.slane %v3212, %v3677
        %v3679 = vsel %vm1712, %v3678, %v3674
        %v3680 = vlaneseq
        %v3681 = vshrl.u32 %v3680, 7
        %v3682 = vsub.s32 %v1714, %v3681
        %v3683 = vrot.slane %v3215, %v3682
        %v3684 = vsel %vm1719, %v3683, %v3679
        %v3685 = vlaneseq
        %v3686 = vshrl.u32 %v3685, 7
        %v3687 = vsub.s32 %v1721, %v3686
        %v3688 = vrot.slane %v3218, %v3687
        %v3689 = vsel %vm1726, %v3688, %v3684
        %v3690 = vlaneseq
        %v3691 = vshrl.u32 %v3690, 7
        %v3692 = vsub.s32 %v1728, %v3691
        %v3693 = vrot.slane %v3221, %v3692
        %v3694 = vsel %vm1733, %v3693, %v3689
        %v3695 = vlaneseq
        %v3696 = vshrl.u32 %v3695, 7
        %v3697 = vsub.s32 %v1735, %v3696
        %v3698 = vrot.slane %v3224, %v3697
        %v3699 = vsel %vm1740, %v3698, %v3694
        %v3700 = vlaneseq
        %v3701 = vshrl.u32 %v3700, 7
        %v3702 = vsub.s32 %v1742, %v3701
        %v3703 = vrot.slane %v3227, %v3702
        %v3704 = vsel %vm1747, %v3703, %v3699
        %v3705 = vlaneseq
        %v3706 = vshrl.u32 %v3705, 7
        %v3707 = vsub.s32 %v1639, %v3706
        %v3708 = vrot.slane %v3230, %v3707
        %v3709 = vlaneseq
        %v3710 = vshrl.u32 %v3709, 7
        %v3711 = vsub.s32 %v1644, %v3710
        %v3712 = vrot.slane %v3233, %v3711
        %v3713 = vsel %vm1649, %v3712, %v3708
        %v3714 = vlaneseq
        %v3715 = vshrl.u32 %v3714, 7
        %v3716 = vsub.s32 %v1651, %v3715
        %v3717 = vrot.slane %v3236, %v3716
        %v3718 = vsel %vm1656, %v3717, %v3713
        %v3719 = vlaneseq
        %v3720 = vshrl.u32 %v3719, 7
        %v3721 = vsub.s32 %v1658, %v3720
        %v3722 = vrot.slane %v3239, %v3721
        %v3723 = vsel %vm1663, %v3722, %v3718
        %v3724 = vlaneseq
        %v3725 = vshrl.u32 %v3724, 7
        %v3726 = vsub.s32 %v1665, %v3725
        %v3727 = vrot.slane %v3242, %v3726
        %v3728 = vsel %vm1670, %v3727, %v3723
        %v3729 = vlaneseq
        %v3730 = vshrl.u32 %v3729, 7
        %v3731 = vsub.s32 %v1672, %v3730
        %v3732 = vrot.slane %v3245, %v3731
        %v3733 = vsel %vm1677, %v3732, %v3728
        %v3734 = vlaneseq
        %v3735 = vshrl.u32 %v3734, 7
        %v3736 = vsub.s32 %v1679, %v3735
        %v3737 = vrot.slane %v3248, %v3736
        %v3738 = vsel %vm1684, %v3737, %v3733
        %v3739 = vlaneseq
        %v3740 = vshrl.u32 %v3739, 7
        %v3741 = vsub.s32 %v1686, %v3740
        %v3742 = vrot.slane %v3251, %v3741
        %v3743 = vsel %vm1691, %v3742, %v3738
        %v3744 = vlaneseq
        %v3745 = vshrl.u32 %v3744, 7
        %v3746 = vsub.s32 %v1693, %v3745
        %v3747 = vrot.slane %v3254, %v3746
        %v3748 = vsel %vm1698, %v3747, %v3743
        %v3749 = vlaneseq
        %v3750 = vshrl.u32 %v3749, 7
        %v3751 = vsub.s32 %v1700, %v3750
        %v3752 = vrot.slane %v3257, %v3751
        %v3753 = vsel %vm1705, %v3752, %v3748
        %v3754 = vlaneseq
        %v3755 = vshrl.u32 %v3754, 7
        %v3756 = vsub.s32 %v1707, %v3755
        %v3757 = vrot.slane %v3260, %v3756
        %v3758 = vsel %vm1712, %v3757, %v3753
        %v3759 = vlaneseq
        %v3760 = vshrl.u32 %v3759, 7
        %v3761 = vsub.s32 %v1714, %v3760
        %v3762 = vrot.slane %v3263, %v3761
        %v3763 = vsel %vm1719, %v3762, %v3758
        %v3764 = vlaneseq
        %v3765 = vshrl.u32 %v3764, 7
        %v3766 = vsub.s32 %v1721, %v3765
        %v3767 = vrot.slane %v3266, %v3766
        %v3768 = vsel %vm1726, %v3767, %v3763
        %v3769 = vlaneseq
        %v3770 = vshrl.u32 %v3769, 7
        %v3771 = vsub.s32 %v1728, %v3770
        %v3772 = vrot.slane %v3269, %v3771
        %v3773 = vsel %vm1733, %v3772, %v3768
        %v3774 = vlaneseq
        %v3775 = vshrl.u32 %v3774, 7
        %v3776 = vsub.s32 %v1735, %v3775
        %v3777 = vrot.slane %v3272, %v3776
        %v3778 = vsel %vm1740, %v3777, %v3773
        %v3779 = vlaneseq
        %v3780 = vshrl.u32 %v3779, 7
        %v3781 = vsub.s32 %v1742, %v3780
        %v3782 = vrot.slane %v3275, %v3781
        %v3783 = vsel %vm1747, %v3782, %v3778
        %v3784 = vlaneseq
        %v3785 = vshrl.u32 %v3784, 7
        %v3786 = vsub.s32 %v1639, %v3785
        %v3787 = vrot.slane %v3278, %v3786
        %v3788 = vlaneseq
        %v3789 = vshrl.u32 %v3788, 7
        %v3790 = vsub.s32 %v1644, %v3789
        %v3791 = vrot.slane %v3281, %v3790
        %v3792 = vsel %vm1649, %v3791, %v3787
        %v3793 = vlaneseq
        %v3794 = vshrl.u32 %v3793, 7
        %v3795 = vsub.s32 %v1651, %v3794
        %v3796 = vrot.slane %v3284, %v3795
        %v3797 = vsel %vm1656, %v3796, %v3792
        %v3798 = vlaneseq
        %v3799 = vshrl.u32 %v3798, 7
        %v3800 = vsub.s32 %v1658, %v3799
        %v3801 = vrot.slane %v3287, %v3800
        %v3802 = vsel %vm1663, %v3801, %v3797
        %v3803 = vlaneseq
        %v3804 = vshrl.u32 %v3803, 7
        %v3805 = vsub.s32 %v1665, %v3804
        %v3806 = vrot.slane %v3290, %v3805
        %v3807 = vsel %vm1670, %v3806, %v3802
        %v3808 = vlaneseq
        %v3809 = vshrl.u32 %v3808, 7
        %v3810 = vsub.s32 %v1672, %v3809
        %v3811 = vrot.slane %v3293, %v3810
        %v3812 = vsel %vm1677, %v3811, %v3807
        %v3813 = vlaneseq
        %v3814 = vshrl.u32 %v3813, 7
        %v3815 = vsub.s32 %v1679, %v3814
        %v3816 = vrot.slane %v3296, %v3815
        %v3817 = vsel %vm1684, %v3816, %v3812
        %v3818 = vlaneseq
        %v3819 = vshrl.u32 %v3818, 7
        %v3820 = vsub.s32 %v1686, %v3819
        %v3821 = vrot.slane %v3299, %v3820
        %v3822 = vsel %vm1691, %v3821, %v3817
        %v3823 = vlaneseq
        %v3824 = vshrl.u32 %v3823, 7
        %v3825 = vsub.s32 %v1693, %v3824
        %v3826 = vrot.slane %v3302, %v3825
        %v3827 = vsel %vm1698, %v3826, %v3822
        %v3828 = vlaneseq
        %v3829 = vshrl.u32 %v3828, 7
        %v3830 = vsub.s32 %v1700, %v3829
        %v3831 = vrot.slane %v3305, %v3830
        %v3832 = vsel %vm1705, %v3831, %v3827
        %v3833 = vlaneseq
        %v3834 = vshrl.u32 %v3833, 7
        %v3835 = vsub.s32 %v1707, %v3834
        %v3836 = vrot.slane %v3308, %v3835
        %v3837 = vsel %vm1712, %v3836, %v3832
        %v3838 = vlaneseq
        %v3839 = vshrl.u32 %v3838, 7
        %v3840 = vsub.s32 %v1714, %v3839
        %v3841 = vrot.slane %v3311, %v3840
        %v3842 = vsel %vm1719, %v3841, %v3837
        %v3843 = vlaneseq
        %v3844 = vshrl.u32 %v3843, 7
        %v3845 = vsub.s32 %v1721, %v3844
        %v3846 = vrot.slane %v3314, %v3845
        %v3847 = vsel %vm1726, %v3846, %v3842
        %v3848 = vlaneseq
        %v3849 = vshrl.u32 %v3848, 7
        %v3850 = vsub.s32 %v1728, %v3849
        %v3851 = vrot.slane %v3317, %v3850
        %v3852 = vsel %vm1733, %v3851, %v3847
        %v3853 = vlaneseq
        %v3854 = vshrl.u32 %v3853, 7
        %v3855 = vsub.s32 %v1735, %v3854
        %v3856 = vrot.slane %v3320, %v3855
        %v3857 = vsel %vm1740, %v3856, %v3852
        %v3858 = vlaneseq
        %v3859 = vshrl.u32 %v3858, 7
        %v3860 = vsub.s32 %v1742, %v3859
        %v3861 = vrot.slane %v3323, %v3860
        %v3862 = vsel %vm1747, %v3861, %v3857
        %v3863 = vlaneseq
        %v3864 = vshrl.u32 %v3863, 7
        %v3865 = vsub.s32 %v1639, %v3864
        %v3866 = vrot.slane %v3326, %v3865
        %v3867 = vlaneseq
        %v3868 = vshrl.u32 %v3867, 7
        %v3869 = vsub.s32 %v1644, %v3868
        %v3870 = vrot.slane %v3329, %v3869
        %v3871 = vsel %vm1649, %v3870, %v3866
        %v3872 = vlaneseq
        %v3873 = vshrl.u32 %v3872, 7
        %v3874 = vsub.s32 %v1651, %v3873
        %v3875 = vrot.slane %v3332, %v3874
        %v3876 = vsel %vm1656, %v3875, %v3871
        %v3877 = vlaneseq
        %v3878 = vshrl.u32 %v3877, 7
        %v3879 = vsub.s32 %v1658, %v3878
        %v3880 = vrot.slane %v3335, %v3879
        %v3881 = vsel %vm1663, %v3880, %v3876
        %v3882 = vlaneseq
        %v3883 = vshrl.u32 %v3882, 7
        %v3884 = vsub.s32 %v1665, %v3883
        %v3885 = vrot.slane %v3338, %v3884
        %v3886 = vsel %vm1670, %v3885, %v3881
        %v3887 = vlaneseq
        %v3888 = vshrl.u32 %v3887, 7
        %v3889 = vsub.s32 %v1672, %v3888
        %v3890 = vrot.slane %v3341, %v3889
        %v3891 = vsel %vm1677, %v3890, %v3886
        %v3892 = vlaneseq
        %v3893 = vshrl.u32 %v3892, 7
        %v3894 = vsub.s32 %v1679, %v3893
        %v3895 = vrot.slane %v3344, %v3894
        %v3896 = vsel %vm1684, %v3895, %v3891
        %v3897 = vlaneseq
        %v3898 = vshrl.u32 %v3897, 7
        %v3899 = vsub.s32 %v1686, %v3898
        %v3900 = vrot.slane %v3347, %v3899
        %v3901 = vsel %vm1691, %v3900, %v3896
        %v3902 = vlaneseq
        %v3903 = vshrl.u32 %v3902, 7
        %v3904 = vsub.s32 %v1693, %v3903
        %v3905 = vrot.slane %v3350, %v3904
        %v3906 = vsel %vm1698, %v3905, %v3901
        %v3907 = vlaneseq
        %v3908 = vshrl.u32 %v3907, 7
        %v3909 = vsub.s32 %v1700, %v3908
        %v3910 = vrot.slane %v3353, %v3909
        %v3911 = vsel %vm1705, %v3910, %v3906
        %v3912 = vlaneseq
        %v3913 = vshrl.u32 %v3912, 7
        %v3914 = vsub.s32 %v1707, %v3913
        %v3915 = vrot.slane %v3356, %v3914
        %v3916 = vsel %vm1712, %v3915, %v3911
        %v3917 = vlaneseq
        %v3918 = vshrl.u32 %v3917, 7
        %v3919 = vsub.s32 %v1714, %v3918
        %v3920 = vrot.slane %v3359, %v3919
        %v3921 = vsel %vm1719, %v3920, %v3916
        %v3922 = vlaneseq
        %v3923 = vshrl.u32 %v3922, 7
        %v3924 = vsub.s32 %v1721, %v3923
        %v3925 = vrot.slane %v3362, %v3924
        %v3926 = vsel %vm1726, %v3925, %v3921
        %v3927 = vlaneseq
        %v3928 = vshrl.u32 %v3927, 7
        %v3929 = vsub.s32 %v1728, %v3928
        %v3930 = vrot.slane %v3365, %v3929
        %v3931 = vsel %vm1733, %v3930, %v3926
        %v3932 = vlaneseq
        %v3933 = vshrl.u32 %v3932, 7
        %v3934 = vsub.s32 %v1735, %v3933
        %v3935 = vrot.slane %v3368, %v3934
        %v3936 = vsel %vm1740, %v3935, %v3931
        %v3937 = vlaneseq
        %v3938 = vshrl.u32 %v3937, 7
        %v3939 = vsub.s32 %v1742, %v3938
        %v3940 = vrot.slane %v3371, %v3939
        %v3941 = vsel %vm1747, %v3940, %v3936
        %v3942 = vlaneseq
        %v3943 = vshrl.u32 %v3942, 7
        %v3944 = vsub.s32 %v1639, %v3943
        %v3945 = vrot.slane %v3374, %v3944
        %v3946 = vlaneseq
        %v3947 = vshrl.u32 %v3946, 7
        %v3948 = vsub.s32 %v1644, %v3947
        %v3949 = vrot.slane %v3377, %v3948
        %v3950 = vsel %vm1649, %v3949, %v3945
        %v3951 = vlaneseq
        %v3952 = vshrl.u32 %v3951, 7
        %v3953 = vsub.s32 %v1651, %v3952
        %v3954 = vrot.slane %v3380, %v3953
        %v3955 = vsel %vm1656, %v3954, %v3950
        %v3956 = vlaneseq
        %v3957 = vshrl.u32 %v3956, 7
        %v3958 = vsub.s32 %v1658, %v3957
        %v3959 = vrot.slane %v3383, %v3958
        %v3960 = vsel %vm1663, %v3959, %v3955
        %v3961 = vlaneseq
        %v3962 = vshrl.u32 %v3961, 7
        %v3963 = vsub.s32 %v1665, %v3962
        %v3964 = vrot.slane %v3386, %v3963
        %v3965 = vsel %vm1670, %v3964, %v3960
        %v3966 = vlaneseq
        %v3967 = vshrl.u32 %v3966, 7
        %v3968 = vsub.s32 %v1672, %v3967
        %v3969 = vrot.slane %v3389, %v3968
        %v3970 = vsel %vm1677, %v3969, %v3965
        %v3971 = vlaneseq
        %v3972 = vshrl.u32 %v3971, 7
        %v3973 = vsub.s32 %v1679, %v3972
        %v3974 = vrot.slane %v3392, %v3973
        %v3975 = vsel %vm1684, %v3974, %v3970
        %v3976 = vlaneseq
        %v3977 = vshrl.u32 %v3976, 7
        %v3978 = vsub.s32 %v1686, %v3977
        %v3979 = vrot.slane %v3395, %v3978
        %v3980 = vsel %vm1691, %v3979, %v3975
        %v3981 = vlaneseq
        %v3982 = vshrl.u32 %v3981, 7
        %v3983 = vsub.s32 %v1693, %v3982
        %v3984 = vrot.slane %v3398, %v3983
        %v3985 = vsel %vm1698, %v3984, %v3980
        %v3986 = vlaneseq
        %v3987 = vshrl.u32 %v3986, 7
        %v3988 = vsub.s32 %v1700, %v3987
        %v3989 = vrot.slane %v3401, %v3988
        %v3990 = vsel %vm1705, %v3989, %v3985
        %v3991 = vlaneseq
        %v3992 = vshrl.u32 %v3991, 7
        %v3993 = vsub.s32 %v1707, %v3992
        %v3994 = vrot.slane %v3404, %v3993
        %v3995 = vsel %vm1712, %v3994, %v3990
        %v3996 = vlaneseq
        %v3997 = vshrl.u32 %v3996, 7
        %v3998 = vsub.s32 %v1714, %v3997
        %v3999 = vrot.slane %v3407, %v3998
        %v4000 = vsel %vm1719, %v3999, %v3995
        %v4001 = vlaneseq
        %v4002 = vshrl.u32 %v4001, 7
        %v4003 = vsub.s32 %v1721, %v4002
        %v4004 = vrot.slane %v3410, %v4003
        %v4005 = vsel %vm1726, %v4004, %v4000
        %v4006 = vlaneseq
        %v4007 = vshrl.u32 %v4006, 7
        %v4008 = vsub.s32 %v1728, %v4007
        %v4009 = vrot.slane %v3413, %v4008
        %v4010 = vsel %vm1733, %v4009, %v4005
        %v4011 = vlaneseq
        %v4012 = vshrl.u32 %v4011, 7
        %v4013 = vsub.s32 %v1735, %v4012
        %v4014 = vrot.slane %v3416, %v4013
        %v4015 = vsel %vm1740, %v4014, %v4010
        %v4016 = vlaneseq
        %v4017 = vshrl.u32 %v4016, 7
        %v4018 = vsub.s32 %v1742, %v4017
        %v4019 = vrot.slane %v3419, %v4018
        %v4020 = vsel %vm1747, %v4019, %v4015
        %v4021 = vlaneseq
        %v4022 = vshrl.u32 %v4021, 7
        %v4023 = vsub.s32 %v1639, %v4022
        %v4024 = vrot.slane %v3422, %v4023
        %v4025 = vlaneseq
        %v4026 = vshrl.u32 %v4025, 7
        %v4027 = vsub.s32 %v1644, %v4026
        %v4028 = vrot.slane %v3425, %v4027
        %v4029 = vsel %vm1649, %v4028, %v4024
        %v4030 = vlaneseq
        %v4031 = vshrl.u32 %v4030, 7
        %v4032 = vsub.s32 %v1651, %v4031
        %v4033 = vrot.slane %v3428, %v4032
        %v4034 = vsel %vm1656, %v4033, %v4029
        %v4035 = vlaneseq
        %v4036 = vshrl.u32 %v4035, 7
        %v4037 = vsub.s32 %v1658, %v4036
        %v4038 = vrot.slane %v3431, %v4037
        %v4039 = vsel %vm1663, %v4038, %v4034
        %v4040 = vlaneseq
        %v4041 = vshrl.u32 %v4040, 7
        %v4042 = vsub.s32 %v1665, %v4041
        %v4043 = vrot.slane %v3434, %v4042
        %v4044 = vsel %vm1670, %v4043, %v4039
        %v4045 = vlaneseq
        %v4046 = vshrl.u32 %v4045, 7
        %v4047 = vsub.s32 %v1672, %v4046
        %v4048 = vrot.slane %v3437, %v4047
        %v4049 = vsel %vm1677, %v4048, %v4044
        %v4050 = vlaneseq
        %v4051 = vshrl.u32 %v4050, 7
        %v4052 = vsub.s32 %v1679, %v4051
        %v4053 = vrot.slane %v3440, %v4052
        %v4054 = vsel %vm1684, %v4053, %v4049
        %v4055 = vlaneseq
        %v4056 = vshrl.u32 %v4055, 7
        %v4057 = vsub.s32 %v1686, %v4056
        %v4058 = vrot.slane %v3443, %v4057
        %v4059 = vsel %vm1691, %v4058, %v4054
        %v4060 = vlaneseq
        %v4061 = vshrl.u32 %v4060, 7
        %v4062 = vsub.s32 %v1693, %v4061
        %v4063 = vrot.slane %v3446, %v4062
        %v4064 = vsel %vm1698, %v4063, %v4059
        %v4065 = vlaneseq
        %v4066 = vshrl.u32 %v4065, 7
        %v4067 = vsub.s32 %v1700, %v4066
        %v4068 = vrot.slane %v3449, %v4067
        %v4069 = vsel %vm1705, %v4068, %v4064
        %v4070 = vlaneseq
        %v4071 = vshrl.u32 %v4070, 7
        %v4072 = vsub.s32 %v1707, %v4071
        %v4073 = vrot.slane %v3452, %v4072
        %v4074 = vsel %vm1712, %v4073, %v4069
        %v4075 = vlaneseq
        %v4076 = vshrl.u32 %v4075, 7
        %v4077 = vsub.s32 %v1714, %v4076
        %v4078 = vrot.slane %v3455, %v4077
        %v4079 = vsel %vm1719, %v4078, %v4074
        %v4080 = vlaneseq
        %v4081 = vshrl.u32 %v4080, 7
        %v4082 = vsub.s32 %v1721, %v4081
        %v4083 = vrot.slane %v3458, %v4082
        %v4084 = vsel %vm1726, %v4083, %v4079
        %v4085 = vlaneseq
        %v4086 = vshrl.u32 %v4085, 7
        %v4087 = vsub.s32 %v1728, %v4086
        %v4088 = vrot.slane %v3461, %v4087
        %v4089 = vsel %vm1733, %v4088, %v4084
        %v4090 = vlaneseq
        %v4091 = vshrl.u32 %v4090, 7
        %v4092 = vsub.s32 %v1735, %v4091
        %v4093 = vrot.slane %v3464, %v4092
        %v4094 = vsel %vm1740, %v4093, %v4089
        %v4095 = vlaneseq
        %v4096 = vshrl.u32 %v4095, 7
        %v4097 = vsub.s32 %v1742, %v4096
        %v4098 = vrot.slane %v3467, %v4097
        %v4099 = vsel %vm1747, %v4098, %v4094
        %v4100 = vsel %vm2302, %v3625, %v3546
        %v4101 = vsel %vm2304, %v3704, %v4100
        %v4102 = vsel %vm2306, %v3783, %v4101
        %v4103 = vsel %vm2308, %v3862, %v4102
        %v4104 = vsel %vm2310, %v3941, %v4103
        %v4105 = vsel %vm2312, %v4020, %v4104
        %v4106 = vsel %vm2314, %v4099, %v4105
        %4108 = vadd.xlane.f32.xlu0 %v4106
        %v4109 = vpop.xlane.xlu0 %4108
        %v4110 = vrcp.pop %v4109
        %v4112 = vlaneseq
        %v4113 = vshrl.u32 %v4112, 7
        %v4114 = vsub.s32 0, %v4113
        %v4115 = vrot.slane %v4110, %v4114
        %v4116 = vlaneseq
        %v4117 = vshrl.u32 %v4116, 7
        %v4118 = vsub.s32 1, %v4117
        %v4119 = vrot.slane %v4110, %v4118
        %v4120 = vlaneseq
        %v4121 = vshrl.u32 %v4120, 7
        %v4122 = vsub.s32 2, %v4121
        %v4123 = vrot.slane %v4110, %v4122
        %v4124 = vlaneseq
        %v4125 = vshrl.u32 %v4124, 7
        %v4126 = vsub.s32 3, %v4125
        %v4127 = vrot.slane %v4110, %v4126
        %v4128 = vlaneseq
        %v4129 = vshrl.u32 %v4128, 7
        %v4130 = vsub.s32 4, %v4129
        %v4131 = vrot.slane %v4110, %v4130
        %v4132 = vlaneseq
        %v4133 = vshrl.u32 %v4132, 7
        %v4134 = vsub.s32 5, %v4133
        %v4135 = vrot.slane %v4110, %v4134
        %v4136 = vlaneseq
        %v4137 = vshrl.u32 %v4136, 7
        %v4138 = vsub.s32 6, %v4137
        %v4139 = vrot.slane %v4110, %v4138
        %v4140 = vlaneseq
        %v4141 = vshrl.u32 %v4140, 7
        %v4142 = vsub.s32 7, %v4141
        %v4143 = vrot.slane %v4110, %v4142
        %v4152 = vmul.f32 %v2828, %v4115
        %v4153 = vmul.f32 %v2829, %v4115
        %v4154 = vmul.f32 %v2830, %v4115
        %v4155 = vmul.f32 %v2831, %v4115
        %v4156 = vmul.f32 %v2832, %v4115
        %v4157 = vmul.f32 %v2833, %v4115
        %v4158 = vmul.f32 %v2834, %v4115
        %v4159 = vmul.f32 %v2835, %v4115
        %v4160 = vmul.f32 %v2836, %v4115
        %v4161 = vmul.f32 %v2837, %v4115
        %v4162 = vmul.f32 %v2838, %v4115
        %v4163 = vmul.f32 %v2839, %v4115
        %v4164 = vmul.f32 %v2840, %v4115
        %v4165 = vmul.f32 %v2841, %v4115
        %v4166 = vmul.f32 %v2842, %v4115
        %v4167 = vmul.f32 %v2843, %v4115
        %v4168 = vmul.f32 %v2844, %v4119
        %v4169 = vmul.f32 %v2845, %v4119
        %v4170 = vmul.f32 %v2846, %v4119
        %v4171 = vmul.f32 %v2847, %v4119
        %v4172 = vmul.f32 %v2848, %v4119
        %v4173 = vmul.f32 %v2849, %v4119
        %v4174 = vmul.f32 %v2850, %v4119
        %v4175 = vmul.f32 %v2851, %v4119
        %v4176 = vmul.f32 %v2852, %v4119
        %v4177 = vmul.f32 %v2853, %v4119
        %v4178 = vmul.f32 %v2854, %v4119
        %v4179 = vmul.f32 %v2855, %v4119
        %v4180 = vmul.f32 %v2856, %v4119
        %v4181 = vmul.f32 %v2857, %v4119
        %v4182 = vmul.f32 %v2858, %v4119
        %v4183 = vmul.f32 %v2859, %v4119
        %v4184 = vmul.f32 %v2860, %v4123
        %v4185 = vmul.f32 %v2861, %v4123
        %v4186 = vmul.f32 %v2862, %v4123
        %v4187 = vmul.f32 %v2863, %v4123
        %v4188 = vmul.f32 %v2864, %v4123
        %v4189 = vmul.f32 %v2865, %v4123
        %v4190 = vmul.f32 %v2866, %v4123
        %v4191 = vmul.f32 %v2867, %v4123
        %v4192 = vmul.f32 %v2868, %v4123
        %v4193 = vmul.f32 %v2869, %v4123
        %v4194 = vmul.f32 %v2870, %v4123
        %v4195 = vmul.f32 %v2871, %v4123
        %v4196 = vmul.f32 %v2872, %v4123
        %v4197 = vmul.f32 %v2873, %v4123
        %v4198 = vmul.f32 %v2874, %v4123
        %v4199 = vmul.f32 %v2875, %v4123
        %v4200 = vmul.f32 %v2876, %v4127
        %v4201 = vmul.f32 %v2877, %v4127
        %v4202 = vmul.f32 %v2878, %v4127
        %v4203 = vmul.f32 %v2879, %v4127
        %v4204 = vmul.f32 %v2880, %v4127
        %v4205 = vmul.f32 %v2881, %v4127
        %v4206 = vmul.f32 %v2882, %v4127
        %v4207 = vmul.f32 %v2883, %v4127
        %v4208 = vmul.f32 %v2884, %v4127
        %v4209 = vmul.f32 %v2885, %v4127
        %v4210 = vmul.f32 %v2886, %v4127
        %v4211 = vmul.f32 %v2887, %v4127
        %v4212 = vmul.f32 %v2888, %v4127
        %v4213 = vmul.f32 %v2889, %v4127
        %v4214 = vmul.f32 %v2890, %v4127
        %v4215 = vmul.f32 %v2891, %v4127
        %v4216 = vmul.f32 %v2892, %v4131
        %v4217 = vmul.f32 %v2893, %v4131
        %v4218 = vmul.f32 %v2894, %v4131
        %v4219 = vmul.f32 %v2895, %v4131
        %v4220 = vmul.f32 %v2896, %v4131
        %v4221 = vmul.f32 %v2897, %v4131
        %v4222 = vmul.f32 %v2898, %v4131
        %v4223 = vmul.f32 %v2899, %v4131
        %v4224 = vmul.f32 %v2900, %v4131
        %v4225 = vmul.f32 %v2901, %v4131
        %v4226 = vmul.f32 %v2902, %v4131
        %v4227 = vmul.f32 %v2903, %v4131
        %v4228 = vmul.f32 %v2904, %v4131
        %v4229 = vmul.f32 %v2905, %v4131
        %v4230 = vmul.f32 %v2906, %v4131
        %v4231 = vmul.f32 %v2907, %v4131
        %v4232 = vmul.f32 %v2908, %v4135
        %v4233 = vmul.f32 %v2909, %v4135
        %v4234 = vmul.f32 %v2910, %v4135
        %v4235 = vmul.f32 %v2911, %v4135
        %v4236 = vmul.f32 %v2912, %v4135
        %v4237 = vmul.f32 %v2913, %v4135
        %v4238 = vmul.f32 %v2914, %v4135
        %v4239 = vmul.f32 %v2915, %v4135
        %v4240 = vmul.f32 %v2916, %v4135
        %v4241 = vmul.f32 %v2917, %v4135
        %v4242 = vmul.f32 %v2918, %v4135
        %v4243 = vmul.f32 %v2919, %v4135
        %v4244 = vmul.f32 %v2920, %v4135
        %v4245 = vmul.f32 %v2921, %v4135
        %v4246 = vmul.f32 %v2922, %v4135
        %v4247 = vmul.f32 %v2923, %v4135
        %v4248 = vmul.f32 %v2924, %v4139
        %v4249 = vmul.f32 %v2925, %v4139
        %v4250 = vmul.f32 %v2926, %v4139
        %v4251 = vmul.f32 %v2927, %v4139
        %v4252 = vmul.f32 %v2928, %v4139
        %v4253 = vmul.f32 %v2929, %v4139
        %v4254 = vmul.f32 %v2930, %v4139
        %v4255 = vmul.f32 %v2931, %v4139
        %v4256 = vmul.f32 %v2932, %v4139
        %v4257 = vmul.f32 %v2933, %v4139
        %v4258 = vmul.f32 %v2934, %v4139
        %v4259 = vmul.f32 %v2935, %v4139
        %v4260 = vmul.f32 %v2936, %v4139
        %v4261 = vmul.f32 %v2937, %v4139
        %v4262 = vmul.f32 %v2938, %v4139
        %v4263 = vmul.f32 %v2939, %v4139
        %v4264 = vmul.f32 %v2940, %v4143
        %v4265 = vmul.f32 %v2941, %v4143
        %v4266 = vmul.f32 %v2942, %v4143
        %v4267 = vmul.f32 %v2943, %v4143
        %v4268 = vmul.f32 %v2944, %v4143
        %v4269 = vmul.f32 %v2945, %v4143
        %v4270 = vmul.f32 %v2946, %v4143
        %v4271 = vmul.f32 %v2947, %v4143
        %v4272 = vmul.f32 %v2948, %v4143
        %v4273 = vmul.f32 %v2949, %v4143
        %v4274 = vmul.f32 %v2950, %v4143
        %v4275 = vmul.f32 %v2951, %v4143
        %v4276 = vmul.f32 %v2952, %v4143
        %v4277 = vmul.f32 %v2953, %v4143
        %v4278 = vmul.f32 %v2954, %v4143
        %v4279 = vmul.f32 %v2955, %v4143
        %4408 = vset.pattern.permute.xlu0 0
        %4409 = vperm.xlu0 %4408, %v4152
        %v4410 = vpop.permute.xlu0 %4409
        %4411 = vset.pattern.permute.xlu0 0
        %4412 = vperm.xlu0 %4411, %v4153
        %v4413 = vpop.permute.xlu0 %4412
        %4414 = vset.pattern.permute.xlu0 0
        %4415 = vperm.xlu0 %4414, %v4154
        %v4416 = vpop.permute.xlu0 %4415
        %4417 = vset.pattern.permute.xlu0 0
        %4418 = vperm.xlu0 %4417, %v4155
        %v4419 = vpop.permute.xlu0 %4418
        %4420 = vset.pattern.permute.xlu0 0
        %4421 = vperm.xlu0 %4420, %v4156
        %v4422 = vpop.permute.xlu0 %4421
        %4423 = vset.pattern.permute.xlu0 0
        %4424 = vperm.xlu0 %4423, %v4157
        %v4425 = vpop.permute.xlu0 %4424
        %4426 = vset.pattern.permute.xlu0 0
        %4427 = vperm.xlu0 %4426, %v4158
        %v4428 = vpop.permute.xlu0 %4427
        %4429 = vset.pattern.permute.xlu0 0
        %4430 = vperm.xlu0 %4429, %v4159
        %v4431 = vpop.permute.xlu0 %4430
        %4432 = vset.pattern.permute.xlu0 0
        %4433 = vperm.xlu0 %4432, %v4160
        %v4434 = vpop.permute.xlu0 %4433
        %4435 = vset.pattern.permute.xlu0 0
        %4436 = vperm.xlu0 %4435, %v4161
        %v4437 = vpop.permute.xlu0 %4436
        %4438 = vset.pattern.permute.xlu0 0
        %4439 = vperm.xlu0 %4438, %v4162
        %v4440 = vpop.permute.xlu0 %4439
        %4441 = vset.pattern.permute.xlu0 0
        %4442 = vperm.xlu0 %4441, %v4163
        %v4443 = vpop.permute.xlu0 %4442
        %4444 = vset.pattern.permute.xlu0 0
        %4445 = vperm.xlu0 %4444, %v4164
        %v4446 = vpop.permute.xlu0 %4445
        %4447 = vset.pattern.permute.xlu0 0
        %4448 = vperm.xlu0 %4447, %v4165
        %v4449 = vpop.permute.xlu0 %4448
        %4450 = vset.pattern.permute.xlu0 0
        %4451 = vperm.xlu0 %4450, %v4166
        %v4452 = vpop.permute.xlu0 %4451
        %4453 = vset.pattern.permute.xlu0 0
        %4454 = vperm.xlu0 %4453, %v4167
        %v4455 = vpop.permute.xlu0 %4454
        %4456 = vset.pattern.permute.xlu0 0
        %4457 = vperm.xlu0 %4456, %v4168
        %v4458 = vpop.permute.xlu0 %4457
        %4459 = vset.pattern.permute.xlu0 0
        %4460 = vperm.xlu0 %4459, %v4169
        %v4461 = vpop.permute.xlu0 %4460
        %4462 = vset.pattern.permute.xlu0 0
        %4463 = vperm.xlu0 %4462, %v4170
        %v4464 = vpop.permute.xlu0 %4463
        %4465 = vset.pattern.permute.xlu0 0
        %4466 = vperm.xlu0 %4465, %v4171
        %v4467 = vpop.permute.xlu0 %4466
        %4468 = vset.pattern.permute.xlu0 0
        %4469 = vperm.xlu0 %4468, %v4172
        %v4470 = vpop.permute.xlu0 %4469
        %4471 = vset.pattern.permute.xlu0 0
        %4472 = vperm.xlu0 %4471, %v4173
        %v4473 = vpop.permute.xlu0 %4472
        %4474 = vset.pattern.permute.xlu0 0
        %4475 = vperm.xlu0 %4474, %v4174
        %v4476 = vpop.permute.xlu0 %4475
        %4477 = vset.pattern.permute.xlu0 0
        %4478 = vperm.xlu0 %4477, %v4175
        %v4479 = vpop.permute.xlu0 %4478
        %4480 = vset.pattern.permute.xlu0 0
        %4481 = vperm.xlu0 %4480, %v4176
        %v4482 = vpop.permute.xlu0 %4481
        %4483 = vset.pattern.permute.xlu0 0
        %4484 = vperm.xlu0 %4483, %v4177
        %v4485 = vpop.permute.xlu0 %4484
        %4486 = vset.pattern.permute.xlu0 0
        %4487 = vperm.xlu0 %4486, %v4178
        %v4488 = vpop.permute.xlu0 %4487
        %4489 = vset.pattern.permute.xlu0 0
        %4490 = vperm.xlu0 %4489, %v4179
        %v4491 = vpop.permute.xlu0 %4490
        %4492 = vset.pattern.permute.xlu0 0
        %4493 = vperm.xlu0 %4492, %v4180
        %v4494 = vpop.permute.xlu0 %4493
        %4495 = vset.pattern.permute.xlu0 0
        %4496 = vperm.xlu0 %4495, %v4181
        %v4497 = vpop.permute.xlu0 %4496
        %4498 = vset.pattern.permute.xlu0 0
        %4499 = vperm.xlu0 %4498, %v4182
        %v4500 = vpop.permute.xlu0 %4499
        %4501 = vset.pattern.permute.xlu0 0
        %4502 = vperm.xlu0 %4501, %v4183
        %v4503 = vpop.permute.xlu0 %4502
        %4504 = vset.pattern.permute.xlu0 0
        %4505 = vperm.xlu0 %4504, %v4184
        %v4506 = vpop.permute.xlu0 %4505
        %4507 = vset.pattern.permute.xlu0 0
        %4508 = vperm.xlu0 %4507, %v4185
        %v4509 = vpop.permute.xlu0 %4508
        %4510 = vset.pattern.permute.xlu0 0
        %4511 = vperm.xlu0 %4510, %v4186
        %v4512 = vpop.permute.xlu0 %4511
        %4513 = vset.pattern.permute.xlu0 0
        %4514 = vperm.xlu0 %4513, %v4187
        %v4515 = vpop.permute.xlu0 %4514
        %4516 = vset.pattern.permute.xlu0 0
        %4517 = vperm.xlu0 %4516, %v4188
        %v4518 = vpop.permute.xlu0 %4517
        %4519 = vset.pattern.permute.xlu0 0
        %4520 = vperm.xlu0 %4519, %v4189
        %v4521 = vpop.permute.xlu0 %4520
        %4522 = vset.pattern.permute.xlu0 0
        %4523 = vperm.xlu0 %4522, %v4190
        %v4524 = vpop.permute.xlu0 %4523
        %4525 = vset.pattern.permute.xlu0 0
        %4526 = vperm.xlu0 %4525, %v4191
        %v4527 = vpop.permute.xlu0 %4526
        %4528 = vset.pattern.permute.xlu0 0
        %4529 = vperm.xlu0 %4528, %v4192
        %v4530 = vpop.permute.xlu0 %4529
        %4531 = vset.pattern.permute.xlu0 0
        %4532 = vperm.xlu0 %4531, %v4193
        %v4533 = vpop.permute.xlu0 %4532
        %4534 = vset.pattern.permute.xlu0 0
        %4535 = vperm.xlu0 %4534, %v4194
        %v4536 = vpop.permute.xlu0 %4535
        %4537 = vset.pattern.permute.xlu0 0
        %4538 = vperm.xlu0 %4537, %v4195
        %v4539 = vpop.permute.xlu0 %4538
        %4540 = vset.pattern.permute.xlu0 0
        %4541 = vperm.xlu0 %4540, %v4196
        %v4542 = vpop.permute.xlu0 %4541
        %4543 = vset.pattern.permute.xlu0 0
        %4544 = vperm.xlu0 %4543, %v4197
        %v4545 = vpop.permute.xlu0 %4544
        %4546 = vset.pattern.permute.xlu0 0
        %4547 = vperm.xlu0 %4546, %v4198
        %v4548 = vpop.permute.xlu0 %4547
        %4549 = vset.pattern.permute.xlu0 0
        %4550 = vperm.xlu0 %4549, %v4199
        %v4551 = vpop.permute.xlu0 %4550
        %4552 = vset.pattern.permute.xlu0 0
        %4553 = vperm.xlu0 %4552, %v4200
        %v4554 = vpop.permute.xlu0 %4553
        %4555 = vset.pattern.permute.xlu0 0
        %4556 = vperm.xlu0 %4555, %v4201
        %v4557 = vpop.permute.xlu0 %4556
        %4558 = vset.pattern.permute.xlu0 0
        %4559 = vperm.xlu0 %4558, %v4202
        %v4560 = vpop.permute.xlu0 %4559
        %4561 = vset.pattern.permute.xlu0 0
        %4562 = vperm.xlu0 %4561, %v4203
        %v4563 = vpop.permute.xlu0 %4562
        %4564 = vset.pattern.permute.xlu0 0
        %4565 = vperm.xlu0 %4564, %v4204
        %v4566 = vpop.permute.xlu0 %4565
        %4567 = vset.pattern.permute.xlu0 0
        %4568 = vperm.xlu0 %4567, %v4205
        %v4569 = vpop.permute.xlu0 %4568
        %4570 = vset.pattern.permute.xlu0 0
        %4571 = vperm.xlu0 %4570, %v4206
        %v4572 = vpop.permute.xlu0 %4571
        %4573 = vset.pattern.permute.xlu0 0
        %4574 = vperm.xlu0 %4573, %v4207
        %v4575 = vpop.permute.xlu0 %4574
        %4576 = vset.pattern.permute.xlu0 0
        %4577 = vperm.xlu0 %4576, %v4208
        %v4578 = vpop.permute.xlu0 %4577
        %4579 = vset.pattern.permute.xlu0 0
        %4580 = vperm.xlu0 %4579, %v4209
        %v4581 = vpop.permute.xlu0 %4580
        %4582 = vset.pattern.permute.xlu0 0
        %4583 = vperm.xlu0 %4582, %v4210
        %v4584 = vpop.permute.xlu0 %4583
        %4585 = vset.pattern.permute.xlu0 0
        %4586 = vperm.xlu0 %4585, %v4211
        %v4587 = vpop.permute.xlu0 %4586
        %4588 = vset.pattern.permute.xlu0 0
        %4589 = vperm.xlu0 %4588, %v4212
        %v4590 = vpop.permute.xlu0 %4589
        %4591 = vset.pattern.permute.xlu0 0
        %4592 = vperm.xlu0 %4591, %v4213
        %v4593 = vpop.permute.xlu0 %4592
        %4594 = vset.pattern.permute.xlu0 0
        %4595 = vperm.xlu0 %4594, %v4214
        %v4596 = vpop.permute.xlu0 %4595
        %4597 = vset.pattern.permute.xlu0 0
        %4598 = vperm.xlu0 %4597, %v4215
        %v4599 = vpop.permute.xlu0 %4598
        %4600 = vset.pattern.permute.xlu0 0
        %4601 = vperm.xlu0 %4600, %v4216
        %v4602 = vpop.permute.xlu0 %4601
        %4603 = vset.pattern.permute.xlu0 0
        %4604 = vperm.xlu0 %4603, %v4217
        %v4605 = vpop.permute.xlu0 %4604
        %4606 = vset.pattern.permute.xlu0 0
        %4607 = vperm.xlu0 %4606, %v4218
        %v4608 = vpop.permute.xlu0 %4607
        %4609 = vset.pattern.permute.xlu0 0
        %4610 = vperm.xlu0 %4609, %v4219
        %v4611 = vpop.permute.xlu0 %4610
        %4612 = vset.pattern.permute.xlu0 0
        %4613 = vperm.xlu0 %4612, %v4220
        %v4614 = vpop.permute.xlu0 %4613
        %4615 = vset.pattern.permute.xlu0 0
        %4616 = vperm.xlu0 %4615, %v4221
        %v4617 = vpop.permute.xlu0 %4616
        %4618 = vset.pattern.permute.xlu0 0
        %4619 = vperm.xlu0 %4618, %v4222
        %v4620 = vpop.permute.xlu0 %4619
        %4621 = vset.pattern.permute.xlu0 0
        %4622 = vperm.xlu0 %4621, %v4223
        %v4623 = vpop.permute.xlu0 %4622
        %4624 = vset.pattern.permute.xlu0 0
        %4625 = vperm.xlu0 %4624, %v4224
        %v4626 = vpop.permute.xlu0 %4625
        %4627 = vset.pattern.permute.xlu0 0
        %4628 = vperm.xlu0 %4627, %v4225
        %v4629 = vpop.permute.xlu0 %4628
        %4630 = vset.pattern.permute.xlu0 0
        %4631 = vperm.xlu0 %4630, %v4226
        %v4632 = vpop.permute.xlu0 %4631
        %4633 = vset.pattern.permute.xlu0 0
        %4634 = vperm.xlu0 %4633, %v4227
        %v4635 = vpop.permute.xlu0 %4634
        %4636 = vset.pattern.permute.xlu0 0
        %4637 = vperm.xlu0 %4636, %v4228
        %v4638 = vpop.permute.xlu0 %4637
        %4639 = vset.pattern.permute.xlu0 0
        %4640 = vperm.xlu0 %4639, %v4229
        %v4641 = vpop.permute.xlu0 %4640
        %4642 = vset.pattern.permute.xlu0 0
        %4643 = vperm.xlu0 %4642, %v4230
        %v4644 = vpop.permute.xlu0 %4643
        %4645 = vset.pattern.permute.xlu0 0
        %4646 = vperm.xlu0 %4645, %v4231
        %v4647 = vpop.permute.xlu0 %4646
        %4648 = vset.pattern.permute.xlu0 0
        %4649 = vperm.xlu0 %4648, %v4232
        %v4650 = vpop.permute.xlu0 %4649
        %4651 = vset.pattern.permute.xlu0 0
        %4652 = vperm.xlu0 %4651, %v4233
        %v4653 = vpop.permute.xlu0 %4652
        %4654 = vset.pattern.permute.xlu0 0
        %4655 = vperm.xlu0 %4654, %v4234
        %v4656 = vpop.permute.xlu0 %4655
        %4657 = vset.pattern.permute.xlu0 0
        %4658 = vperm.xlu0 %4657, %v4235
        %v4659 = vpop.permute.xlu0 %4658
        %4660 = vset.pattern.permute.xlu0 0
        %4661 = vperm.xlu0 %4660, %v4236
        %v4662 = vpop.permute.xlu0 %4661
        %4663 = vset.pattern.permute.xlu0 0
        %4664 = vperm.xlu0 %4663, %v4237
        %v4665 = vpop.permute.xlu0 %4664
        %4666 = vset.pattern.permute.xlu0 0
        %4667 = vperm.xlu0 %4666, %v4238
        %v4668 = vpop.permute.xlu0 %4667
        %4669 = vset.pattern.permute.xlu0 0
        %4670 = vperm.xlu0 %4669, %v4239
        %v4671 = vpop.permute.xlu0 %4670
        %4672 = vset.pattern.permute.xlu0 0
        %4673 = vperm.xlu0 %4672, %v4240
        %v4674 = vpop.permute.xlu0 %4673
        %4675 = vset.pattern.permute.xlu0 0
        %4676 = vperm.xlu0 %4675, %v4241
        %v4677 = vpop.permute.xlu0 %4676
        %4678 = vset.pattern.permute.xlu0 0
        %4679 = vperm.xlu0 %4678, %v4242
        %v4680 = vpop.permute.xlu0 %4679
        %4681 = vset.pattern.permute.xlu0 0
        %4682 = vperm.xlu0 %4681, %v4243
        %v4683 = vpop.permute.xlu0 %4682
        %4684 = vset.pattern.permute.xlu0 0
        %4685 = vperm.xlu0 %4684, %v4244
        %v4686 = vpop.permute.xlu0 %4685
        %4687 = vset.pattern.permute.xlu0 0
        %4688 = vperm.xlu0 %4687, %v4245
        %v4689 = vpop.permute.xlu0 %4688
        %4690 = vset.pattern.permute.xlu0 0
        %4691 = vperm.xlu0 %4690, %v4246
        %v4692 = vpop.permute.xlu0 %4691
        %4693 = vset.pattern.permute.xlu0 0
        %4694 = vperm.xlu0 %4693, %v4247
        %v4695 = vpop.permute.xlu0 %4694
        %4696 = vset.pattern.permute.xlu0 0
        %4697 = vperm.xlu0 %4696, %v4248
        %v4698 = vpop.permute.xlu0 %4697
        %4699 = vset.pattern.permute.xlu0 0
        %4700 = vperm.xlu0 %4699, %v4249
        %v4701 = vpop.permute.xlu0 %4700
        %4702 = vset.pattern.permute.xlu0 0
        %4703 = vperm.xlu0 %4702, %v4250
        %v4704 = vpop.permute.xlu0 %4703
        %4705 = vset.pattern.permute.xlu0 0
        %4706 = vperm.xlu0 %4705, %v4251
        %v4707 = vpop.permute.xlu0 %4706
        %4708 = vset.pattern.permute.xlu0 0
        %4709 = vperm.xlu0 %4708, %v4252
        %v4710 = vpop.permute.xlu0 %4709
        %4711 = vset.pattern.permute.xlu0 0
        %4712 = vperm.xlu0 %4711, %v4253
        %v4713 = vpop.permute.xlu0 %4712
        %4714 = vset.pattern.permute.xlu0 0
        %4715 = vperm.xlu0 %4714, %v4254
        %v4716 = vpop.permute.xlu0 %4715
        %4717 = vset.pattern.permute.xlu0 0
        %4718 = vperm.xlu0 %4717, %v4255
        %v4719 = vpop.permute.xlu0 %4718
        %4720 = vset.pattern.permute.xlu0 0
        %4721 = vperm.xlu0 %4720, %v4256
        %v4722 = vpop.permute.xlu0 %4721
        %4723 = vset.pattern.permute.xlu0 0
        %4724 = vperm.xlu0 %4723, %v4257
        %v4725 = vpop.permute.xlu0 %4724
        %4726 = vset.pattern.permute.xlu0 0
        %4727 = vperm.xlu0 %4726, %v4258
        %v4728 = vpop.permute.xlu0 %4727
        %4729 = vset.pattern.permute.xlu0 0
        %4730 = vperm.xlu0 %4729, %v4259
        %v4731 = vpop.permute.xlu0 %4730
        %4732 = vset.pattern.permute.xlu0 0
        %4733 = vperm.xlu0 %4732, %v4260
        %v4734 = vpop.permute.xlu0 %4733
        %4735 = vset.pattern.permute.xlu0 0
        %4736 = vperm.xlu0 %4735, %v4261
        %v4737 = vpop.permute.xlu0 %4736
        %4738 = vset.pattern.permute.xlu0 0
        %4739 = vperm.xlu0 %4738, %v4262
        %v4740 = vpop.permute.xlu0 %4739
        %4741 = vset.pattern.permute.xlu0 0
        %4742 = vperm.xlu0 %4741, %v4263
        %v4743 = vpop.permute.xlu0 %4742
        %4744 = vset.pattern.permute.xlu0 0
        %4745 = vperm.xlu0 %4744, %v4264
        %v4746 = vpop.permute.xlu0 %4745
        %4747 = vset.pattern.permute.xlu0 0
        %4748 = vperm.xlu0 %4747, %v4265
        %v4749 = vpop.permute.xlu0 %4748
        %4750 = vset.pattern.permute.xlu0 0
        %4751 = vperm.xlu0 %4750, %v4266
        %v4752 = vpop.permute.xlu0 %4751
        %4753 = vset.pattern.permute.xlu0 0
        %4754 = vperm.xlu0 %4753, %v4267
        %v4755 = vpop.permute.xlu0 %4754
        %4756 = vset.pattern.permute.xlu0 0
        %4757 = vperm.xlu0 %4756, %v4268
        %v4758 = vpop.permute.xlu0 %4757
        %4759 = vset.pattern.permute.xlu0 0
        %4760 = vperm.xlu0 %4759, %v4269
        %v4761 = vpop.permute.xlu0 %4760
        %4762 = vset.pattern.permute.xlu0 0
        %4763 = vperm.xlu0 %4762, %v4270
        %v4764 = vpop.permute.xlu0 %4763
        %4765 = vset.pattern.permute.xlu0 0
        %4766 = vperm.xlu0 %4765, %v4271
        %v4767 = vpop.permute.xlu0 %4766
        %4768 = vset.pattern.permute.xlu0 0
        %4769 = vperm.xlu0 %4768, %v4272
        %v4770 = vpop.permute.xlu0 %4769
        %4771 = vset.pattern.permute.xlu0 0
        %4772 = vperm.xlu0 %4771, %v4273
        %v4773 = vpop.permute.xlu0 %4772
        %4774 = vset.pattern.permute.xlu0 0
        %4775 = vperm.xlu0 %4774, %v4274
        %v4776 = vpop.permute.xlu0 %4775
        %4777 = vset.pattern.permute.xlu0 0
        %4778 = vperm.xlu0 %4777, %v4275
        %v4779 = vpop.permute.xlu0 %4778
        %4780 = vset.pattern.permute.xlu0 0
        %4781 = vperm.xlu0 %4780, %v4276
        %v4782 = vpop.permute.xlu0 %4781
        %4783 = vset.pattern.permute.xlu0 0
        %4784 = vperm.xlu0 %4783, %v4277
        %v4785 = vpop.permute.xlu0 %4784
        %4786 = vset.pattern.permute.xlu0 0
        %4787 = vperm.xlu0 %4786, %v4278
        %v4788 = vpop.permute.xlu0 %4787
        %4789 = vset.pattern.permute.xlu0 0
        %4790 = vperm.xlu0 %4789, %v4279
        %v4791 = vpop.permute.xlu0 %4790
        %v4792 = vlaneseq
        %v4793 = vshrl.u32 %v4792, 7
        %v4794 = vsub.s32 %v1639, %v4793
        %v4795 = vrot.slane %v4410, %v4794
        %v4796 = vlaneseq
        %v4797 = vshrl.u32 %v4796, 7
        %v4798 = vsub.s32 %v1644, %v4797
        %v4799 = vrot.slane %v4413, %v4798
        %v4800 = vsel %vm1649, %v4799, %v4795
        %v4801 = vlaneseq
        %v4802 = vshrl.u32 %v4801, 7
        %v4803 = vsub.s32 %v1651, %v4802
        %v4804 = vrot.slane %v4416, %v4803
        %v4805 = vsel %vm1656, %v4804, %v4800
        %v4806 = vlaneseq
        %v4807 = vshrl.u32 %v4806, 7
        %v4808 = vsub.s32 %v1658, %v4807
        %v4809 = vrot.slane %v4419, %v4808
        %v4810 = vsel %vm1663, %v4809, %v4805
        %v4811 = vlaneseq
        %v4812 = vshrl.u32 %v4811, 7
        %v4813 = vsub.s32 %v1665, %v4812
        %v4814 = vrot.slane %v4422, %v4813
        %v4815 = vsel %vm1670, %v4814, %v4810
        %v4816 = vlaneseq
        %v4817 = vshrl.u32 %v4816, 7
        %v4818 = vsub.s32 %v1672, %v4817
        %v4819 = vrot.slane %v4425, %v4818
        %v4820 = vsel %vm1677, %v4819, %v4815
        %v4821 = vlaneseq
        %v4822 = vshrl.u32 %v4821, 7
        %v4823 = vsub.s32 %v1679, %v4822
        %v4824 = vrot.slane %v4428, %v4823
        %v4825 = vsel %vm1684, %v4824, %v4820
        %v4826 = vlaneseq
        %v4827 = vshrl.u32 %v4826, 7
        %v4828 = vsub.s32 %v1686, %v4827
        %v4829 = vrot.slane %v4431, %v4828
        %v4830 = vsel %vm1691, %v4829, %v4825
        %v4831 = vlaneseq
        %v4832 = vshrl.u32 %v4831, 7
        %v4833 = vsub.s32 %v1693, %v4832
        %v4834 = vrot.slane %v4434, %v4833
        %v4835 = vsel %vm1698, %v4834, %v4830
        %v4836 = vlaneseq
        %v4837 = vshrl.u32 %v4836, 7
        %v4838 = vsub.s32 %v1700, %v4837
        %v4839 = vrot.slane %v4437, %v4838
        %v4840 = vsel %vm1705, %v4839, %v4835
        %v4841 = vlaneseq
        %v4842 = vshrl.u32 %v4841, 7
        %v4843 = vsub.s32 %v1707, %v4842
        %v4844 = vrot.slane %v4440, %v4843
        %v4845 = vsel %vm1712, %v4844, %v4840
        %v4846 = vlaneseq
        %v4847 = vshrl.u32 %v4846, 7
        %v4848 = vsub.s32 %v1714, %v4847
        %v4849 = vrot.slane %v4443, %v4848
        %v4850 = vsel %vm1719, %v4849, %v4845
        %v4851 = vlaneseq
        %v4852 = vshrl.u32 %v4851, 7
        %v4853 = vsub.s32 %v1721, %v4852
        %v4854 = vrot.slane %v4446, %v4853
        %v4855 = vsel %vm1726, %v4854, %v4850
        %v4856 = vlaneseq
        %v4857 = vshrl.u32 %v4856, 7
        %v4858 = vsub.s32 %v1728, %v4857
        %v4859 = vrot.slane %v4449, %v4858
        %v4860 = vsel %vm1733, %v4859, %v4855
        %v4861 = vlaneseq
        %v4862 = vshrl.u32 %v4861, 7
        %v4863 = vsub.s32 %v1735, %v4862
        %v4864 = vrot.slane %v4452, %v4863
        %v4865 = vsel %vm1740, %v4864, %v4860
        %v4866 = vlaneseq
        %v4867 = vshrl.u32 %v4866, 7
        %v4868 = vsub.s32 %v1742, %v4867
        %v4869 = vrot.slane %v4455, %v4868
        %v4870 = vsel %vm1747, %v4869, %v4865
        %v4871 = vlaneseq
        %v4872 = vshrl.u32 %v4871, 7
        %v4873 = vsub.s32 %v1639, %v4872
        %v4874 = vrot.slane %v4458, %v4873
        %v4875 = vlaneseq
        %v4876 = vshrl.u32 %v4875, 7
        %v4877 = vsub.s32 %v1644, %v4876
        %v4878 = vrot.slane %v4461, %v4877
        %v4879 = vsel %vm1649, %v4878, %v4874
        %v4880 = vlaneseq
        %v4881 = vshrl.u32 %v4880, 7
        %v4882 = vsub.s32 %v1651, %v4881
        %v4883 = vrot.slane %v4464, %v4882
        %v4884 = vsel %vm1656, %v4883, %v4879
        %v4885 = vlaneseq
        %v4886 = vshrl.u32 %v4885, 7
        %v4887 = vsub.s32 %v1658, %v4886
        %v4888 = vrot.slane %v4467, %v4887
        %v4889 = vsel %vm1663, %v4888, %v4884
        %v4890 = vlaneseq
        %v4891 = vshrl.u32 %v4890, 7
        %v4892 = vsub.s32 %v1665, %v4891
        %v4893 = vrot.slane %v4470, %v4892
        %v4894 = vsel %vm1670, %v4893, %v4889
        %v4895 = vlaneseq
        %v4896 = vshrl.u32 %v4895, 7
        %v4897 = vsub.s32 %v1672, %v4896
        %v4898 = vrot.slane %v4473, %v4897
        %v4899 = vsel %vm1677, %v4898, %v4894
        %v4900 = vlaneseq
        %v4901 = vshrl.u32 %v4900, 7
        %v4902 = vsub.s32 %v1679, %v4901
        %v4903 = vrot.slane %v4476, %v4902
        %v4904 = vsel %vm1684, %v4903, %v4899
        %v4905 = vlaneseq
        %v4906 = vshrl.u32 %v4905, 7
        %v4907 = vsub.s32 %v1686, %v4906
        %v4908 = vrot.slane %v4479, %v4907
        %v4909 = vsel %vm1691, %v4908, %v4904
        %v4910 = vlaneseq
        %v4911 = vshrl.u32 %v4910, 7
        %v4912 = vsub.s32 %v1693, %v4911
        %v4913 = vrot.slane %v4482, %v4912
        %v4914 = vsel %vm1698, %v4913, %v4909
        %v4915 = vlaneseq
        %v4916 = vshrl.u32 %v4915, 7
        %v4917 = vsub.s32 %v1700, %v4916
        %v4918 = vrot.slane %v4485, %v4917
        %v4919 = vsel %vm1705, %v4918, %v4914
        %v4920 = vlaneseq
        %v4921 = vshrl.u32 %v4920, 7
        %v4922 = vsub.s32 %v1707, %v4921
        %v4923 = vrot.slane %v4488, %v4922
        %v4924 = vsel %vm1712, %v4923, %v4919
        %v4925 = vlaneseq
        %v4926 = vshrl.u32 %v4925, 7
        %v4927 = vsub.s32 %v1714, %v4926
        %v4928 = vrot.slane %v4491, %v4927
        %v4929 = vsel %vm1719, %v4928, %v4924
        %v4930 = vlaneseq
        %v4931 = vshrl.u32 %v4930, 7
        %v4932 = vsub.s32 %v1721, %v4931
        %v4933 = vrot.slane %v4494, %v4932
        %v4934 = vsel %vm1726, %v4933, %v4929
        %v4935 = vlaneseq
        %v4936 = vshrl.u32 %v4935, 7
        %v4937 = vsub.s32 %v1728, %v4936
        %v4938 = vrot.slane %v4497, %v4937
        %v4939 = vsel %vm1733, %v4938, %v4934
        %v4940 = vlaneseq
        %v4941 = vshrl.u32 %v4940, 7
        %v4942 = vsub.s32 %v1735, %v4941
        %v4943 = vrot.slane %v4500, %v4942
        %v4944 = vsel %vm1740, %v4943, %v4939
        %v4945 = vlaneseq
        %v4946 = vshrl.u32 %v4945, 7
        %v4947 = vsub.s32 %v1742, %v4946
        %v4948 = vrot.slane %v4503, %v4947
        %v4949 = vsel %vm1747, %v4948, %v4944
        %v4950 = vlaneseq
        %v4951 = vshrl.u32 %v4950, 7
        %v4952 = vsub.s32 %v1639, %v4951
        %v4953 = vrot.slane %v4506, %v4952
        %v4954 = vlaneseq
        %v4955 = vshrl.u32 %v4954, 7
        %v4956 = vsub.s32 %v1644, %v4955
        %v4957 = vrot.slane %v4509, %v4956
        %v4958 = vsel %vm1649, %v4957, %v4953
        %v4959 = vlaneseq
        %v4960 = vshrl.u32 %v4959, 7
        %v4961 = vsub.s32 %v1651, %v4960
        %v4962 = vrot.slane %v4512, %v4961
        %v4963 = vsel %vm1656, %v4962, %v4958
        %v4964 = vlaneseq
        %v4965 = vshrl.u32 %v4964, 7
        %v4966 = vsub.s32 %v1658, %v4965
        %v4967 = vrot.slane %v4515, %v4966
        %v4968 = vsel %vm1663, %v4967, %v4963
        %v4969 = vlaneseq
        %v4970 = vshrl.u32 %v4969, 7
        %v4971 = vsub.s32 %v1665, %v4970
        %v4972 = vrot.slane %v4518, %v4971
        %v4973 = vsel %vm1670, %v4972, %v4968
        %v4974 = vlaneseq
        %v4975 = vshrl.u32 %v4974, 7
        %v4976 = vsub.s32 %v1672, %v4975
        %v4977 = vrot.slane %v4521, %v4976
        %v4978 = vsel %vm1677, %v4977, %v4973
        %v4979 = vlaneseq
        %v4980 = vshrl.u32 %v4979, 7
        %v4981 = vsub.s32 %v1679, %v4980
        %v4982 = vrot.slane %v4524, %v4981
        %v4983 = vsel %vm1684, %v4982, %v4978
        %v4984 = vlaneseq
        %v4985 = vshrl.u32 %v4984, 7
        %v4986 = vsub.s32 %v1686, %v4985
        %v4987 = vrot.slane %v4527, %v4986
        %v4988 = vsel %vm1691, %v4987, %v4983
        %v4989 = vlaneseq
        %v4990 = vshrl.u32 %v4989, 7
        %v4991 = vsub.s32 %v1693, %v4990
        %v4992 = vrot.slane %v4530, %v4991
        %v4993 = vsel %vm1698, %v4992, %v4988
        %v4994 = vlaneseq
        %v4995 = vshrl.u32 %v4994, 7
        %v4996 = vsub.s32 %v1700, %v4995
        %v4997 = vrot.slane %v4533, %v4996
        %v4998 = vsel %vm1705, %v4997, %v4993
        %v4999 = vlaneseq
        %v5000 = vshrl.u32 %v4999, 7
        %v5001 = vsub.s32 %v1707, %v5000
        %v5002 = vrot.slane %v4536, %v5001
        %v5003 = vsel %vm1712, %v5002, %v4998
        %v5004 = vlaneseq
        %v5005 = vshrl.u32 %v5004, 7
        %v5006 = vsub.s32 %v1714, %v5005
        %v5007 = vrot.slane %v4539, %v5006
        %v5008 = vsel %vm1719, %v5007, %v5003
        %v5009 = vlaneseq
        %v5010 = vshrl.u32 %v5009, 7
        %v5011 = vsub.s32 %v1721, %v5010
        %v5012 = vrot.slane %v4542, %v5011
        %v5013 = vsel %vm1726, %v5012, %v5008
        %v5014 = vlaneseq
        %v5015 = vshrl.u32 %v5014, 7
        %v5016 = vsub.s32 %v1728, %v5015
        %v5017 = vrot.slane %v4545, %v5016
        %v5018 = vsel %vm1733, %v5017, %v5013
        %v5019 = vlaneseq
        %v5020 = vshrl.u32 %v5019, 7
        %v5021 = vsub.s32 %v1735, %v5020
        %v5022 = vrot.slane %v4548, %v5021
        %v5023 = vsel %vm1740, %v5022, %v5018
        %v5024 = vlaneseq
        %v5025 = vshrl.u32 %v5024, 7
        %v5026 = vsub.s32 %v1742, %v5025
        %v5027 = vrot.slane %v4551, %v5026
        %v5028 = vsel %vm1747, %v5027, %v5023
        %v5029 = vlaneseq
        %v5030 = vshrl.u32 %v5029, 7
        %v5031 = vsub.s32 %v1639, %v5030
        %v5032 = vrot.slane %v4554, %v5031
        %v5033 = vlaneseq
        %v5034 = vshrl.u32 %v5033, 7
        %v5035 = vsub.s32 %v1644, %v5034
        %v5036 = vrot.slane %v4557, %v5035
        %v5037 = vsel %vm1649, %v5036, %v5032
        %v5038 = vlaneseq
        %v5039 = vshrl.u32 %v5038, 7
        %v5040 = vsub.s32 %v1651, %v5039
        %v5041 = vrot.slane %v4560, %v5040
        %v5042 = vsel %vm1656, %v5041, %v5037
        %v5043 = vlaneseq
        %v5044 = vshrl.u32 %v5043, 7
        %v5045 = vsub.s32 %v1658, %v5044
        %v5046 = vrot.slane %v4563, %v5045
        %v5047 = vsel %vm1663, %v5046, %v5042
        %v5048 = vlaneseq
        %v5049 = vshrl.u32 %v5048, 7
        %v5050 = vsub.s32 %v1665, %v5049
        %v5051 = vrot.slane %v4566, %v5050
        %v5052 = vsel %vm1670, %v5051, %v5047
        %v5053 = vlaneseq
        %v5054 = vshrl.u32 %v5053, 7
        %v5055 = vsub.s32 %v1672, %v5054
        %v5056 = vrot.slane %v4569, %v5055
        %v5057 = vsel %vm1677, %v5056, %v5052
        %v5058 = vlaneseq
        %v5059 = vshrl.u32 %v5058, 7
        %v5060 = vsub.s32 %v1679, %v5059
        %v5061 = vrot.slane %v4572, %v5060
        %v5062 = vsel %vm1684, %v5061, %v5057
        %v5063 = vlaneseq
        %v5064 = vshrl.u32 %v5063, 7
        %v5065 = vsub.s32 %v1686, %v5064
        %v5066 = vrot.slane %v4575, %v5065
        %v5067 = vsel %vm1691, %v5066, %v5062
        %v5068 = vlaneseq
        %v5069 = vshrl.u32 %v5068, 7
        %v5070 = vsub.s32 %v1693, %v5069
        %v5071 = vrot.slane %v4578, %v5070
        %v5072 = vsel %vm1698, %v5071, %v5067
        %v5073 = vlaneseq
        %v5074 = vshrl.u32 %v5073, 7
        %v5075 = vsub.s32 %v1700, %v5074
        %v5076 = vrot.slane %v4581, %v5075
        %v5077 = vsel %vm1705, %v5076, %v5072
        %v5078 = vlaneseq
        %v5079 = vshrl.u32 %v5078, 7
        %v5080 = vsub.s32 %v1707, %v5079
        %v5081 = vrot.slane %v4584, %v5080
        %v5082 = vsel %vm1712, %v5081, %v5077
        %v5083 = vlaneseq
        %v5084 = vshrl.u32 %v5083, 7
        %v5085 = vsub.s32 %v1714, %v5084
        %v5086 = vrot.slane %v4587, %v5085
        %v5087 = vsel %vm1719, %v5086, %v5082
        %v5088 = vlaneseq
        %v5089 = vshrl.u32 %v5088, 7
        %v5090 = vsub.s32 %v1721, %v5089
        %v5091 = vrot.slane %v4590, %v5090
        %v5092 = vsel %vm1726, %v5091, %v5087
        %v5093 = vlaneseq
        %v5094 = vshrl.u32 %v5093, 7
        %v5095 = vsub.s32 %v1728, %v5094
        %v5096 = vrot.slane %v4593, %v5095
        %v5097 = vsel %vm1733, %v5096, %v5092
        %v5098 = vlaneseq
        %v5099 = vshrl.u32 %v5098, 7
        %v5100 = vsub.s32 %v1735, %v5099
        %v5101 = vrot.slane %v4596, %v5100
        %v5102 = vsel %vm1740, %v5101, %v5097
        %v5103 = vlaneseq
        %v5104 = vshrl.u32 %v5103, 7
        %v5105 = vsub.s32 %v1742, %v5104
        %v5106 = vrot.slane %v4599, %v5105
        %v5107 = vsel %vm1747, %v5106, %v5102
        %v5108 = vlaneseq
        %v5109 = vshrl.u32 %v5108, 7
        %v5110 = vsub.s32 %v1639, %v5109
        %v5111 = vrot.slane %v4602, %v5110
        %v5112 = vlaneseq
        %v5113 = vshrl.u32 %v5112, 7
        %v5114 = vsub.s32 %v1644, %v5113
        %v5115 = vrot.slane %v4605, %v5114
        %v5116 = vsel %vm1649, %v5115, %v5111
        %v5117 = vlaneseq
        %v5118 = vshrl.u32 %v5117, 7
        %v5119 = vsub.s32 %v1651, %v5118
        %v5120 = vrot.slane %v4608, %v5119
        %v5121 = vsel %vm1656, %v5120, %v5116
        %v5122 = vlaneseq
        %v5123 = vshrl.u32 %v5122, 7
        %v5124 = vsub.s32 %v1658, %v5123
        %v5125 = vrot.slane %v4611, %v5124
        %v5126 = vsel %vm1663, %v5125, %v5121
        %v5127 = vlaneseq
        %v5128 = vshrl.u32 %v5127, 7
        %v5129 = vsub.s32 %v1665, %v5128
        %v5130 = vrot.slane %v4614, %v5129
        %v5131 = vsel %vm1670, %v5130, %v5126
        %v5132 = vlaneseq
        %v5133 = vshrl.u32 %v5132, 7
        %v5134 = vsub.s32 %v1672, %v5133
        %v5135 = vrot.slane %v4617, %v5134
        %v5136 = vsel %vm1677, %v5135, %v5131
        %v5137 = vlaneseq
        %v5138 = vshrl.u32 %v5137, 7
        %v5139 = vsub.s32 %v1679, %v5138
        %v5140 = vrot.slane %v4620, %v5139
        %v5141 = vsel %vm1684, %v5140, %v5136
        %v5142 = vlaneseq
        %v5143 = vshrl.u32 %v5142, 7
        %v5144 = vsub.s32 %v1686, %v5143
        %v5145 = vrot.slane %v4623, %v5144
        %v5146 = vsel %vm1691, %v5145, %v5141
        %v5147 = vlaneseq
        %v5148 = vshrl.u32 %v5147, 7
        %v5149 = vsub.s32 %v1693, %v5148
        %v5150 = vrot.slane %v4626, %v5149
        %v5151 = vsel %vm1698, %v5150, %v5146
        %v5152 = vlaneseq
        %v5153 = vshrl.u32 %v5152, 7
        %v5154 = vsub.s32 %v1700, %v5153
        %v5155 = vrot.slane %v4629, %v5154
        %v5156 = vsel %vm1705, %v5155, %v5151
        %v5157 = vlaneseq
        %v5158 = vshrl.u32 %v5157, 7
        %v5159 = vsub.s32 %v1707, %v5158
        %v5160 = vrot.slane %v4632, %v5159
        %v5161 = vsel %vm1712, %v5160, %v5156
        %v5162 = vlaneseq
        %v5163 = vshrl.u32 %v5162, 7
        %v5164 = vsub.s32 %v1714, %v5163
        %v5165 = vrot.slane %v4635, %v5164
        %v5166 = vsel %vm1719, %v5165, %v5161
        %v5167 = vlaneseq
        %v5168 = vshrl.u32 %v5167, 7
        %v5169 = vsub.s32 %v1721, %v5168
        %v5170 = vrot.slane %v4638, %v5169
        %v5171 = vsel %vm1726, %v5170, %v5166
        %v5172 = vlaneseq
        %v5173 = vshrl.u32 %v5172, 7
        %v5174 = vsub.s32 %v1728, %v5173
        %v5175 = vrot.slane %v4641, %v5174
        %v5176 = vsel %vm1733, %v5175, %v5171
        %v5177 = vlaneseq
        %v5178 = vshrl.u32 %v5177, 7
        %v5179 = vsub.s32 %v1735, %v5178
        %v5180 = vrot.slane %v4644, %v5179
        %v5181 = vsel %vm1740, %v5180, %v5176
        %v5182 = vlaneseq
        %v5183 = vshrl.u32 %v5182, 7
        %v5184 = vsub.s32 %v1742, %v5183
        %v5185 = vrot.slane %v4647, %v5184
        %v5186 = vsel %vm1747, %v5185, %v5181
        %v5187 = vlaneseq
        %v5188 = vshrl.u32 %v5187, 7
        %v5189 = vsub.s32 %v1639, %v5188
        %v5190 = vrot.slane %v4650, %v5189
        %v5191 = vlaneseq
        %v5192 = vshrl.u32 %v5191, 7
        %v5193 = vsub.s32 %v1644, %v5192
        %v5194 = vrot.slane %v4653, %v5193
        %v5195 = vsel %vm1649, %v5194, %v5190
        %v5196 = vlaneseq
        %v5197 = vshrl.u32 %v5196, 7
        %v5198 = vsub.s32 %v1651, %v5197
        %v5199 = vrot.slane %v4656, %v5198
        %v5200 = vsel %vm1656, %v5199, %v5195
        %v5201 = vlaneseq
        %v5202 = vshrl.u32 %v5201, 7
        %v5203 = vsub.s32 %v1658, %v5202
        %v5204 = vrot.slane %v4659, %v5203
        %v5205 = vsel %vm1663, %v5204, %v5200
        %v5206 = vlaneseq
        %v5207 = vshrl.u32 %v5206, 7
        %v5208 = vsub.s32 %v1665, %v5207
        %v5209 = vrot.slane %v4662, %v5208
        %v5210 = vsel %vm1670, %v5209, %v5205
        %v5211 = vlaneseq
        %v5212 = vshrl.u32 %v5211, 7
        %v5213 = vsub.s32 %v1672, %v5212
        %v5214 = vrot.slane %v4665, %v5213
        %v5215 = vsel %vm1677, %v5214, %v5210
        %v5216 = vlaneseq
        %v5217 = vshrl.u32 %v5216, 7
        %v5218 = vsub.s32 %v1679, %v5217
        %v5219 = vrot.slane %v4668, %v5218
        %v5220 = vsel %vm1684, %v5219, %v5215
        %v5221 = vlaneseq
        %v5222 = vshrl.u32 %v5221, 7
        %v5223 = vsub.s32 %v1686, %v5222
        %v5224 = vrot.slane %v4671, %v5223
        %v5225 = vsel %vm1691, %v5224, %v5220
        %v5226 = vlaneseq
        %v5227 = vshrl.u32 %v5226, 7
        %v5228 = vsub.s32 %v1693, %v5227
        %v5229 = vrot.slane %v4674, %v5228
        %v5230 = vsel %vm1698, %v5229, %v5225
        %v5231 = vlaneseq
        %v5232 = vshrl.u32 %v5231, 7
        %v5233 = vsub.s32 %v1700, %v5232
        %v5234 = vrot.slane %v4677, %v5233
        %v5235 = vsel %vm1705, %v5234, %v5230
        %v5236 = vlaneseq
        %v5237 = vshrl.u32 %v5236, 7
        %v5238 = vsub.s32 %v1707, %v5237
        %v5239 = vrot.slane %v4680, %v5238
        %v5240 = vsel %vm1712, %v5239, %v5235
        %v5241 = vlaneseq
        %v5242 = vshrl.u32 %v5241, 7
        %v5243 = vsub.s32 %v1714, %v5242
        %v5244 = vrot.slane %v4683, %v5243
        %v5245 = vsel %vm1719, %v5244, %v5240
        %v5246 = vlaneseq
        %v5247 = vshrl.u32 %v5246, 7
        %v5248 = vsub.s32 %v1721, %v5247
        %v5249 = vrot.slane %v4686, %v5248
        %v5250 = vsel %vm1726, %v5249, %v5245
        %v5251 = vlaneseq
        %v5252 = vshrl.u32 %v5251, 7
        %v5253 = vsub.s32 %v1728, %v5252
        %v5254 = vrot.slane %v4689, %v5253
        %v5255 = vsel %vm1733, %v5254, %v5250
        %v5256 = vlaneseq
        %v5257 = vshrl.u32 %v5256, 7
        %v5258 = vsub.s32 %v1735, %v5257
        %v5259 = vrot.slane %v4692, %v5258
        %v5260 = vsel %vm1740, %v5259, %v5255
        %v5261 = vlaneseq
        %v5262 = vshrl.u32 %v5261, 7
        %v5263 = vsub.s32 %v1742, %v5262
        %v5264 = vrot.slane %v4695, %v5263
        %v5265 = vsel %vm1747, %v5264, %v5260
        %v5266 = vlaneseq
        %v5267 = vshrl.u32 %v5266, 7
        %v5268 = vsub.s32 %v1639, %v5267
        %v5269 = vrot.slane %v4698, %v5268
        %v5270 = vlaneseq
        %v5271 = vshrl.u32 %v5270, 7
        %v5272 = vsub.s32 %v1644, %v5271
        %v5273 = vrot.slane %v4701, %v5272
        %v5274 = vsel %vm1649, %v5273, %v5269
        %v5275 = vlaneseq
        %v5276 = vshrl.u32 %v5275, 7
        %v5277 = vsub.s32 %v1651, %v5276
        %v5278 = vrot.slane %v4704, %v5277
        %v5279 = vsel %vm1656, %v5278, %v5274
        %v5280 = vlaneseq
        %v5281 = vshrl.u32 %v5280, 7
        %v5282 = vsub.s32 %v1658, %v5281
        %v5283 = vrot.slane %v4707, %v5282
        %v5284 = vsel %vm1663, %v5283, %v5279
        %v5285 = vlaneseq
        %v5286 = vshrl.u32 %v5285, 7
        %v5287 = vsub.s32 %v1665, %v5286
        %v5288 = vrot.slane %v4710, %v5287
        %v5289 = vsel %vm1670, %v5288, %v5284
        %v5290 = vlaneseq
        %v5291 = vshrl.u32 %v5290, 7
        %v5292 = vsub.s32 %v1672, %v5291
        %v5293 = vrot.slane %v4713, %v5292
        %v5294 = vsel %vm1677, %v5293, %v5289
        %v5295 = vlaneseq
        %v5296 = vshrl.u32 %v5295, 7
        %v5297 = vsub.s32 %v1679, %v5296
        %v5298 = vrot.slane %v4716, %v5297
        %v5299 = vsel %vm1684, %v5298, %v5294
        %v5300 = vlaneseq
        %v5301 = vshrl.u32 %v5300, 7
        %v5302 = vsub.s32 %v1686, %v5301
        %v5303 = vrot.slane %v4719, %v5302
        %v5304 = vsel %vm1691, %v5303, %v5299
        %v5305 = vlaneseq
        %v5306 = vshrl.u32 %v5305, 7
        %v5307 = vsub.s32 %v1693, %v5306
        %v5308 = vrot.slane %v4722, %v5307
        %v5309 = vsel %vm1698, %v5308, %v5304
        %v5310 = vlaneseq
        %v5311 = vshrl.u32 %v5310, 7
        %v5312 = vsub.s32 %v1700, %v5311
        %v5313 = vrot.slane %v4725, %v5312
        %v5314 = vsel %vm1705, %v5313, %v5309
        %v5315 = vlaneseq
        %v5316 = vshrl.u32 %v5315, 7
        %v5317 = vsub.s32 %v1707, %v5316
        %v5318 = vrot.slane %v4728, %v5317
        %v5319 = vsel %vm1712, %v5318, %v5314
        %v5320 = vlaneseq
        %v5321 = vshrl.u32 %v5320, 7
        %v5322 = vsub.s32 %v1714, %v5321
        %v5323 = vrot.slane %v4731, %v5322
        %v5324 = vsel %vm1719, %v5323, %v5319
        %v5325 = vlaneseq
        %v5326 = vshrl.u32 %v5325, 7
        %v5327 = vsub.s32 %v1721, %v5326
        %v5328 = vrot.slane %v4734, %v5327
        %v5329 = vsel %vm1726, %v5328, %v5324
        %v5330 = vlaneseq
        %v5331 = vshrl.u32 %v5330, 7
        %v5332 = vsub.s32 %v1728, %v5331
        %v5333 = vrot.slane %v4737, %v5332
        %v5334 = vsel %vm1733, %v5333, %v5329
        %v5335 = vlaneseq
        %v5336 = vshrl.u32 %v5335, 7
        %v5337 = vsub.s32 %v1735, %v5336
        %v5338 = vrot.slane %v4740, %v5337
        %v5339 = vsel %vm1740, %v5338, %v5334
        %v5340 = vlaneseq
        %v5341 = vshrl.u32 %v5340, 7
        %v5342 = vsub.s32 %v1742, %v5341
        %v5343 = vrot.slane %v4743, %v5342
        %v5344 = vsel %vm1747, %v5343, %v5339
        %v5345 = vlaneseq
        %v5346 = vshrl.u32 %v5345, 7
        %v5347 = vsub.s32 %v1639, %v5346
        %v5348 = vrot.slane %v4746, %v5347
        %v5349 = vlaneseq
        %v5350 = vshrl.u32 %v5349, 7
        %v5351 = vsub.s32 %v1644, %v5350
        %v5352 = vrot.slane %v4749, %v5351
        %v5353 = vsel %vm1649, %v5352, %v5348
        %v5354 = vlaneseq
        %v5355 = vshrl.u32 %v5354, 7
        %v5356 = vsub.s32 %v1651, %v5355
        %v5357 = vrot.slane %v4752, %v5356
        %v5358 = vsel %vm1656, %v5357, %v5353
        %v5359 = vlaneseq
        %v5360 = vshrl.u32 %v5359, 7
        %v5361 = vsub.s32 %v1658, %v5360
        %v5362 = vrot.slane %v4755, %v5361
        %v5363 = vsel %vm1663, %v5362, %v5358
        %v5364 = vlaneseq
        %v5365 = vshrl.u32 %v5364, 7
        %v5366 = vsub.s32 %v1665, %v5365
        %v5367 = vrot.slane %v4758, %v5366
        %v5368 = vsel %vm1670, %v5367, %v5363
        %v5369 = vlaneseq
        %v5370 = vshrl.u32 %v5369, 7
        %v5371 = vsub.s32 %v1672, %v5370
        %v5372 = vrot.slane %v4761, %v5371
        %v5373 = vsel %vm1677, %v5372, %v5368
        %v5374 = vlaneseq
        %v5375 = vshrl.u32 %v5374, 7
        %v5376 = vsub.s32 %v1679, %v5375
        %v5377 = vrot.slane %v4764, %v5376
        %v5378 = vsel %vm1684, %v5377, %v5373
        %v5379 = vlaneseq
        %v5380 = vshrl.u32 %v5379, 7
        %v5381 = vsub.s32 %v1686, %v5380
        %v5382 = vrot.slane %v4767, %v5381
        %v5383 = vsel %vm1691, %v5382, %v5378
        %v5384 = vlaneseq
        %v5385 = vshrl.u32 %v5384, 7
        %v5386 = vsub.s32 %v1693, %v5385
        %v5387 = vrot.slane %v4770, %v5386
        %v5388 = vsel %vm1698, %v5387, %v5383
        %v5389 = vlaneseq
        %v5390 = vshrl.u32 %v5389, 7
        %v5391 = vsub.s32 %v1700, %v5390
        %v5392 = vrot.slane %v4773, %v5391
        %v5393 = vsel %vm1705, %v5392, %v5388
        %v5394 = vlaneseq
        %v5395 = vshrl.u32 %v5394, 7
        %v5396 = vsub.s32 %v1707, %v5395
        %v5397 = vrot.slane %v4776, %v5396
        %v5398 = vsel %vm1712, %v5397, %v5393
        %v5399 = vlaneseq
        %v5400 = vshrl.u32 %v5399, 7
        %v5401 = vsub.s32 %v1714, %v5400
        %v5402 = vrot.slane %v4779, %v5401
        %v5403 = vsel %vm1719, %v5402, %v5398
        %v5404 = vlaneseq
        %v5405 = vshrl.u32 %v5404, 7
        %v5406 = vsub.s32 %v1721, %v5405
        %v5407 = vrot.slane %v4782, %v5406
        %v5408 = vsel %vm1726, %v5407, %v5403
        %v5409 = vlaneseq
        %v5410 = vshrl.u32 %v5409, 7
        %v5411 = vsub.s32 %v1728, %v5410
        %v5412 = vrot.slane %v4785, %v5411
        %v5413 = vsel %vm1733, %v5412, %v5408
        %v5414 = vlaneseq
        %v5415 = vshrl.u32 %v5414, 7
        %v5416 = vsub.s32 %v1735, %v5415
        %v5417 = vrot.slane %v4788, %v5416
        %v5418 = vsel %vm1740, %v5417, %v5413
        %v5419 = vlaneseq
        %v5420 = vshrl.u32 %v5419, 7
        %v5421 = vsub.s32 %v1742, %v5420
        %v5422 = vrot.slane %v4791, %v5421
        %v5423 = vsel %vm1747, %v5422, %v5418
        %v5424 = vsel %vm2302, %v4949, %v4870
        %v5425 = vsel %vm2304, %v5028, %v5424
        %v5426 = vsel %vm2306, %v5107, %v5425
        %v5427 = vsel %vm2308, %v5186, %v5426
        %v5428 = vsel %vm2310, %v5265, %v5427
        %v5429 = vsel %vm2312, %v5344, %v5428
        %v5430 = vsel %vm2314, %v5423, %v5429
        %5432 = vst [vmem:[%s430] sm:$0xff] %v5430
        %v5433 = vpack.c.bf16 %v4153, %v4152
        %v5434 = vpack.c.bf16 %v4155, %v4154
        %v5435 = vpack.c.bf16 %v4157, %v4156
        %v5436 = vpack.c.bf16 %v4159, %v4158
        %v5437 = vpack.c.bf16 %v4161, %v4160
        %v5438 = vpack.c.bf16 %v4163, %v4162
        %v5439 = vpack.c.bf16 %v4165, %v4164
        %v5440 = vpack.c.bf16 %v4167, %v4166
        %v5441 = vpack.c.bf16 %v4169, %v4168
        %v5442 = vpack.c.bf16 %v4171, %v4170
        %v5443 = vpack.c.bf16 %v4173, %v4172
        %v5444 = vpack.c.bf16 %v4175, %v4174
        %v5445 = vpack.c.bf16 %v4177, %v4176
        %v5446 = vpack.c.bf16 %v4179, %v4178
        %v5447 = vpack.c.bf16 %v4181, %v4180
        %v5448 = vpack.c.bf16 %v4183, %v4182
        %v5449 = vpack.c.bf16 %v4185, %v4184
        %v5450 = vpack.c.bf16 %v4187, %v4186
        %v5451 = vpack.c.bf16 %v4189, %v4188
        %v5452 = vpack.c.bf16 %v4191, %v4190
        %v5453 = vpack.c.bf16 %v4193, %v4192
        %v5454 = vpack.c.bf16 %v4195, %v4194
        %v5455 = vpack.c.bf16 %v4197, %v4196
        %v5456 = vpack.c.bf16 %v4199, %v4198
        %v5457 = vpack.c.bf16 %v4201, %v4200
        %v5458 = vpack.c.bf16 %v4203, %v4202
        %v5459 = vpack.c.bf16 %v4205, %v4204
        %v5460 = vpack.c.bf16 %v4207, %v4206
        %v5461 = vpack.c.bf16 %v4209, %v4208
        %v5462 = vpack.c.bf16 %v4211, %v4210
        %v5463 = vpack.c.bf16 %v4213, %v4212
        %v5464 = vpack.c.bf16 %v4215, %v4214
        %v5465 = vpack.c.bf16 %v4217, %v4216
        %v5466 = vpack.c.bf16 %v4219, %v4218
        %v5467 = vpack.c.bf16 %v4221, %v4220
        %v5468 = vpack.c.bf16 %v4223, %v4222
        %v5469 = vpack.c.bf16 %v4225, %v4224
        %v5470 = vpack.c.bf16 %v4227, %v4226
        %v5471 = vpack.c.bf16 %v4229, %v4228
        %v5472 = vpack.c.bf16 %v4231, %v4230
        %v5473 = vpack.c.bf16 %v4233, %v4232
        %v5474 = vpack.c.bf16 %v4235, %v4234
        %v5475 = vpack.c.bf16 %v4237, %v4236
        %v5476 = vpack.c.bf16 %v4239, %v4238
        %v5477 = vpack.c.bf16 %v4241, %v4240
        %v5478 = vpack.c.bf16 %v4243, %v4242
        %v5479 = vpack.c.bf16 %v4245, %v4244
        %v5480 = vpack.c.bf16 %v4247, %v4246
        %v5481 = vpack.c.bf16 %v4249, %v4248
        %v5482 = vpack.c.bf16 %v4251, %v4250
        %v5483 = vpack.c.bf16 %v4253, %v4252
        %v5484 = vpack.c.bf16 %v4255, %v4254
        %v5485 = vpack.c.bf16 %v4257, %v4256
        %v5486 = vpack.c.bf16 %v4259, %v4258
        %v5487 = vpack.c.bf16 %v4261, %v4260
        %v5488 = vpack.c.bf16 %v4263, %v4262
        %v5489 = vpack.c.bf16 %v4265, %v4264
        %v5490 = vpack.c.bf16 %v4267, %v4266
        %v5491 = vpack.c.bf16 %v4269, %v4268
        %v5492 = vpack.c.bf16 %v4271, %v4270
        %v5493 = vpack.c.bf16 %v4273, %v4272
        %v5494 = vpack.c.bf16 %v4275, %v4274
        %v5495 = vpack.c.bf16 %v4277, %v4276
        %v5496 = vpack.c.bf16 %v4279, %v4278
        %v5561 = vunpack.c.l.b16 %v5433
        %v5562 = vunpack.c.h.b16 %v5433
        %v5563 = vunpack.c.l.b16 %v5434
        %v5564 = vunpack.c.h.b16 %v5434
        %v5565 = vunpack.c.l.b16 %v5435
        %v5566 = vunpack.c.h.b16 %v5435
        %v5567 = vunpack.c.l.b16 %v5436
        %v5568 = vunpack.c.h.b16 %v5436
        %v5569 = vunpack.c.l.b16 %v5437
        %v5570 = vunpack.c.h.b16 %v5437
        %v5571 = vunpack.c.l.b16 %v5438
        %v5572 = vunpack.c.h.b16 %v5438
        %v5573 = vunpack.c.l.b16 %v5439
        %v5574 = vunpack.c.h.b16 %v5439
        %v5575 = vunpack.c.l.b16 %v5440
        %v5576 = vunpack.c.h.b16 %v5440
        %v5577 = vunpack.c.l.b16 %v5441
        %v5578 = vunpack.c.h.b16 %v5441
        %v5579 = vunpack.c.l.b16 %v5442
        %v5580 = vunpack.c.h.b16 %v5442
        %v5581 = vunpack.c.l.b16 %v5443
        %v5582 = vunpack.c.h.b16 %v5443
        %v5583 = vunpack.c.l.b16 %v5444
        %v5584 = vunpack.c.h.b16 %v5444
        %v5585 = vunpack.c.l.b16 %v5445
        %v5586 = vunpack.c.h.b16 %v5445
        %v5587 = vunpack.c.l.b16 %v5446
        %v5588 = vunpack.c.h.b16 %v5446
        %v5589 = vunpack.c.l.b16 %v5447
        %v5590 = vunpack.c.h.b16 %v5447
        %v5591 = vunpack.c.l.b16 %v5448
        %v5592 = vunpack.c.h.b16 %v5448
        %v5593 = vunpack.c.l.b16 %v5449
        %v5594 = vunpack.c.h.b16 %v5449
        %v5595 = vunpack.c.l.b16 %v5450
        %v5596 = vunpack.c.h.b16 %v5450
        %v5597 = vunpack.c.l.b16 %v5451
        %v5598 = vunpack.c.h.b16 %v5451
        %v5599 = vunpack.c.l.b16 %v5452
        %v5600 = vunpack.c.h.b16 %v5452
        %v5601 = vunpack.c.l.b16 %v5453
        %v5602 = vunpack.c.h.b16 %v5453
        %v5603 = vunpack.c.l.b16 %v5454
        %v5604 = vunpack.c.h.b16 %v5454
        %v5605 = vunpack.c.l.b16 %v5455
        %v5606 = vunpack.c.h.b16 %v5455
        %v5607 = vunpack.c.l.b16 %v5456
        %v5608 = vunpack.c.h.b16 %v5456
        %v5609 = vunpack.c.l.b16 %v5457
        %v5610 = vunpack.c.h.b16 %v5457
        %v5611 = vunpack.c.l.b16 %v5458
        %v5612 = vunpack.c.h.b16 %v5458
        %v5613 = vunpack.c.l.b16 %v5459
        %v5614 = vunpack.c.h.b16 %v5459
        %v5615 = vunpack.c.l.b16 %v5460
        %v5616 = vunpack.c.h.b16 %v5460
        %v5617 = vunpack.c.l.b16 %v5461
        %v5618 = vunpack.c.h.b16 %v5461
        %v5619 = vunpack.c.l.b16 %v5462
        %v5620 = vunpack.c.h.b16 %v5462
        %v5621 = vunpack.c.l.b16 %v5463
        %v5622 = vunpack.c.h.b16 %v5463
        %v5623 = vunpack.c.l.b16 %v5464
        %v5624 = vunpack.c.h.b16 %v5464
        %v5625 = vunpack.c.l.b16 %v5465
        %v5626 = vunpack.c.h.b16 %v5465
        %v5627 = vunpack.c.l.b16 %v5466
        %v5628 = vunpack.c.h.b16 %v5466
        %v5629 = vunpack.c.l.b16 %v5467
        %v5630 = vunpack.c.h.b16 %v5467
        %v5631 = vunpack.c.l.b16 %v5468
        %v5632 = vunpack.c.h.b16 %v5468
        %v5633 = vunpack.c.l.b16 %v5469
        %v5634 = vunpack.c.h.b16 %v5469
        %v5635 = vunpack.c.l.b16 %v5470
        %v5636 = vunpack.c.h.b16 %v5470
        %v5637 = vunpack.c.l.b16 %v5471
        %v5638 = vunpack.c.h.b16 %v5471
        %v5639 = vunpack.c.l.b16 %v5472
        %v5640 = vunpack.c.h.b16 %v5472
        %v5641 = vunpack.c.l.b16 %v5473
        %v5642 = vunpack.c.h.b16 %v5473
        %v5643 = vunpack.c.l.b16 %v5474
        %v5644 = vunpack.c.h.b16 %v5474
        %v5645 = vunpack.c.l.b16 %v5475
        %v5646 = vunpack.c.h.b16 %v5475
        %v5647 = vunpack.c.l.b16 %v5476
        %v5648 = vunpack.c.h.b16 %v5476
        %v5649 = vunpack.c.l.b16 %v5477
        %v5650 = vunpack.c.h.b16 %v5477
        %v5651 = vunpack.c.l.b16 %v5478
        %v5652 = vunpack.c.h.b16 %v5478
        %v5653 = vunpack.c.l.b16 %v5479
        %v5654 = vunpack.c.h.b16 %v5479
        %v5655 = vunpack.c.l.b16 %v5480
        %v5656 = vunpack.c.h.b16 %v5480
        %v5657 = vunpack.c.l.b16 %v5481
        %v5658 = vunpack.c.h.b16 %v5481
        %v5659 = vunpack.c.l.b16 %v5482
        %v5660 = vunpack.c.h.b16 %v5482
        %v5661 = vunpack.c.l.b16 %v5483
        %v5662 = vunpack.c.h.b16 %v5483
        %v5663 = vunpack.c.l.b16 %v5484
        %v5664 = vunpack.c.h.b16 %v5484
        %v5665 = vunpack.c.l.b16 %v5485
        %v5666 = vunpack.c.h.b16 %v5485
        %v5667 = vunpack.c.l.b16 %v5486
        %v5668 = vunpack.c.h.b16 %v5486
        %v5669 = vunpack.c.l.b16 %v5487
        %v5670 = vunpack.c.h.b16 %v5487
        %v5671 = vunpack.c.l.b16 %v5488
        %v5672 = vunpack.c.h.b16 %v5488
        %v5673 = vunpack.c.l.b16 %v5489
        %v5674 = vunpack.c.h.b16 %v5489
        %v5675 = vunpack.c.l.b16 %v5490
        %v5676 = vunpack.c.h.b16 %v5490
        %v5677 = vunpack.c.l.b16 %v5491
        %v5678 = vunpack.c.h.b16 %v5491
        %v5679 = vunpack.c.l.b16 %v5492
        %v5680 = vunpack.c.h.b16 %v5492
        %v5681 = vunpack.c.l.b16 %v5493
        %v5682 = vunpack.c.h.b16 %v5493
        %v5683 = vunpack.c.l.b16 %v5494
        %v5684 = vunpack.c.h.b16 %v5494
        %v5685 = vunpack.c.l.b16 %v5495
        %v5686 = vunpack.c.h.b16 %v5495
        %v5687 = vunpack.c.l.b16 %v5496
        %v5688 = vunpack.c.h.b16 %v5496
        %5689 = vset.pattern.permute.xlu0 0
        %5690 = vperm.xlu0 %5689, %v5561
        %v5691 = vpop.permute.xlu0 %5690
        %5692 = vset.pattern.permute.xlu0 0
        %5693 = vperm.xlu0 %5692, %v5562
        %v5694 = vpop.permute.xlu0 %5693
        %5695 = vset.pattern.permute.xlu0 0
        %5696 = vperm.xlu0 %5695, %v5563
        %v5697 = vpop.permute.xlu0 %5696
        %5698 = vset.pattern.permute.xlu0 0
        %5699 = vperm.xlu0 %5698, %v5564
        %v5700 = vpop.permute.xlu0 %5699
        %5701 = vset.pattern.permute.xlu0 0
        %5702 = vperm.xlu0 %5701, %v5565
        %v5703 = vpop.permute.xlu0 %5702
        %5704 = vset.pattern.permute.xlu0 0
        %5705 = vperm.xlu0 %5704, %v5566
        %v5706 = vpop.permute.xlu0 %5705
        %5707 = vset.pattern.permute.xlu0 0
        %5708 = vperm.xlu0 %5707, %v5567
        %v5709 = vpop.permute.xlu0 %5708
        %5710 = vset.pattern.permute.xlu0 0
        %5711 = vperm.xlu0 %5710, %v5568
        %v5712 = vpop.permute.xlu0 %5711
        %5713 = vset.pattern.permute.xlu0 0
        %5714 = vperm.xlu0 %5713, %v5569
        %v5715 = vpop.permute.xlu0 %5714
        %5716 = vset.pattern.permute.xlu0 0
        %5717 = vperm.xlu0 %5716, %v5570
        %v5718 = vpop.permute.xlu0 %5717
        %5719 = vset.pattern.permute.xlu0 0
        %5720 = vperm.xlu0 %5719, %v5571
        %v5721 = vpop.permute.xlu0 %5720
        %5722 = vset.pattern.permute.xlu0 0
        %5723 = vperm.xlu0 %5722, %v5572
        %v5724 = vpop.permute.xlu0 %5723
        %5725 = vset.pattern.permute.xlu0 0
        %5726 = vperm.xlu0 %5725, %v5573
        %v5727 = vpop.permute.xlu0 %5726
        %5728 = vset.pattern.permute.xlu0 0
        %5729 = vperm.xlu0 %5728, %v5574
        %v5730 = vpop.permute.xlu0 %5729
        %5731 = vset.pattern.permute.xlu0 0
        %5732 = vperm.xlu0 %5731, %v5575
        %v5733 = vpop.permute.xlu0 %5732
        %5734 = vset.pattern.permute.xlu0 0
        %5735 = vperm.xlu0 %5734, %v5576
        %v5736 = vpop.permute.xlu0 %5735
        %5737 = vset.pattern.permute.xlu0 0
        %5738 = vperm.xlu0 %5737, %v5577
        %v5739 = vpop.permute.xlu0 %5738
        %5740 = vset.pattern.permute.xlu0 0
        %5741 = vperm.xlu0 %5740, %v5578
        %v5742 = vpop.permute.xlu0 %5741
        %5743 = vset.pattern.permute.xlu0 0
        %5744 = vperm.xlu0 %5743, %v5579
        %v5745 = vpop.permute.xlu0 %5744
        %5746 = vset.pattern.permute.xlu0 0
        %5747 = vperm.xlu0 %5746, %v5580
        %v5748 = vpop.permute.xlu0 %5747
        %5749 = vset.pattern.permute.xlu0 0
        %5750 = vperm.xlu0 %5749, %v5581
        %v5751 = vpop.permute.xlu0 %5750
        %5752 = vset.pattern.permute.xlu0 0
        %5753 = vperm.xlu0 %5752, %v5582
        %v5754 = vpop.permute.xlu0 %5753
        %5755 = vset.pattern.permute.xlu0 0
        %5756 = vperm.xlu0 %5755, %v5583
        %v5757 = vpop.permute.xlu0 %5756
        %5758 = vset.pattern.permute.xlu0 0
        %5759 = vperm.xlu0 %5758, %v5584
        %v5760 = vpop.permute.xlu0 %5759
        %5761 = vset.pattern.permute.xlu0 0
        %5762 = vperm.xlu0 %5761, %v5585
        %v5763 = vpop.permute.xlu0 %5762
        %5764 = vset.pattern.permute.xlu0 0
        %5765 = vperm.xlu0 %5764, %v5586
        %v5766 = vpop.permute.xlu0 %5765
        %5767 = vset.pattern.permute.xlu0 0
        %5768 = vperm.xlu0 %5767, %v5587
        %v5769 = vpop.permute.xlu0 %5768
        %5770 = vset.pattern.permute.xlu0 0
        %5771 = vperm.xlu0 %5770, %v5588
        %v5772 = vpop.permute.xlu0 %5771
        %5773 = vset.pattern.permute.xlu0 0
        %5774 = vperm.xlu0 %5773, %v5589
        %v5775 = vpop.permute.xlu0 %5774
        %5776 = vset.pattern.permute.xlu0 0
        %5777 = vperm.xlu0 %5776, %v5590
        %v5778 = vpop.permute.xlu0 %5777
        %5779 = vset.pattern.permute.xlu0 0
        %5780 = vperm.xlu0 %5779, %v5591
        %v5781 = vpop.permute.xlu0 %5780
        %5782 = vset.pattern.permute.xlu0 0
        %5783 = vperm.xlu0 %5782, %v5592
        %v5784 = vpop.permute.xlu0 %5783
        %5785 = vset.pattern.permute.xlu0 0
        %5786 = vperm.xlu0 %5785, %v5593
        %v5787 = vpop.permute.xlu0 %5786
        %5788 = vset.pattern.permute.xlu0 0
        %5789 = vperm.xlu0 %5788, %v5594
        %v5790 = vpop.permute.xlu0 %5789
        %5791 = vset.pattern.permute.xlu0 0
        %5792 = vperm.xlu0 %5791, %v5595
        %v5793 = vpop.permute.xlu0 %5792
        %5794 = vset.pattern.permute.xlu0 0
        %5795 = vperm.xlu0 %5794, %v5596
        %v5796 = vpop.permute.xlu0 %5795
        %5797 = vset.pattern.permute.xlu0 0
        %5798 = vperm.xlu0 %5797, %v5597
        %v5799 = vpop.permute.xlu0 %5798
        %5800 = vset.pattern.permute.xlu0 0
        %5801 = vperm.xlu0 %5800, %v5598
        %v5802 = vpop.permute.xlu0 %5801
        %5803 = vset.pattern.permute.xlu0 0
        %5804 = vperm.xlu0 %5803, %v5599
        %v5805 = vpop.permute.xlu0 %5804
        %5806 = vset.pattern.permute.xlu0 0
        %5807 = vperm.xlu0 %5806, %v5600
        %v5808 = vpop.permute.xlu0 %5807
        %5809 = vset.pattern.permute.xlu0 0
        %5810 = vperm.xlu0 %5809, %v5601
        %v5811 = vpop.permute.xlu0 %5810
        %5812 = vset.pattern.permute.xlu0 0
        %5813 = vperm.xlu0 %5812, %v5602
        %v5814 = vpop.permute.xlu0 %5813
        %5815 = vset.pattern.permute.xlu0 0
        %5816 = vperm.xlu0 %5815, %v5603
        %v5817 = vpop.permute.xlu0 %5816
        %5818 = vset.pattern.permute.xlu0 0
        %5819 = vperm.xlu0 %5818, %v5604
        %v5820 = vpop.permute.xlu0 %5819
        %5821 = vset.pattern.permute.xlu0 0
        %5822 = vperm.xlu0 %5821, %v5605
        %v5823 = vpop.permute.xlu0 %5822
        %5824 = vset.pattern.permute.xlu0 0
        %5825 = vperm.xlu0 %5824, %v5606
        %v5826 = vpop.permute.xlu0 %5825
        %5827 = vset.pattern.permute.xlu0 0
        %5828 = vperm.xlu0 %5827, %v5607
        %v5829 = vpop.permute.xlu0 %5828
        %5830 = vset.pattern.permute.xlu0 0
        %5831 = vperm.xlu0 %5830, %v5608
        %v5832 = vpop.permute.xlu0 %5831
        %5833 = vset.pattern.permute.xlu0 0
        %5834 = vperm.xlu0 %5833, %v5609
        %v5835 = vpop.permute.xlu0 %5834
        %5836 = vset.pattern.permute.xlu0 0
        %5837 = vperm.xlu0 %5836, %v5610
        %v5838 = vpop.permute.xlu0 %5837
        %5839 = vset.pattern.permute.xlu0 0
        %5840 = vperm.xlu0 %5839, %v5611
        %v5841 = vpop.permute.xlu0 %5840
        %5842 = vset.pattern.permute.xlu0 0
        %5843 = vperm.xlu0 %5842, %v5612
        %v5844 = vpop.permute.xlu0 %5843
        %5845 = vset.pattern.permute.xlu0 0
        %5846 = vperm.xlu0 %5845, %v5613
        %v5847 = vpop.permute.xlu0 %5846
        %5848 = vset.pattern.permute.xlu0 0
        %5849 = vperm.xlu0 %5848, %v5614
        %v5850 = vpop.permute.xlu0 %5849
        %5851 = vset.pattern.permute.xlu0 0
        %5852 = vperm.xlu0 %5851, %v5615
        %v5853 = vpop.permute.xlu0 %5852
        %5854 = vset.pattern.permute.xlu0 0
        %5855 = vperm.xlu0 %5854, %v5616
        %v5856 = vpop.permute.xlu0 %5855
        %5857 = vset.pattern.permute.xlu0 0
        %5858 = vperm.xlu0 %5857, %v5617
        %v5859 = vpop.permute.xlu0 %5858
        %5860 = vset.pattern.permute.xlu0 0
        %5861 = vperm.xlu0 %5860, %v5618
        %v5862 = vpop.permute.xlu0 %5861
        %5863 = vset.pattern.permute.xlu0 0
        %5864 = vperm.xlu0 %5863, %v5619
        %v5865 = vpop.permute.xlu0 %5864
        %5866 = vset.pattern.permute.xlu0 0
        %5867 = vperm.xlu0 %5866, %v5620
        %v5868 = vpop.permute.xlu0 %5867
        %5869 = vset.pattern.permute.xlu0 0
        %5870 = vperm.xlu0 %5869, %v5621
        %v5871 = vpop.permute.xlu0 %5870
        %5872 = vset.pattern.permute.xlu0 0
        %5873 = vperm.xlu0 %5872, %v5622
        %v5874 = vpop.permute.xlu0 %5873
        %5875 = vset.pattern.permute.xlu0 0
        %5876 = vperm.xlu0 %5875, %v5623
        %v5877 = vpop.permute.xlu0 %5876
        %5878 = vset.pattern.permute.xlu0 0
        %5879 = vperm.xlu0 %5878, %v5624
        %v5880 = vpop.permute.xlu0 %5879
        %5881 = vset.pattern.permute.xlu0 0
        %5882 = vperm.xlu0 %5881, %v5625
        %v5883 = vpop.permute.xlu0 %5882
        %5884 = vset.pattern.permute.xlu0 0
        %5885 = vperm.xlu0 %5884, %v5626
        %v5886 = vpop.permute.xlu0 %5885
        %5887 = vset.pattern.permute.xlu0 0
        %5888 = vperm.xlu0 %5887, %v5627
        %v5889 = vpop.permute.xlu0 %5888
        %5890 = vset.pattern.permute.xlu0 0
        %5891 = vperm.xlu0 %5890, %v5628
        %v5892 = vpop.permute.xlu0 %5891
        %5893 = vset.pattern.permute.xlu0 0
        %5894 = vperm.xlu0 %5893, %v5629
        %v5895 = vpop.permute.xlu0 %5894
        %5896 = vset.pattern.permute.xlu0 0
        %5897 = vperm.xlu0 %5896, %v5630
        %v5898 = vpop.permute.xlu0 %5897
        %5899 = vset.pattern.permute.xlu0 0
        %5900 = vperm.xlu0 %5899, %v5631
        %v5901 = vpop.permute.xlu0 %5900
        %5902 = vset.pattern.permute.xlu0 0
        %5903 = vperm.xlu0 %5902, %v5632
        %v5904 = vpop.permute.xlu0 %5903
        %5905 = vset.pattern.permute.xlu0 0
        %5906 = vperm.xlu0 %5905, %v5633
        %v5907 = vpop.permute.xlu0 %5906
        %5908 = vset.pattern.permute.xlu0 0
        %5909 = vperm.xlu0 %5908, %v5634
        %v5910 = vpop.permute.xlu0 %5909
        %5911 = vset.pattern.permute.xlu0 0
        %5912 = vperm.xlu0 %5911, %v5635
        %v5913 = vpop.permute.xlu0 %5912
        %5914 = vset.pattern.permute.xlu0 0
        %5915 = vperm.xlu0 %5914, %v5636
        %v5916 = vpop.permute.xlu0 %5915
        %5917 = vset.pattern.permute.xlu0 0
        %5918 = vperm.xlu0 %5917, %v5637
        %v5919 = vpop.permute.xlu0 %5918
        %5920 = vset.pattern.permute.xlu0 0
        %5921 = vperm.xlu0 %5920, %v5638
        %v5922 = vpop.permute.xlu0 %5921
        %5923 = vset.pattern.permute.xlu0 0
        %5924 = vperm.xlu0 %5923, %v5639
        %v5925 = vpop.permute.xlu0 %5924
        %5926 = vset.pattern.permute.xlu0 0
        %5927 = vperm.xlu0 %5926, %v5640
        %v5928 = vpop.permute.xlu0 %5927
        %5929 = vset.pattern.permute.xlu0 0
        %5930 = vperm.xlu0 %5929, %v5641
        %v5931 = vpop.permute.xlu0 %5930
        %5932 = vset.pattern.permute.xlu0 0
        %5933 = vperm.xlu0 %5932, %v5642
        %v5934 = vpop.permute.xlu0 %5933
        %5935 = vset.pattern.permute.xlu0 0
        %5936 = vperm.xlu0 %5935, %v5643
        %v5937 = vpop.permute.xlu0 %5936
        %5938 = vset.pattern.permute.xlu0 0
        %5939 = vperm.xlu0 %5938, %v5644
        %v5940 = vpop.permute.xlu0 %5939
        %5941 = vset.pattern.permute.xlu0 0
        %5942 = vperm.xlu0 %5941, %v5645
        %v5943 = vpop.permute.xlu0 %5942
        %5944 = vset.pattern.permute.xlu0 0
        %5945 = vperm.xlu0 %5944, %v5646
        %v5946 = vpop.permute.xlu0 %5945
        %5947 = vset.pattern.permute.xlu0 0
        %5948 = vperm.xlu0 %5947, %v5647
        %v5949 = vpop.permute.xlu0 %5948
        %5950 = vset.pattern.permute.xlu0 0
        %5951 = vperm.xlu0 %5950, %v5648
        %v5952 = vpop.permute.xlu0 %5951
        %5953 = vset.pattern.permute.xlu0 0
        %5954 = vperm.xlu0 %5953, %v5649
        %v5955 = vpop.permute.xlu0 %5954
        %5956 = vset.pattern.permute.xlu0 0
        %5957 = vperm.xlu0 %5956, %v5650
        %v5958 = vpop.permute.xlu0 %5957
        %5959 = vset.pattern.permute.xlu0 0
        %5960 = vperm.xlu0 %5959, %v5651
        %v5961 = vpop.permute.xlu0 %5960
        %5962 = vset.pattern.permute.xlu0 0
        %5963 = vperm.xlu0 %5962, %v5652
        %v5964 = vpop.permute.xlu0 %5963
        %5965 = vset.pattern.permute.xlu0 0
        %5966 = vperm.xlu0 %5965, %v5653
        %v5967 = vpop.permute.xlu0 %5966
        %5968 = vset.pattern.permute.xlu0 0
        %5969 = vperm.xlu0 %5968, %v5654
        %v5970 = vpop.permute.xlu0 %5969
        %5971 = vset.pattern.permute.xlu0 0
        %5972 = vperm.xlu0 %5971, %v5655
        %v5973 = vpop.permute.xlu0 %5972
        %5974 = vset.pattern.permute.xlu0 0
        %5975 = vperm.xlu0 %5974, %v5656
        %v5976 = vpop.permute.xlu0 %5975
        %5977 = vset.pattern.permute.xlu0 0
        %5978 = vperm.xlu0 %5977, %v5657
        %v5979 = vpop.permute.xlu0 %5978
        %5980 = vset.pattern.permute.xlu0 0
        %5981 = vperm.xlu0 %5980, %v5658
        %v5982 = vpop.permute.xlu0 %5981
        %5983 = vset.pattern.permute.xlu0 0
        %5984 = vperm.xlu0 %5983, %v5659
        %v5985 = vpop.permute.xlu0 %5984
        %5986 = vset.pattern.permute.xlu0 0
        %5987 = vperm.xlu0 %5986, %v5660
        %v5988 = vpop.permute.xlu0 %5987
        %5989 = vset.pattern.permute.xlu0 0
        %5990 = vperm.xlu0 %5989, %v5661
        %v5991 = vpop.permute.xlu0 %5990
        %5992 = vset.pattern.permute.xlu0 0
        %5993 = vperm.xlu0 %5992, %v5662
        %v5994 = vpop.permute.xlu0 %5993
        %5995 = vset.pattern.permute.xlu0 0
        %5996 = vperm.xlu0 %5995, %v5663
        %v5997 = vpop.permute.xlu0 %5996
        %5998 = vset.pattern.permute.xlu0 0
        %5999 = vperm.xlu0 %5998, %v5664
        %v6000 = vpop.permute.xlu0 %5999
        %6001 = vset.pattern.permute.xlu0 0
        %6002 = vperm.xlu0 %6001, %v5665
        %v6003 = vpop.permute.xlu0 %6002
        %6004 = vset.pattern.permute.xlu0 0
        %6005 = vperm.xlu0 %6004, %v5666
        %v6006 = vpop.permute.xlu0 %6005
        %6007 = vset.pattern.permute.xlu0 0
        %6008 = vperm.xlu0 %6007, %v5667
        %v6009 = vpop.permute.xlu0 %6008
        %6010 = vset.pattern.permute.xlu0 0
        %6011 = vperm.xlu0 %6010, %v5668
        %v6012 = vpop.permute.xlu0 %6011
        %6013 = vset.pattern.permute.xlu0 0
        %6014 = vperm.xlu0 %6013, %v5669
        %v6015 = vpop.permute.xlu0 %6014
        %6016 = vset.pattern.permute.xlu0 0
        %6017 = vperm.xlu0 %6016, %v5670
        %v6018 = vpop.permute.xlu0 %6017
        %6019 = vset.pattern.permute.xlu0 0
        %6020 = vperm.xlu0 %6019, %v5671
        %v6021 = vpop.permute.xlu0 %6020
        %6022 = vset.pattern.permute.xlu0 0
        %6023 = vperm.xlu0 %6022, %v5672
        %v6024 = vpop.permute.xlu0 %6023
        %6025 = vset.pattern.permute.xlu0 0
        %6026 = vperm.xlu0 %6025, %v5673
        %v6027 = vpop.permute.xlu0 %6026
        %6028 = vset.pattern.permute.xlu0 0
        %6029 = vperm.xlu0 %6028, %v5674
        %v6030 = vpop.permute.xlu0 %6029
        %6031 = vset.pattern.permute.xlu0 0
        %6032 = vperm.xlu0 %6031, %v5675
        %v6033 = vpop.permute.xlu0 %6032
        %6034 = vset.pattern.permute.xlu0 0
        %6035 = vperm.xlu0 %6034, %v5676
        %v6036 = vpop.permute.xlu0 %6035
        %6037 = vset.pattern.permute.xlu0 0
        %6038 = vperm.xlu0 %6037, %v5677
        %v6039 = vpop.permute.xlu0 %6038
        %6040 = vset.pattern.permute.xlu0 0
        %6041 = vperm.xlu0 %6040, %v5678
        %v6042 = vpop.permute.xlu0 %6041
        %6043 = vset.pattern.permute.xlu0 0
        %6044 = vperm.xlu0 %6043, %v5679
        %v6045 = vpop.permute.xlu0 %6044
        %6046 = vset.pattern.permute.xlu0 0
        %6047 = vperm.xlu0 %6046, %v5680
        %v6048 = vpop.permute.xlu0 %6047
        %6049 = vset.pattern.permute.xlu0 0
        %6050 = vperm.xlu0 %6049, %v5681
        %v6051 = vpop.permute.xlu0 %6050
        %6052 = vset.pattern.permute.xlu0 0
        %6053 = vperm.xlu0 %6052, %v5682
        %v6054 = vpop.permute.xlu0 %6053
        %6055 = vset.pattern.permute.xlu0 0
        %6056 = vperm.xlu0 %6055, %v5683
        %v6057 = vpop.permute.xlu0 %6056
        %6058 = vset.pattern.permute.xlu0 0
        %6059 = vperm.xlu0 %6058, %v5684
        %v6060 = vpop.permute.xlu0 %6059
        %6061 = vset.pattern.permute.xlu0 0
        %6062 = vperm.xlu0 %6061, %v5685
        %v6063 = vpop.permute.xlu0 %6062
        %6064 = vset.pattern.permute.xlu0 0
        %6065 = vperm.xlu0 %6064, %v5686
        %v6066 = vpop.permute.xlu0 %6065
        %6067 = vset.pattern.permute.xlu0 0
        %6068 = vperm.xlu0 %6067, %v5687
        %v6069 = vpop.permute.xlu0 %6068
        %6070 = vset.pattern.permute.xlu0 0
        %6071 = vperm.xlu0 %6070, %v5688
        %v6072 = vpop.permute.xlu0 %6071
        %v6073 = vlaneseq
        %v6074 = vshrl.u32 %v6073, 7
        %v6075 = vsub.s32 %v1639, %v6074
        %v6076 = vrot.slane %v5691, %v6075
        %v6077 = vlaneseq
        %v6078 = vshrl.u32 %v6077, 7
        %v6079 = vsub.s32 %v1644, %v6078
        %v6080 = vrot.slane %v5694, %v6079
        %v6081 = vsel %vm1649, %v6080, %v6076
        %v6082 = vlaneseq
        %v6083 = vshrl.u32 %v6082, 7
        %v6084 = vsub.s32 %v1651, %v6083
        %v6085 = vrot.slane %v5697, %v6084
        %v6086 = vsel %vm1656, %v6085, %v6081
        %v6087 = vlaneseq
        %v6088 = vshrl.u32 %v6087, 7
        %v6089 = vsub.s32 %v1658, %v6088
        %v6090 = vrot.slane %v5700, %v6089
        %v6091 = vsel %vm1663, %v6090, %v6086
        %v6092 = vlaneseq
        %v6093 = vshrl.u32 %v6092, 7
        %v6094 = vsub.s32 %v1665, %v6093
        %v6095 = vrot.slane %v5703, %v6094
        %v6096 = vsel %vm1670, %v6095, %v6091
        %v6097 = vlaneseq
        %v6098 = vshrl.u32 %v6097, 7
        %v6099 = vsub.s32 %v1672, %v6098
        %v6100 = vrot.slane %v5706, %v6099
        %v6101 = vsel %vm1677, %v6100, %v6096
        %v6102 = vlaneseq
        %v6103 = vshrl.u32 %v6102, 7
        %v6104 = vsub.s32 %v1679, %v6103
        %v6105 = vrot.slane %v5709, %v6104
        %v6106 = vsel %vm1684, %v6105, %v6101
        %v6107 = vlaneseq
        %v6108 = vshrl.u32 %v6107, 7
        %v6109 = vsub.s32 %v1686, %v6108
        %v6110 = vrot.slane %v5712, %v6109
        %v6111 = vsel %vm1691, %v6110, %v6106
        %v6112 = vlaneseq
        %v6113 = vshrl.u32 %v6112, 7
        %v6114 = vsub.s32 %v1693, %v6113
        %v6115 = vrot.slane %v5715, %v6114
        %v6116 = vsel %vm1698, %v6115, %v6111
        %v6117 = vlaneseq
        %v6118 = vshrl.u32 %v6117, 7
        %v6119 = vsub.s32 %v1700, %v6118
        %v6120 = vrot.slane %v5718, %v6119
        %v6121 = vsel %vm1705, %v6120, %v6116
        %v6122 = vlaneseq
        %v6123 = vshrl.u32 %v6122, 7
        %v6124 = vsub.s32 %v1707, %v6123
        %v6125 = vrot.slane %v5721, %v6124
        %v6126 = vsel %vm1712, %v6125, %v6121
        %v6127 = vlaneseq
        %v6128 = vshrl.u32 %v6127, 7
        %v6129 = vsub.s32 %v1714, %v6128
        %v6130 = vrot.slane %v5724, %v6129
        %v6131 = vsel %vm1719, %v6130, %v6126
        %v6132 = vlaneseq
        %v6133 = vshrl.u32 %v6132, 7
        %v6134 = vsub.s32 %v1721, %v6133
        %v6135 = vrot.slane %v5727, %v6134
        %v6136 = vsel %vm1726, %v6135, %v6131
        %v6137 = vlaneseq
        %v6138 = vshrl.u32 %v6137, 7
        %v6139 = vsub.s32 %v1728, %v6138
        %v6140 = vrot.slane %v5730, %v6139
        %v6141 = vsel %vm1733, %v6140, %v6136
        %v6142 = vlaneseq
        %v6143 = vshrl.u32 %v6142, 7
        %v6144 = vsub.s32 %v1735, %v6143
        %v6145 = vrot.slane %v5733, %v6144
        %v6146 = vsel %vm1740, %v6145, %v6141
        %v6147 = vlaneseq
        %v6148 = vshrl.u32 %v6147, 7
        %v6149 = vsub.s32 %v1742, %v6148
        %v6150 = vrot.slane %v5736, %v6149
        %v6151 = vsel %vm1747, %v6150, %v6146
        %v6152 = vlaneseq
        %v6153 = vshrl.u32 %v6152, 7
        %v6154 = vsub.s32 %v1639, %v6153
        %v6155 = vrot.slane %v5739, %v6154
        %v6156 = vlaneseq
        %v6157 = vshrl.u32 %v6156, 7
        %v6158 = vsub.s32 %v1644, %v6157
        %v6159 = vrot.slane %v5742, %v6158
        %v6160 = vsel %vm1649, %v6159, %v6155
        %v6161 = vlaneseq
        %v6162 = vshrl.u32 %v6161, 7
        %v6163 = vsub.s32 %v1651, %v6162
        %v6164 = vrot.slane %v5745, %v6163
        %v6165 = vsel %vm1656, %v6164, %v6160
        %v6166 = vlaneseq
        %v6167 = vshrl.u32 %v6166, 7
        %v6168 = vsub.s32 %v1658, %v6167
        %v6169 = vrot.slane %v5748, %v6168
        %v6170 = vsel %vm1663, %v6169, %v6165
        %v6171 = vlaneseq
        %v6172 = vshrl.u32 %v6171, 7
        %v6173 = vsub.s32 %v1665, %v6172
        %v6174 = vrot.slane %v5751, %v6173
        %v6175 = vsel %vm1670, %v6174, %v6170
        %v6176 = vlaneseq
        %v6177 = vshrl.u32 %v6176, 7
        %v6178 = vsub.s32 %v1672, %v6177
        %v6179 = vrot.slane %v5754, %v6178
        %v6180 = vsel %vm1677, %v6179, %v6175
        %v6181 = vlaneseq
        %v6182 = vshrl.u32 %v6181, 7
        %v6183 = vsub.s32 %v1679, %v6182
        %v6184 = vrot.slane %v5757, %v6183
        %v6185 = vsel %vm1684, %v6184, %v6180
        %v6186 = vlaneseq
        %v6187 = vshrl.u32 %v6186, 7
        %v6188 = vsub.s32 %v1686, %v6187
        %v6189 = vrot.slane %v5760, %v6188
        %v6190 = vsel %vm1691, %v6189, %v6185
        %v6191 = vlaneseq
        %v6192 = vshrl.u32 %v6191, 7
        %v6193 = vsub.s32 %v1693, %v6192
        %v6194 = vrot.slane %v5763, %v6193
        %v6195 = vsel %vm1698, %v6194, %v6190
        %v6196 = vlaneseq
        %v6197 = vshrl.u32 %v6196, 7
        %v6198 = vsub.s32 %v1700, %v6197
        %v6199 = vrot.slane %v5766, %v6198
        %v6200 = vsel %vm1705, %v6199, %v6195
        %v6201 = vlaneseq
        %v6202 = vshrl.u32 %v6201, 7
        %v6203 = vsub.s32 %v1707, %v6202
        %v6204 = vrot.slane %v5769, %v6203
        %v6205 = vsel %vm1712, %v6204, %v6200
        %v6206 = vlaneseq
        %v6207 = vshrl.u32 %v6206, 7
        %v6208 = vsub.s32 %v1714, %v6207
        %v6209 = vrot.slane %v5772, %v6208
        %v6210 = vsel %vm1719, %v6209, %v6205
        %v6211 = vlaneseq
        %v6212 = vshrl.u32 %v6211, 7
        %v6213 = vsub.s32 %v1721, %v6212
        %v6214 = vrot.slane %v5775, %v6213
        %v6215 = vsel %vm1726, %v6214, %v6210
        %v6216 = vlaneseq
        %v6217 = vshrl.u32 %v6216, 7
        %v6218 = vsub.s32 %v1728, %v6217
        %v6219 = vrot.slane %v5778, %v6218
        %v6220 = vsel %vm1733, %v6219, %v6215
        %v6221 = vlaneseq
        %v6222 = vshrl.u32 %v6221, 7
        %v6223 = vsub.s32 %v1735, %v6222
        %v6224 = vrot.slane %v5781, %v6223
        %v6225 = vsel %vm1740, %v6224, %v6220
        %v6226 = vlaneseq
        %v6227 = vshrl.u32 %v6226, 7
        %v6228 = vsub.s32 %v1742, %v6227
        %v6229 = vrot.slane %v5784, %v6228
        %v6230 = vsel %vm1747, %v6229, %v6225
        %v6231 = vlaneseq
        %v6232 = vshrl.u32 %v6231, 7
        %v6233 = vsub.s32 %v1639, %v6232
        %v6234 = vrot.slane %v5787, %v6233
        %v6235 = vlaneseq
        %v6236 = vshrl.u32 %v6235, 7
        %v6237 = vsub.s32 %v1644, %v6236
        %v6238 = vrot.slane %v5790, %v6237
        %v6239 = vsel %vm1649, %v6238, %v6234
        %v6240 = vlaneseq
        %v6241 = vshrl.u32 %v6240, 7
        %v6242 = vsub.s32 %v1651, %v6241
        %v6243 = vrot.slane %v5793, %v6242
        %v6244 = vsel %vm1656, %v6243, %v6239
        %v6245 = vlaneseq
        %v6246 = vshrl.u32 %v6245, 7
        %v6247 = vsub.s32 %v1658, %v6246
        %v6248 = vrot.slane %v5796, %v6247
        %v6249 = vsel %vm1663, %v6248, %v6244
        %v6250 = vlaneseq
        %v6251 = vshrl.u32 %v6250, 7
        %v6252 = vsub.s32 %v1665, %v6251
        %v6253 = vrot.slane %v5799, %v6252
        %v6254 = vsel %vm1670, %v6253, %v6249
        %v6255 = vlaneseq
        %v6256 = vshrl.u32 %v6255, 7
        %v6257 = vsub.s32 %v1672, %v6256
        %v6258 = vrot.slane %v5802, %v6257
        %v6259 = vsel %vm1677, %v6258, %v6254
        %v6260 = vlaneseq
        %v6261 = vshrl.u32 %v6260, 7
        %v6262 = vsub.s32 %v1679, %v6261
        %v6263 = vrot.slane %v5805, %v6262
        %v6264 = vsel %vm1684, %v6263, %v6259
        %v6265 = vlaneseq
        %v6266 = vshrl.u32 %v6265, 7
        %v6267 = vsub.s32 %v1686, %v6266
        %v6268 = vrot.slane %v5808, %v6267
        %v6269 = vsel %vm1691, %v6268, %v6264
        %v6270 = vlaneseq
        %v6271 = vshrl.u32 %v6270, 7
        %v6272 = vsub.s32 %v1693, %v6271
        %v6273 = vrot.slane %v5811, %v6272
        %v6274 = vsel %vm1698, %v6273, %v6269
        %v6275 = vlaneseq
        %v6276 = vshrl.u32 %v6275, 7
        %v6277 = vsub.s32 %v1700, %v6276
        %v6278 = vrot.slane %v5814, %v6277
        %v6279 = vsel %vm1705, %v6278, %v6274
        %v6280 = vlaneseq
        %v6281 = vshrl.u32 %v6280, 7
        %v6282 = vsub.s32 %v1707, %v6281
        %v6283 = vrot.slane %v5817, %v6282
        %v6284 = vsel %vm1712, %v6283, %v6279
        %v6285 = vlaneseq
        %v6286 = vshrl.u32 %v6285, 7
        %v6287 = vsub.s32 %v1714, %v6286
        %v6288 = vrot.slane %v5820, %v6287
        %v6289 = vsel %vm1719, %v6288, %v6284
        %v6290 = vlaneseq
        %v6291 = vshrl.u32 %v6290, 7
        %v6292 = vsub.s32 %v1721, %v6291
        %v6293 = vrot.slane %v5823, %v6292
        %v6294 = vsel %vm1726, %v6293, %v6289
        %v6295 = vlaneseq
        %v6296 = vshrl.u32 %v6295, 7
        %v6297 = vsub.s32 %v1728, %v6296
        %v6298 = vrot.slane %v5826, %v6297
        %v6299 = vsel %vm1733, %v6298, %v6294
        %v6300 = vlaneseq
        %v6301 = vshrl.u32 %v6300, 7
        %v6302 = vsub.s32 %v1735, %v6301
        %v6303 = vrot.slane %v5829, %v6302
        %v6304 = vsel %vm1740, %v6303, %v6299
        %v6305 = vlaneseq
        %v6306 = vshrl.u32 %v6305, 7
        %v6307 = vsub.s32 %v1742, %v6306
        %v6308 = vrot.slane %v5832, %v6307
        %v6309 = vsel %vm1747, %v6308, %v6304
        %v6310 = vlaneseq
        %v6311 = vshrl.u32 %v6310, 7
        %v6312 = vsub.s32 %v1639, %v6311
        %v6313 = vrot.slane %v5835, %v6312
        %v6314 = vlaneseq
        %v6315 = vshrl.u32 %v6314, 7
        %v6316 = vsub.s32 %v1644, %v6315
        %v6317 = vrot.slane %v5838, %v6316
        %v6318 = vsel %vm1649, %v6317, %v6313
        %v6319 = vlaneseq
        %v6320 = vshrl.u32 %v6319, 7
        %v6321 = vsub.s32 %v1651, %v6320
        %v6322 = vrot.slane %v5841, %v6321
        %v6323 = vsel %vm1656, %v6322, %v6318
        %v6324 = vlaneseq
        %v6325 = vshrl.u32 %v6324, 7
        %v6326 = vsub.s32 %v1658, %v6325
        %v6327 = vrot.slane %v5844, %v6326
        %v6328 = vsel %vm1663, %v6327, %v6323
        %v6329 = vlaneseq
        %v6330 = vshrl.u32 %v6329, 7
        %v6331 = vsub.s32 %v1665, %v6330
        %v6332 = vrot.slane %v5847, %v6331
        %v6333 = vsel %vm1670, %v6332, %v6328
        %v6334 = vlaneseq
        %v6335 = vshrl.u32 %v6334, 7
        %v6336 = vsub.s32 %v1672, %v6335
        %v6337 = vrot.slane %v5850, %v6336
        %v6338 = vsel %vm1677, %v6337, %v6333
        %v6339 = vlaneseq
        %v6340 = vshrl.u32 %v6339, 7
        %v6341 = vsub.s32 %v1679, %v6340
        %v6342 = vrot.slane %v5853, %v6341
        %v6343 = vsel %vm1684, %v6342, %v6338
        %v6344 = vlaneseq
        %v6345 = vshrl.u32 %v6344, 7
        %v6346 = vsub.s32 %v1686, %v6345
        %v6347 = vrot.slane %v5856, %v6346
        %v6348 = vsel %vm1691, %v6347, %v6343
        %v6349 = vlaneseq
        %v6350 = vshrl.u32 %v6349, 7
        %v6351 = vsub.s32 %v1693, %v6350
        %v6352 = vrot.slane %v5859, %v6351
        %v6353 = vsel %vm1698, %v6352, %v6348
        %v6354 = vlaneseq
        %v6355 = vshrl.u32 %v6354, 7
        %v6356 = vsub.s32 %v1700, %v6355
        %v6357 = vrot.slane %v5862, %v6356
        %v6358 = vsel %vm1705, %v6357, %v6353
        %v6359 = vlaneseq
        %v6360 = vshrl.u32 %v6359, 7
        %v6361 = vsub.s32 %v1707, %v6360
        %v6362 = vrot.slane %v5865, %v6361
        %v6363 = vsel %vm1712, %v6362, %v6358
        %v6364 = vlaneseq
        %v6365 = vshrl.u32 %v6364, 7
        %v6366 = vsub.s32 %v1714, %v6365
        %v6367 = vrot.slane %v5868, %v6366
        %v6368 = vsel %vm1719, %v6367, %v6363
        %v6369 = vlaneseq
        %v6370 = vshrl.u32 %v6369, 7
        %v6371 = vsub.s32 %v1721, %v6370
        %v6372 = vrot.slane %v5871, %v6371
        %v6373 = vsel %vm1726, %v6372, %v6368
        %v6374 = vlaneseq
        %v6375 = vshrl.u32 %v6374, 7
        %v6376 = vsub.s32 %v1728, %v6375
        %v6377 = vrot.slane %v5874, %v6376
        %v6378 = vsel %vm1733, %v6377, %v6373
        %v6379 = vlaneseq
        %v6380 = vshrl.u32 %v6379, 7
        %v6381 = vsub.s32 %v1735, %v6380
        %v6382 = vrot.slane %v5877, %v6381
        %v6383 = vsel %vm1740, %v6382, %v6378
        %v6384 = vlaneseq
        %v6385 = vshrl.u32 %v6384, 7
        %v6386 = vsub.s32 %v1742, %v6385
        %v6387 = vrot.slane %v5880, %v6386
        %v6388 = vsel %vm1747, %v6387, %v6383
        %v6389 = vlaneseq
        %v6390 = vshrl.u32 %v6389, 7
        %v6391 = vsub.s32 %v1639, %v6390
        %v6392 = vrot.slane %v5883, %v6391
        %v6393 = vlaneseq
        %v6394 = vshrl.u32 %v6393, 7
        %v6395 = vsub.s32 %v1644, %v6394
        %v6396 = vrot.slane %v5886, %v6395
        %v6397 = vsel %vm1649, %v6396, %v6392
        %v6398 = vlaneseq
        %v6399 = vshrl.u32 %v6398, 7
        %v6400 = vsub.s32 %v1651, %v6399
        %v6401 = vrot.slane %v5889, %v6400
        %v6402 = vsel %vm1656, %v6401, %v6397
        %v6403 = vlaneseq
        %v6404 = vshrl.u32 %v6403, 7
        %v6405 = vsub.s32 %v1658, %v6404
        %v6406 = vrot.slane %v5892, %v6405
        %v6407 = vsel %vm1663, %v6406, %v6402
        %v6408 = vlaneseq
        %v6409 = vshrl.u32 %v6408, 7
        %v6410 = vsub.s32 %v1665, %v6409
        %v6411 = vrot.slane %v5895, %v6410
        %v6412 = vsel %vm1670, %v6411, %v6407
        %v6413 = vlaneseq
        %v6414 = vshrl.u32 %v6413, 7
        %v6415 = vsub.s32 %v1672, %v6414
        %v6416 = vrot.slane %v5898, %v6415
        %v6417 = vsel %vm1677, %v6416, %v6412
        %v6418 = vlaneseq
        %v6419 = vshrl.u32 %v6418, 7
        %v6420 = vsub.s32 %v1679, %v6419
        %v6421 = vrot.slane %v5901, %v6420
        %v6422 = vsel %vm1684, %v6421, %v6417
        %v6423 = vlaneseq
        %v6424 = vshrl.u32 %v6423, 7
        %v6425 = vsub.s32 %v1686, %v6424
        %v6426 = vrot.slane %v5904, %v6425
        %v6427 = vsel %vm1691, %v6426, %v6422
        %v6428 = vlaneseq
        %v6429 = vshrl.u32 %v6428, 7
        %v6430 = vsub.s32 %v1693, %v6429
        %v6431 = vrot.slane %v5907, %v6430
        %v6432 = vsel %vm1698, %v6431, %v6427
        %v6433 = vlaneseq
        %v6434 = vshrl.u32 %v6433, 7
        %v6435 = vsub.s32 %v1700, %v6434
        %v6436 = vrot.slane %v5910, %v6435
        %v6437 = vsel %vm1705, %v6436, %v6432
        %v6438 = vlaneseq
        %v6439 = vshrl.u32 %v6438, 7
        %v6440 = vsub.s32 %v1707, %v6439
        %v6441 = vrot.slane %v5913, %v6440
        %v6442 = vsel %vm1712, %v6441, %v6437
        %v6443 = vlaneseq
        %v6444 = vshrl.u32 %v6443, 7
        %v6445 = vsub.s32 %v1714, %v6444
        %v6446 = vrot.slane %v5916, %v6445
        %v6447 = vsel %vm1719, %v6446, %v6442
        %v6448 = vlaneseq
        %v6449 = vshrl.u32 %v6448, 7
        %v6450 = vsub.s32 %v1721, %v6449
        %v6451 = vrot.slane %v5919, %v6450
        %v6452 = vsel %vm1726, %v6451, %v6447
        %v6453 = vlaneseq
        %v6454 = vshrl.u32 %v6453, 7
        %v6455 = vsub.s32 %v1728, %v6454
        %v6456 = vrot.slane %v5922, %v6455
        %v6457 = vsel %vm1733, %v6456, %v6452
        %v6458 = vlaneseq
        %v6459 = vshrl.u32 %v6458, 7
        %v6460 = vsub.s32 %v1735, %v6459
        %v6461 = vrot.slane %v5925, %v6460
        %v6462 = vsel %vm1740, %v6461, %v6457
        %v6463 = vlaneseq
        %v6464 = vshrl.u32 %v6463, 7
        %v6465 = vsub.s32 %v1742, %v6464
        %v6466 = vrot.slane %v5928, %v6465
        %v6467 = vsel %vm1747, %v6466, %v6462
        %v6468 = vlaneseq
        %v6469 = vshrl.u32 %v6468, 7
        %v6470 = vsub.s32 %v1639, %v6469
        %v6471 = vrot.slane %v5931, %v6470
        %v6472 = vlaneseq
        %v6473 = vshrl.u32 %v6472, 7
        %v6474 = vsub.s32 %v1644, %v6473
        %v6475 = vrot.slane %v5934, %v6474
        %v6476 = vsel %vm1649, %v6475, %v6471
        %v6477 = vlaneseq
        %v6478 = vshrl.u32 %v6477, 7
        %v6479 = vsub.s32 %v1651, %v6478
        %v6480 = vrot.slane %v5937, %v6479
        %v6481 = vsel %vm1656, %v6480, %v6476
        %v6482 = vlaneseq
        %v6483 = vshrl.u32 %v6482, 7
        %v6484 = vsub.s32 %v1658, %v6483
        %v6485 = vrot.slane %v5940, %v6484
        %v6486 = vsel %vm1663, %v6485, %v6481
        %v6487 = vlaneseq
        %v6488 = vshrl.u32 %v6487, 7
        %v6489 = vsub.s32 %v1665, %v6488
        %v6490 = vrot.slane %v5943, %v6489
        %v6491 = vsel %vm1670, %v6490, %v6486
        %v6492 = vlaneseq
        %v6493 = vshrl.u32 %v6492, 7
        %v6494 = vsub.s32 %v1672, %v6493
        %v6495 = vrot.slane %v5946, %v6494
        %v6496 = vsel %vm1677, %v6495, %v6491
        %v6497 = vlaneseq
        %v6498 = vshrl.u32 %v6497, 7
        %v6499 = vsub.s32 %v1679, %v6498
        %v6500 = vrot.slane %v5949, %v6499
        %v6501 = vsel %vm1684, %v6500, %v6496
        %v6502 = vlaneseq
        %v6503 = vshrl.u32 %v6502, 7
        %v6504 = vsub.s32 %v1686, %v6503
        %v6505 = vrot.slane %v5952, %v6504
        %v6506 = vsel %vm1691, %v6505, %v6501
        %v6507 = vlaneseq
        %v6508 = vshrl.u32 %v6507, 7
        %v6509 = vsub.s32 %v1693, %v6508
        %v6510 = vrot.slane %v5955, %v6509
        %v6511 = vsel %vm1698, %v6510, %v6506
        %v6512 = vlaneseq
        %v6513 = vshrl.u32 %v6512, 7
        %v6514 = vsub.s32 %v1700, %v6513
        %v6515 = vrot.slane %v5958, %v6514
        %v6516 = vsel %vm1705, %v6515, %v6511
        %v6517 = vlaneseq
        %v6518 = vshrl.u32 %v6517, 7
        %v6519 = vsub.s32 %v1707, %v6518
        %v6520 = vrot.slane %v5961, %v6519
        %v6521 = vsel %vm1712, %v6520, %v6516
        %v6522 = vlaneseq
        %v6523 = vshrl.u32 %v6522, 7
        %v6524 = vsub.s32 %v1714, %v6523
        %v6525 = vrot.slane %v5964, %v6524
        %v6526 = vsel %vm1719, %v6525, %v6521
        %v6527 = vlaneseq
        %v6528 = vshrl.u32 %v6527, 7
        %v6529 = vsub.s32 %v1721, %v6528
        %v6530 = vrot.slane %v5967, %v6529
        %v6531 = vsel %vm1726, %v6530, %v6526
        %v6532 = vlaneseq
        %v6533 = vshrl.u32 %v6532, 7
        %v6534 = vsub.s32 %v1728, %v6533
        %v6535 = vrot.slane %v5970, %v6534
        %v6536 = vsel %vm1733, %v6535, %v6531
        %v6537 = vlaneseq
        %v6538 = vshrl.u32 %v6537, 7
        %v6539 = vsub.s32 %v1735, %v6538
        %v6540 = vrot.slane %v5973, %v6539
        %v6541 = vsel %vm1740, %v6540, %v6536
        %v6542 = vlaneseq
        %v6543 = vshrl.u32 %v6542, 7
        %v6544 = vsub.s32 %v1742, %v6543
        %v6545 = vrot.slane %v5976, %v6544
        %v6546 = vsel %vm1747, %v6545, %v6541
        %v6547 = vlaneseq
        %v6548 = vshrl.u32 %v6547, 7
        %v6549 = vsub.s32 %v1639, %v6548
        %v6550 = vrot.slane %v5979, %v6549
        %v6551 = vlaneseq
        %v6552 = vshrl.u32 %v6551, 7
        %v6553 = vsub.s32 %v1644, %v6552
        %v6554 = vrot.slane %v5982, %v6553
        %v6555 = vsel %vm1649, %v6554, %v6550
        %v6556 = vlaneseq
        %v6557 = vshrl.u32 %v6556, 7
        %v6558 = vsub.s32 %v1651, %v6557
        %v6559 = vrot.slane %v5985, %v6558
        %v6560 = vsel %vm1656, %v6559, %v6555
        %v6561 = vlaneseq
        %v6562 = vshrl.u32 %v6561, 7
        %v6563 = vsub.s32 %v1658, %v6562
        %v6564 = vrot.slane %v5988, %v6563
        %v6565 = vsel %vm1663, %v6564, %v6560
        %v6566 = vlaneseq
        %v6567 = vshrl.u32 %v6566, 7
        %v6568 = vsub.s32 %v1665, %v6567
        %v6569 = vrot.slane %v5991, %v6568
        %v6570 = vsel %vm1670, %v6569, %v6565
        %v6571 = vlaneseq
        %v6572 = vshrl.u32 %v6571, 7
        %v6573 = vsub.s32 %v1672, %v6572
        %v6574 = vrot.slane %v5994, %v6573
        %v6575 = vsel %vm1677, %v6574, %v6570
        %v6576 = vlaneseq
        %v6577 = vshrl.u32 %v6576, 7
        %v6578 = vsub.s32 %v1679, %v6577
        %v6579 = vrot.slane %v5997, %v6578
        %v6580 = vsel %vm1684, %v6579, %v6575
        %v6581 = vlaneseq
        %v6582 = vshrl.u32 %v6581, 7
        %v6583 = vsub.s32 %v1686, %v6582
        %v6584 = vrot.slane %v6000, %v6583
        %v6585 = vsel %vm1691, %v6584, %v6580
        %v6586 = vlaneseq
        %v6587 = vshrl.u32 %v6586, 7
        %v6588 = vsub.s32 %v1693, %v6587
        %v6589 = vrot.slane %v6003, %v6588
        %v6590 = vsel %vm1698, %v6589, %v6585
        %v6591 = vlaneseq
        %v6592 = vshrl.u32 %v6591, 7
        %v6593 = vsub.s32 %v1700, %v6592
        %v6594 = vrot.slane %v6006, %v6593
        %v6595 = vsel %vm1705, %v6594, %v6590
        %v6596 = vlaneseq
        %v6597 = vshrl.u32 %v6596, 7
        %v6598 = vsub.s32 %v1707, %v6597
        %v6599 = vrot.slane %v6009, %v6598
        %v6600 = vsel %vm1712, %v6599, %v6595
        %v6601 = vlaneseq
        %v6602 = vshrl.u32 %v6601, 7
        %v6603 = vsub.s32 %v1714, %v6602
        %v6604 = vrot.slane %v6012, %v6603
        %v6605 = vsel %vm1719, %v6604, %v6600
        %v6606 = vlaneseq
        %v6607 = vshrl.u32 %v6606, 7
        %v6608 = vsub.s32 %v1721, %v6607
        %v6609 = vrot.slane %v6015, %v6608
        %v6610 = vsel %vm1726, %v6609, %v6605
        %v6611 = vlaneseq
        %v6612 = vshrl.u32 %v6611, 7
        %v6613 = vsub.s32 %v1728, %v6612
        %v6614 = vrot.slane %v6018, %v6613
        %v6615 = vsel %vm1733, %v6614, %v6610
        %v6616 = vlaneseq
        %v6617 = vshrl.u32 %v6616, 7
        %v6618 = vsub.s32 %v1735, %v6617
        %v6619 = vrot.slane %v6021, %v6618
        %v6620 = vsel %vm1740, %v6619, %v6615
        %v6621 = vlaneseq
        %v6622 = vshrl.u32 %v6621, 7
        %v6623 = vsub.s32 %v1742, %v6622
        %v6624 = vrot.slane %v6024, %v6623
        %v6625 = vsel %vm1747, %v6624, %v6620
        %v6626 = vlaneseq
        %v6627 = vshrl.u32 %v6626, 7
        %v6628 = vsub.s32 %v1639, %v6627
        %v6629 = vrot.slane %v6027, %v6628
        %v6630 = vlaneseq
        %v6631 = vshrl.u32 %v6630, 7
        %v6632 = vsub.s32 %v1644, %v6631
        %v6633 = vrot.slane %v6030, %v6632
        %v6634 = vsel %vm1649, %v6633, %v6629
        %v6635 = vlaneseq
        %v6636 = vshrl.u32 %v6635, 7
        %v6637 = vsub.s32 %v1651, %v6636
        %v6638 = vrot.slane %v6033, %v6637
        %v6639 = vsel %vm1656, %v6638, %v6634
        %v6640 = vlaneseq
        %v6641 = vshrl.u32 %v6640, 7
        %v6642 = vsub.s32 %v1658, %v6641
        %v6643 = vrot.slane %v6036, %v6642
        %v6644 = vsel %vm1663, %v6643, %v6639
        %v6645 = vlaneseq
        %v6646 = vshrl.u32 %v6645, 7
        %v6647 = vsub.s32 %v1665, %v6646
        %v6648 = vrot.slane %v6039, %v6647
        %v6649 = vsel %vm1670, %v6648, %v6644
        %v6650 = vlaneseq
        %v6651 = vshrl.u32 %v6650, 7
        %v6652 = vsub.s32 %v1672, %v6651
        %v6653 = vrot.slane %v6042, %v6652
        %v6654 = vsel %vm1677, %v6653, %v6649
        %v6655 = vlaneseq
        %v6656 = vshrl.u32 %v6655, 7
        %v6657 = vsub.s32 %v1679, %v6656
        %v6658 = vrot.slane %v6045, %v6657
        %v6659 = vsel %vm1684, %v6658, %v6654
        %v6660 = vlaneseq
        %v6661 = vshrl.u32 %v6660, 7
        %v6662 = vsub.s32 %v1686, %v6661
        %v6663 = vrot.slane %v6048, %v6662
        %v6664 = vsel %vm1691, %v6663, %v6659
        %v6665 = vlaneseq
        %v6666 = vshrl.u32 %v6665, 7
        %v6667 = vsub.s32 %v1693, %v6666
        %v6668 = vrot.slane %v6051, %v6667
        %v6669 = vsel %vm1698, %v6668, %v6664
        %v6670 = vlaneseq
        %v6671 = vshrl.u32 %v6670, 7
        %v6672 = vsub.s32 %v1700, %v6671
        %v6673 = vrot.slane %v6054, %v6672
        %v6674 = vsel %vm1705, %v6673, %v6669
        %v6675 = vlaneseq
        %v6676 = vshrl.u32 %v6675, 7
        %v6677 = vsub.s32 %v1707, %v6676
        %v6678 = vrot.slane %v6057, %v6677
        %v6679 = vsel %vm1712, %v6678, %v6674
        %v6680 = vlaneseq
        %v6681 = vshrl.u32 %v6680, 7
        %v6682 = vsub.s32 %v1714, %v6681
        %v6683 = vrot.slane %v6060, %v6682
        %v6684 = vsel %vm1719, %v6683, %v6679
        %v6685 = vlaneseq
        %v6686 = vshrl.u32 %v6685, 7
        %v6687 = vsub.s32 %v1721, %v6686
        %v6688 = vrot.slane %v6063, %v6687
        %v6689 = vsel %vm1726, %v6688, %v6684
        %v6690 = vlaneseq
        %v6691 = vshrl.u32 %v6690, 7
        %v6692 = vsub.s32 %v1728, %v6691
        %v6693 = vrot.slane %v6066, %v6692
        %v6694 = vsel %vm1733, %v6693, %v6689
        %v6695 = vlaneseq
        %v6696 = vshrl.u32 %v6695, 7
        %v6697 = vsub.s32 %v1735, %v6696
        %v6698 = vrot.slane %v6069, %v6697
        %v6699 = vsel %vm1740, %v6698, %v6694
        %v6700 = vlaneseq
        %v6701 = vshrl.u32 %v6700, 7
        %v6702 = vsub.s32 %v1742, %v6701
        %v6703 = vrot.slane %v6072, %v6702
        %v6704 = vsel %vm1747, %v6703, %v6699
        %v6705 = vsel %vm2302, %v6230, %v6151
        %v6706 = vsel %vm2304, %v6309, %v6705
        %v6707 = vsel %vm2306, %v6388, %v6706
        %v6708 = vsel %vm2308, %v6467, %v6707
        %v6709 = vsel %vm2310, %v6546, %v6708
        %v6710 = vsel %vm2312, %v6625, %v6709
        %v6711 = vsel %vm2314, %v6704, %v6710
        %v6712 = vpack.c.b16 %v6711, %v6711
        %6714 = vmatprep.subr.bf16.mxu0 0
        %6715 = vmatpush1.bf16.msra.mxu0 %v508
        %6716 = vmatprep.subr.bf16.mxu0 0
        %6717 = vmatpush1.bf16.msra.mxu0 %v507
        %6718 = vmatprep.subr.bf16.mxu0 0
        %6719 = vmatpush1.bf16.msra.mxu0 %v506
        %6720 = vmatprep.subr.bf16.mxu0 0
        %6721 = vmatpush1.bf16.msra.mxu0 %v505
        %6722 = vmatprep.subr.bf16.mxu0 0
        %6723 = vmatpush1.bf16.msra.mxu0 %v504
        %6724 = vmatprep.subr.bf16.mxu0 0
        %6725 = vmatpush1.bf16.msra.mxu0 %v503
        %6726 = vmatprep.subr.bf16.mxu0 0
        %6727 = vmatpush1.bf16.msra.mxu0 %v502
        %6728 = vmatprep.subr.bf16.mxu0 0
        %6729 = vmatpush1.bf16.msra.mxu0 %v501
        %6730 = vmatprep.subr.bf16.mxu0 0
        %6731 = vmatpush2.bf16.msra.mxu0 0
        %6732 = vmatprep.subr.bf16.mxu0 0
        %6733 = vmatpush2.bf16.msra.mxu0 0
        %6734 = vmatprep.subr.bf16.mxu0 0
        %6735 = vmatpush2.bf16.msra.mxu0 0
        %6736 = vmatprep.subr.bf16.mxu0 0
        %6737 = vmatpush2.bf16.msra.mxu0 0
        %6738 = vmatprep.subr.bf16.mxu0 0
        %6739 = vmatpush2.bf16.msra.mxu0 0
        %6740 = vmatprep.subr.bf16.mxu0 0
        %6741 = vmatpush2.bf16.msra.mxu0 0
        %6742 = vmatprep.subr.bf16.mxu0 0
        %6743 = vmatpush2.bf16.msra.mxu0 0
        %6744 = vmatprep.subr.bf16.mxu0 0
        %6745 = vmatpush2.bf16.msra.mxu0 0
        %6746 = vmatprep.mubr.bf16.mxu0 0
        %6747 = vmatmul.mubr.bf16.gmra.mxu0 %v6712
        %v6748 = vpop.f32.mrf.mxu0
        %v6749 = vadd.f32 0.0, %v6748
        %v6750 = vpop.f32.mrf.mxu0
        %v6751 = vpop.f32.mrf.mxu0
        %v6752 = vpop.f32.mrf.mxu0
        %6753 = vdwg.mxu0
        %6754 = vst [vmem:[%s423] sm:$0xff] %v6749
        %s6755 = sand.u32 %s219, 1
        %s6756 = scalar_lea.sflag [#allocation4], %s6755
        %s6757 = sand.u32 %s219, 1
        %s6758 = smul.addr %s6757, 8
        %s6759 = scalar_lea.vmem [#allocation10], %s6758
        %s6760 = sand.u32 %s247, 1
        %s6761 = scalar_lea.sflag [#allocation12], %s6760
        %s6762 = sand.u32 %s247, 1
        %s6763 = smul.addr %s6762, 8
        %s6764 = scalar_lea.vmem [#allocation11], %s6763
        // Predicated region
        $region65: #{tpu_custom_call.1} parent=47 // pred_check
          %p6765 = pneg %p229
        $region66: #{tpu_custom_call.1} parent=47 // pred_check_branch
          %6767 = sbr.rel (%p6765) target = $region68
        $region67: #{tpu_custom_call.1} parent=47 // pred_region
          %s6769 = ssub.s32 128, 128
          %6770 = vsyncadd %s6756, %s6769
          %s6771 = sadd.s32 %s38, %s37
          %s6772 = smul.addr %s6771, 128
          %s6773 = scalar_lea.hbm %s7, %s6772
          %s6775 = sshll.u32 %s6759, 4
          %s6776 = int_to_ptr.vmem [resolvable:$true] %s6775
          %6778 = dma.vmem_to_hbm [thread:$0]  %s6776, 128, %s6773, %s6756
        $region68: #{tpu_custom_call.1} parent=47 // pred_fallthru
          _
        // Predicated region
        $region69: #{tpu_custom_call.1} parent=47 // pred_check
          %p6779 = pneg %p257
        $region70: #{tpu_custom_call.1} parent=47 // pred_check_branch
          %6781 = sbr.rel (%p6779) target = $region72
        $region71: #{tpu_custom_call.1} parent=47 // pred_region
          %s6783 = ssub.s32 128, 128
          %6784 = vsyncadd %s6761, %s6783
          %s6785 = sadd.s32 %s38, %s37
          %s6786 = smul.addr %s6785, 128
          %s6787 = scalar_lea.hbm %s8, %s6786
          %s6789 = sshll.u32 %s6764, 4
          %s6790 = int_to_ptr.vmem [resolvable:$true] %s6789
          %6792 = dma.vmem_to_hbm [thread:$0]  %s6790, 128, %s6787, %s6761
        $region72: #{tpu_custom_call.1} parent=47 // pred_fallthru
          _
      $region48: #{tpu_custom_call.1} parent=5 // pred_fallthru
        _
      %p6793 = scmp.le.s32.totalorder 2, %s28
      // Predicated region
      $region73: #{tpu_custom_call.1} parent=5 // pred_check
        %p6794 = pneg %p6793
      $region74: #{tpu_custom_call.1} parent=5 // pred_check_branch
        %6796 = sbr.rel (%p6794) target = $region76
      $region75: #{tpu_custom_call.1} parent=5 // pred_region
        %s6797 = ssub.s32 %s28, 2
        // Predicated region
        $region77: #{tpu_custom_call.1} parent=75 // pred_check
          %p6798 = pneg %p235
        $region78: #{tpu_custom_call.1} parent=75 // pred_check_branch
          %6800 = sbr.rel (%p6798) target = $region80
        $region79: #{tpu_custom_call.1} parent=75 // pred_region
          %s6801 = sand.u32 %s220, 1
          %s6802 = scalar_lea.sflag [#allocation4], %s6801
          %s6803 = sand.u32 %s220, 1
          %s6804 = smul.addr %s6803, 8
          %s6805 = scalar_lea.vmem [#allocation10], %s6804
          %6806 = dma.done %s6802, 128
        $region80: #{tpu_custom_call.1} parent=75 // pred_fallthru
          _
        // Predicated region
        $region81: #{tpu_custom_call.1} parent=75 // pred_check
          %p6807 = pneg %p263
        $region82: #{tpu_custom_call.1} parent=75 // pred_check_branch
          %6809 = sbr.rel (%p6807) target = $region84
        $region83: #{tpu_custom_call.1} parent=75 // pred_region
          %s6810 = sand.u32 %s248, 1
          %s6811 = scalar_lea.sflag [#allocation12], %s6810
          %s6812 = sand.u32 %s248, 1
          %s6813 = smul.addr %s6812, 8
          %s6814 = scalar_lea.vmem [#allocation11], %s6813
          %6815 = dma.done %s6811, 128
        $region84: #{tpu_custom_call.1} parent=75 // pred_fallthru
          _
      $region76: #{tpu_custom_call.1} parent=5 // pred_fallthru
        _
    $region6: #{tpu_custom_call.1} parent=1 // loop_footer
      %s32 = sadd.s32 1, %s28
    $region7: #{tpu_custom_call.1} parent=1 // loop_footer_branch
      %27 = sbr.rel target = $region3
    $region8: #{tpu_custom_call.1} parent=1 // loop_exit
      _
    %6816 = vsyncpa [#allocation3], 1
    %s6817 = scalar_lea.sflag [#allocation3], 1
    %6818 = vsyncpa %s6817, 1
    %6819 = vsyncpa [#allocation6], 1
    %s6820 = scalar_lea.sflag [#allocation6], 1
    %6821 = vsyncpa %s6820, 1
    %6822 = vsyncpa [#allocation9], 1
    %6823 = vsyncpa [#allocation4], 1
    %s6824 = scalar_lea.sflag [#allocation4], 1
    %6825 = vsyncpa %s6824, 1
    %6826 = vsyncpa [#allocation12], 1
    %s6827 = scalar_lea.sflag [#allocation12], 1
    %6828 = vsyncpa %s6827, 1

</llo_original>
